<compile_context>
chip_gen: v7x
topology: tpu7x:2x2x1
jax: 0.10.0
libtpu: 0.0.40
codegen_flags: <defaults>
</compile_context>

<pallas_src>
import functools

import jax
import jax.numpy as jnp
import numpy as np
from jax.experimental import pallas as pl
from jax.experimental.pallas import tpu as pltpu

K = 9  # conv kernel size (fixed by the module)


def _conv9_relu_kernel(x_ref, w_ref, b_ref, o_ref, p_ref, *, B, OH, OW, c_pad):
    """One batch of B images per grid step.

    x_ref: (B, H, W*c_pad)         lane-dense NHWC image(s), channels padded
    w_ref: (K*K*c_pad, o_pad)      matmul-layout weight (VMEM-resident)
    b_ref: (1, o_pad)              f32 bias (padded)
    o_ref: (B*OH*OW, o_pad)        lane-dense output rows
    p_ref: (B, OH, OW, K*K*c_pad)  VMEM im2col scratch (compute dtype)
    """
    KC = K * c_pad
    # Build the im2col patch matrix in VMEM.  For each (kh, ow) the source is a
    # contiguous lane window of the shifted rows and the destination is a
    # contiguous lane slice of one `ow` column of the scratch -- identical
    # shapes, so no reshape / lane<->sublane repack inside the loop.
    for kh in range(K):
        rows = x_ref[:, kh:kh + OH, :]                       # (B, OH, W*c_pad)
        for ow in range(OW):
            p_ref[:, :, ow:ow + 1, kh * KC:(kh + 1) * KC] = (
                rows[:, :, ow * c_pad:ow * c_pad + KC][:, :, None, :])

    # One deep-contraction MXU matmul, accumulated in f32.  Zero-padded
    # channels / out-channels contribute zero and are sliced off in the wrapper.
    patches = p_ref[...].reshape(B * OH * OW, K * K * c_pad)
    acc = jnp.dot(patches, w_ref[...], preferred_element_type=jnp.float32)
    acc = acc + b_ref[...]                                   # f32 epilogue
    o_ref[...] = jnp.maximum(acc, 0.0).astype(o_ref.dtype)


def _pick_images_per_step(N, m_per_image, step_row_bytes,
                          target_m=256, vmem_budget=12 << 20):
    """Choose B (images per grid step): push M = B*m_per_image toward the
    v6e/v7x MXU row depth (256), keep >= 2 grid steps when N >= 2 so the
    parallel grid axis can use both v7x TensorCores, and stay inside a
    conservative per-step VMEM budget."""
    max_b = N if N < 2 else max(1, N // 2)
    best = 1
    for cand in range(1, max_b + 1):
        if N % cand:
            continue
        if cand * m_per_image * step_row_bytes > vmem_budget:
            break
        best = cand
        if cand * m_per_image >= target_m:
            break
    return best


def conv_layer_forward(x_nchw, weight, bias, *, compute_dtype=None, out_dtype=None):
    """relu(conv2d(x, weight, bias, k=9, s=1, p=0)); x NCHW, weight OIHW.

    compute_dtype: None -> MXU operands in the input dtype (f32 path);
                   jnp.bfloat16 -> bf16 operands / f32 accumulation.  bf16 is
                   MXU-native on v5e as well as v6e/v7x (f32 is emulated).
    out_dtype:     None -> x.dtype; pass jnp.bfloat16 to halve HBM writeback of
                   the lane-padded output when the consumer tolerates bf16.
    """
    N, C, H, W = x_nchw.shape
    O = weight.shape[0]
    assert weight.shape == (O, C, K, K)
    assert H >= K and W >= K, "conv2d with k=9, pad=0 needs H, W >= 9"
    OH, OW = H - K + 1, W - K + 1

    op_dtype = jnp.dtype(x_nchw.dtype if compute_dtype is None else compute_dtype)
    out_dtype = jnp.dtype(x_nchw.dtype if out_dtype is None else out_dtype)

    # dtype-aware channel pad (sublane packing: 8 rows f32 / 16 bf16 / 32 int8)
    c_align = {4: 8, 2: 16, 1: 32}.get(op_dtype.itemsize, 8)
    c_pad = ((max(C, 1) + c_align - 1) // c_align) * c_align
    o_pad = max(128, ((O + 127) // 128) * 128)      # lane-dense weight/output
    Wc = W * c_pad
    KKC = K * K * c_pad

    # images per grid step
    step_row_bytes = KKC * op_dtype.itemsize + o_pad * (4 + 2 * out_dtype.itemsize)
    B = _pick_images_per_step(N, OH * OW, step_row_bytes)
    grid = N // B
    M_step = B * OH * OW

    # --- layout glue (small, one pass each; keeps the PyTorch NCHW API) ---
    x_nhwc = jnp.transpose(x_nchw, (0, 2, 3, 1)).astype(op_dtype)    # (N,H,W,C)
    x_nhwc = jnp.pad(x_nhwc, ((0, 0), (0, 0), (0, 0), (0, c_pad - C)))
    x_flat = x_nhwc.reshape(N, H, Wc)                                # lane-dense

    w_r = jnp.transpose(weight, (2, 3, 1, 0)).astype(op_dtype)       # (K,K,C,O)
    w_r = jnp.pad(w_r, ((0, 0), (0, 0), (0, c_pad - C), (0, o_pad - O)))
    w_r = w_r.reshape(KKC, o_pad)                                    # matmul layout

    b_r = jnp.pad(bias.reshape(1, O).astype(jnp.float32),
                  ((0, 0), (0, o_pad - O)))

    M_total = N * OH * OW
    flops = 2 * M_total * KKC * o_pad
    bytes_accessed = (x_flat.size * x_flat.dtype.itemsize
                      + w_r.size * w_r.dtype.itemsize
                      + b_r.size * 4
                      + M_total * o_pad * out_dtype.itemsize)

    kernel = functools.partial(_conv9_relu_kernel, B=B, OH=OH, OW=OW, c_pad=c_pad)

    # TODO(synk): for images far beyond capsule-net scale, add an OH-tiled path
    # (halo = K-1 = 8 rows) sized against v7x's 64 MiB VMEM; unnecessary here.
    out = pl.pallas_call(
        kernel,
        out_shape=jax.ShapeDtypeStruct((M_total, o_pad), out_dtype),
        grid=(grid,),
        in_specs=[
            pl.BlockSpec((B, H, Wc), lambda n: (n, 0, 0)),           # image batch
            pl.BlockSpec((KKC, o_pad), lambda n: (0, 0)),            # weight (resident)
            pl.BlockSpec((1, o_pad), lambda n: (0, 0)),              # bias
        ],
        out_specs=pl.BlockSpec((M_step, o_pad), lambda n: (n, 0)),
        scratch_shapes=[pltpu.VMEM((B, OH, OW, KKC), op_dtype)],     # im2col scratch
        compiler_params=pltpu.CompilerParams(
            dimension_semantics=("parallel",),
            vmem_limit_bytes=32 * 1024 * 1024),
        cost_estimate=pl.CostEstimate(flops=flops, transcendentals=0,
                                      bytes_accessed=bytes_accessed),
    )(x_flat, w_r, b_r)

    out = out[:, :O].reshape(N, OH, OW, O)
    return jnp.transpose(out, (0, 3, 1, 2))          # back to NCHW like PyTorch


def conv_layer_reference(x_nchw, weight, bias):
    """Pure-JAX reference (mirrors F.relu(nn.Conv2d(...)(x)))."""
    y = jax.lax.conv_general_dilated(
        x_nchw, weight, window_strides=(1, 1), padding="VALID",
        dimension_numbers=("NCHW", "OIHW", "NCHW"))
    return jax.nn.relu(y + bias.reshape(1, -1, 1, 1))


if __name__ == "__main__":
    key = jax.random.PRNGKey(0)
    kx, kw_, kb = jax.random.split(key, 3)

    # Module defaults: in_channels=2, out_channels=64; small spatial size.
    N, C, H, W, O = 2, 2, 16, 16, 64
    x = jax.random.normal(kx, (N, C, H, W), jnp.float32)

    fan_in = C * K * K
    bound = 1.0 / np.sqrt(fan_in)
    weight = jax.random.uniform(kw_, (O, C, K, K), jnp.float32, -bound, bound)
    bias = jax.random.uniform(kb, (O,), jnp.float32, -bound, bound)

    ref = conv_layer_reference(x, weight, bias)

    # f32-operand path (default).
    out = jax.block_until_ready(conv_layer_forward(x, weight, bias))
    assert out.shape == (N, O, H - K + 1, W - K + 1)
    np.testing.assert_allclose(np.asarray(out), np.asarray(ref), rtol=1e-3, atol=1e-3)

    # bf16 MXU-operand path (MXU-native on v5e/v6e/v7x); f32 accumulation,
    # bf16 Pallas output halves the lane-padded writeback; looser tolerance.
    out_bf16 = jax.block_until_ready(
        conv_layer_forward(x, weight, bias,
                           compute_dtype=jnp.bfloat16, out_dtype=jnp.bfloat16))
    assert out_bf16.shape == (N, O, H - K + 1, W - K + 1)
    np.testing.assert_allclose(np.asarray(out_bf16.astype(jnp.float32)),
                               np.asarray(ref), rtol=5e-2, atol=5e-2)

    print("KERNEL_OK")
</pallas_src>

<mosaic_0001>
module attributes {stable_mosaic.version = 11 : i64} {
  func.func @_conv9_relu_kernel(%arg0: i32, %arg1: memref<1x16x128xf32, #tpu.memory_space<vmem>>, %arg2: memref<648x128xf32, #tpu.memory_space<vmem>>, %arg3: memref<1x128xf32, #tpu.memory_space<vmem>>, %arg4: memref<64x128xf32, #tpu.memory_space<vmem>>, %arg5: memref<1x8x8x648xf32, #tpu.memory_space<vmem>>) attributes {dimension_semantics = [#tpu.dimension_semantics<parallel>], iteration_bounds = array<i64: 2>, scalar_prefetch = 0 : i64, scratch_operands = 1 : i64, tpu.core_type = #tpu.core_type<tc>, window_params = [{transform_indices = @transform_0, window_bounds = array<i64: 1, 16, 128>}, {pipeline_mode = #tpu.pipeline_mode<synchronous>, transform_indices = @transform_1, window_bounds = array<i64: 648, 128>}, {pipeline_mode = #tpu.pipeline_mode<synchronous>, transform_indices = @transform_2, window_bounds = array<i64: 1, 128>}, {transform_indices = @transform_3, window_bounds = array<i64: 64, 128>}]} {
    %c0 = arith.constant 0 : index
    %c0_0 = arith.constant 0 : index
    %c0_1 = arith.constant 0 : index
    %0 = vector.load %arg1[%c0, %c0_0, %c0_1] : memref<1x16x128xf32, #tpu.memory_space<vmem>>, vector<1x8x128xf32>
    %1 = vector.extract_strided_slice %0 {offsets = [0, 0, 0], sizes = [1, 8, 72], strides = [1, 1, 1]} : vector<1x8x128xf32> to vector<1x8x72xf32>
    %2 = vector.shape_cast %1 : vector<1x8x72xf32> to vector<1x8x1x72xf32>
    %c0_2 = arith.constant 0 : index
    %c0_3 = arith.constant 0 : index
    %c0_4 = arith.constant 0 : index
    %c0_5 = arith.constant 0 : index
    %3 = vector.load %arg5[%c0_2, %c0_3, %c0_4, %c0_5] : memref<1x8x8x648xf32, #tpu.memory_space<vmem>>, vector<1x8x1x72xf32>
    tpu.vector_store %arg5[%c0_2, %c0_3, %c0_4, %c0_5], %2 {strides = array<i32>} : memref<1x8x8x648xf32, #tpu.memory_space<vmem>>, vector<1x8x1x72xf32>,
    %4 = vector.extract_strided_slice %0 {offsets = [0, 0, 8], sizes = [1, 8, 72], strides = [1, 1, 1]} : vector<1x8x128xf32> to vector<1x8x72xf32>
    %5 = vector.shape_cast %4 : vector<1x8x72xf32> to vector<1x8x1x72xf32>
    %c0_6 = arith.constant 0 : index
    %c0_7 = arith.constant 0 : index
    %c1 = arith.constant 1 : index
    %c0_8 = arith.constant 0 : index
    %6 = vector.load %arg5[%c0_6, %c0_7, %c1, %c0_8] : memref<1x8x8x648xf32, #tpu.memory_space<vmem>>, vector<1x8x1x72xf32>
    tpu.vector_store %arg5[%c0_6, %c0_7, %c1, %c0_8], %5 {strides = array<i32>} : memref<1x8x8x648xf32, #tpu.memory_space<vmem>>, vector<1x8x1x72xf32>,
    %7 = vector.extract_strided_slice %0 {offsets = [0, 0, 16], sizes = [1, 8, 72], strides = [1, 1, 1]} : vector<1x8x128xf32> to vector<1x8x72xf32>
    %8 = vector.shape_cast %7 : vector<1x8x72xf32> to vector<1x8x1x72xf32>
    %c0_9 = arith.constant 0 : index
    %c0_10 = arith.constant 0 : index
    %c2 = arith.constant 2 : index
    %c0_11 = arith.constant 0 : index
    %9 = vector.load %arg5[%c0_9, %c0_10, %c2, %c0_11] : memref<1x8x8x648xf32, #tpu.memory_space<vmem>>, vector<1x8x1x72xf32>
    tpu.vector_store %arg5[%c0_9, %c0_10, %c2, %c0_11], %8 {strides = array<i32>} : memref<1x8x8x648xf32, #tpu.memory_space<vmem>>, vector<1x8x1x72xf32>,
    %10 = vector.extract_strided_slice %0 {offsets = [0, 0, 24], sizes = [1, 8, 72], strides = [1, 1, 1]} : vector<1x8x128xf32> to vector<1x8x72xf32>
    %11 = vector.shape_cast %10 : vector<1x8x72xf32> to vector<1x8x1x72xf32>
    %c0_12 = arith.constant 0 : index
    %c0_13 = arith.constant 0 : index
    %c3 = arith.constant 3 : index
    %c0_14 = arith.constant 0 : index
    %12 = vector.load %arg5[%c0_12, %c0_13, %c3, %c0_14] : memref<1x8x8x648xf32, #tpu.memory_space<vmem>>, vector<1x8x1x72xf32>
    tpu.vector_store %arg5[%c0_12, %c0_13, %c3, %c0_14], %11 {strides = array<i32>} : memref<1x8x8x648xf32, #tpu.memory_space<vmem>>, vector<1x8x1x72xf32>,
    %13 = vector.extract_strided_slice %0 {offsets = [0, 0, 32], sizes = [1, 8, 72], strides = [1, 1, 1]} : vector<1x8x128xf32> to vector<1x8x72xf32>
    %14 = vector.shape_cast %13 : vector<1x8x72xf32> to vector<1x8x1x72xf32>
    %c0_15 = arith.constant 0 : index
    %c0_16 = arith.constant 0 : index
    %c4 = arith.constant 4 : index
    %c0_17 = arith.constant 0 : index
    %15 = vector.load %arg5[%c0_15, %c0_16, %c4, %c0_17] : memref<1x8x8x648xf32, #tpu.memory_space<vmem>>, vector<1x8x1x72xf32>
    tpu.vector_store %arg5[%c0_15, %c0_16, %c4, %c0_17], %14 {strides = array<i32>} : memref<1x8x8x648xf32, #tpu.memory_space<vmem>>, vector<1x8x1x72xf32>,
    %16 = vector.extract_strided_slice %0 {offsets = [0, 0, 40], sizes = [1, 8, 72], strides = [1, 1, 1]} : vector<1x8x128xf32> to vector<1x8x72xf32>
    %17 = vector.shape_cast %16 : vector<1x8x72xf32> to vector<1x8x1x72xf32>
    %c0_18 = arith.constant 0 : index
    %c0_19 = arith.constant 0 : index
    %c5 = arith.constant 5 : index
    %c0_20 = arith.constant 0 : index
    %18 = vector.load %arg5[%c0_18, %c0_19, %c5, %c0_20] : memref<1x8x8x648xf32, #tpu.memory_space<vmem>>, vector<1x8x1x72xf32>
    tpu.vector_store %arg5[%c0_18, %c0_19, %c5, %c0_20], %17 {strides = array<i32>} : memref<1x8x8x648xf32, #tpu.memory_space<vmem>>, vector<1x8x1x72xf32>,
    %19 = vector.extract_strided_slice %0 {offsets = [0, 0, 48], sizes = [1, 8, 72], strides = [1, 1, 1]} : vector<1x8x128xf32> to vector<1x8x72xf32>
    %20 = vector.shape_cast %19 : vector<1x8x72xf32> to vector<1x8x1x72xf32>
    %c0_21 = arith.constant 0 : index
    %c0_22 = arith.constant 0 : index
    %c6 = arith.constant 6 : index
    %c0_23 = arith.constant 0 : index
    %21 = vector.load %arg5[%c0_21, %c0_22, %c6, %c0_23] : memref<1x8x8x648xf32, #tpu.memory_space<vmem>>, vector<1x8x1x72xf32>
    tpu.vector_store %arg5[%c0_21, %c0_22, %c6, %c0_23], %20 {strides = array<i32>} : memref<1x8x8x648xf32, #tpu.memory_space<vmem>>, vector<1x8x1x72xf32>,
    %22 = vector.extract_strided_slice %0 {offsets = [0, 0, 56], sizes = [1, 8, 72], strides = [1, 1, 1]} : vector<1x8x128xf32> to vector<1x8x72xf32>
    %23 = vector.shape_cast %22 : vector<1x8x72xf32> to vector<1x8x1x72xf32>
    %c0_24 = arith.constant 0 : index
    %c0_25 = arith.constant 0 : index
    %c7 = arith.constant 7 : index
    %c0_26 = arith.constant 0 : index
    %24 = vector.load %arg5[%c0_24, %c0_25, %c7, %c0_26] : memref<1x8x8x648xf32, #tpu.memory_space<vmem>>, vector<1x8x1x72xf32>
    tpu.vector_store %arg5[%c0_24, %c0_25, %c7, %c0_26], %23 {strides = array<i32>} : memref<1x8x8x648xf32, #tpu.memory_space<vmem>>, vector<1x8x1x72xf32>,
    %c0_27 = arith.constant 0 : index
    %c1_28 = arith.constant 1 : index
    %c0_29 = arith.constant 0 : index
    %25 = vector.load %arg1[%c0_27, %c1_28, %c0_29] : memref<1x16x128xf32, #tpu.memory_space<vmem>>, vector<1x8x128xf32>
    %26 = vector.extract_strided_slice %25 {offsets = [0, 0, 0], sizes = [1, 8, 72], strides = [1, 1, 1]} : vector<1x8x128xf32> to vector<1x8x72xf32>
    %27 = vector.shape_cast %26 : vector<1x8x72xf32> to vector<1x8x1x72xf32>
    %c0_30 = arith.constant 0 : index
    %c0_31 = arith.constant 0 : index
    %c0_32 = arith.constant 0 : index
    %c72 = arith.constant 72 : index
    %28 = vector.load %arg5[%c0_30, %c0_31, %c0_32, %c72] : memref<1x8x8x648xf32, #tpu.memory_space<vmem>>, vector<1x8x1x72xf32>
    tpu.vector_store %arg5[%c0_30, %c0_31, %c0_32, %c72], %27 {strides = array<i32>} : memref<1x8x8x648xf32, #tpu.memory_space<vmem>>, vector<1x8x1x72xf32>,
    %29 = vector.extract_strided_slice %25 {offsets = [0, 0, 8], sizes = [1, 8, 72], strides = [1, 1, 1]} : vector<1x8x128xf32> to vector<1x8x72xf32>
    %30 = vector.shape_cast %29 : vector<1x8x72xf32> to vector<1x8x1x72xf32>
    %c0_33 = arith.constant 0 : index
    %c0_34 = arith.constant 0 : index
    %c1_35 = arith.constant 1 : index
    %c72_36 = arith.constant 72 : index
    %31 = vector.load %arg5[%c0_33, %c0_34, %c1_35, %c72_36] : memref<1x8x8x648xf32, #tpu.memory_space<vmem>>, vector<1x8x1x72xf32>
    tpu.vector_store %arg5[%c0_33, %c0_34, %c1_35, %c72_36], %30 {strides = array<i32>} : memref<1x8x8x648xf32, #tpu.memory_space<vmem>>, vector<1x8x1x72xf32>,
    %32 = vector.extract_strided_slice %25 {offsets = [0, 0, 16], sizes = [1, 8, 72], strides = [1, 1, 1]} : vector<1x8x128xf32> to vector<1x8x72xf32>
    %33 = vector.shape_cast %32 : vector<1x8x72xf32> to vector<1x8x1x72xf32>
    %c0_37 = arith.constant 0 : index
    %c0_38 = arith.constant 0 : index
    %c2_39 = arith.constant 2 : index
    %c72_40 = arith.constant 72 : index
    %34 = vector.load %arg5[%c0_37, %c0_38, %c2_39, %c72_40] : memref<1x8x8x648xf32, #tpu.memory_space<vmem>>, vector<1x8x1x72xf32>
    tpu.vector_store %arg5[%c0_37, %c0_38, %c2_39, %c72_40], %33 {strides = array<i32>} : memref<1x8x8x648xf32, #tpu.memory_space<vmem>>, vector<1x8x1x72xf32>,
    %35 = vector.extract_strided_slice %25 {offsets = [0, 0, 24], sizes = [1, 8, 72], strides = [1, 1, 1]} : vector<1x8x128xf32> to vector<1x8x72xf32>
    %36 = vector.shape_cast %35 : vector<1x8x72xf32> to vector<1x8x1x72xf32>
    %c0_41 = arith.constant 0 : index
    %c0_42 = arith.constant 0 : index
    %c3_43 = arith.constant 3 : index
    %c72_44 = arith.constant 72 : index
    %37 = vector.load %arg5[%c0_41, %c0_42, %c3_43, %c72_44] : memref<1x8x8x648xf32, #tpu.memory_space<vmem>>, vector<1x8x1x72xf32>
    tpu.vector_store %arg5[%c0_41, %c0_42, %c3_43, %c72_44], %36 {strides = array<i32>} : memref<1x8x8x648xf32, #tpu.memory_space<vmem>>, vector<1x8x1x72xf32>,
    %38 = vector.extract_strided_slice %25 {offsets = [0, 0, 32], sizes = [1, 8, 72], strides = [1, 1, 1]} : vector<1x8x128xf32> to vector<1x8x72xf32>
    %39 = vector.shape_cast %38 : vector<1x8x72xf32> to vector<1x8x1x72xf32>
    %c0_45 = arith.constant 0 : index
    %c0_46 = arith.constant 0 : index
    %c4_47 = arith.constant 4 : index
    %c72_48 = arith.constant 72 : index
    %40 = vector.load %arg5[%c0_45, %c0_46, %c4_47, %c72_48] : memref<1x8x8x648xf32, #tpu.memory_space<vmem>>, vector<1x8x1x72xf32>
    tpu.vector_store %arg5[%c0_45, %c0_46, %c4_47, %c72_48], %39 {strides = array<i32>} : memref<1x8x8x648xf32, #tpu.memory_space<vmem>>, vector<1x8x1x72xf32>,
    %41 = vector.extract_strided_slice %25 {offsets = [0, 0, 40], sizes = [1, 8, 72], strides = [1, 1, 1]} : vector<1x8x128xf32> to vector<1x8x72xf32>
    %42 = vector.shape_cast %41 : vector<1x8x72xf32> to vector<1x8x1x72xf32>
    %c0_49 = arith.constant 0 : index
    %c0_50 = arith.constant 0 : index
    %c5_51 = arith.constant 5 : index
    %c72_52 = arith.constant 72 : index
    %43 = vector.load %arg5[%c0_49, %c0_50, %c5_51, %c72_52] : memref<1x8x8x648xf32, #tpu.memory_space<vmem>>, vector<1x8x1x72xf32>
    tpu.vector_store %arg5[%c0_49, %c0_50, %c5_51, %c72_52], %42 {strides = array<i32>} : memref<1x8x8x648xf32, #tpu.memory_space<vmem>>, vector<1x8x1x72xf32>,
    %44 = vector.extract_strided_slice %25 {offsets = [0, 0, 48], sizes = [1, 8, 72], strides = [1, 1, 1]} : vector<1x8x128xf32> to vector<1x8x72xf32>
    %45 = vector.shape_cast %44 : vector<1x8x72xf32> to vector<1x8x1x72xf32>
    %c0_53 = arith.constant 0 : index
    %c0_54 = arith.constant 0 : index
    %c6_55 = arith.constant 6 : index
    %c72_56 = arith.constant 72 : index
    %46 = vector.load %arg5[%c0_53, %c0_54, %c6_55, %c72_56] : memref<1x8x8x648xf32, #tpu.memory_space<vmem>>, vector<1x8x1x72xf32>
    tpu.vector_store %arg5[%c0_53, %c0_54, %c6_55, %c72_56], %45 {strides = array<i32>} : memref<1x8x8x648xf32, #tpu.memory_space<vmem>>, vector<1x8x1x72xf32>,
    %47 = vector.extract_strided_slice %25 {offsets = [0, 0, 56], sizes = [1, 8, 72], strides = [1, 1, 1]} : vector<1x8x128xf32> to vector<1x8x72xf32>
    %48 = vector.shape_cast %47 : vector<1x8x72xf32> to vector<1x8x1x72xf32>
    %c0_57 = arith.constant 0 : index
    %c0_58 = arith.constant 0 : index
    %c7_59 = arith.constant 7 : index
    %c72_60 = arith.constant 72 : index
    %49 = vector.load %arg5[%c0_57, %c0_58, %c7_59, %c72_60] : memref<1x8x8x648xf32, #tpu.memory_space<vmem>>, vector<1x8x1x72xf32>
    tpu.vector_store %arg5[%c0_57, %c0_58, %c7_59, %c72_60], %48 {strides = array<i32>} : memref<1x8x8x648xf32, #tpu.memory_space<vmem>>, vector<1x8x1x72xf32>,
    %c0_61 = arith.constant 0 : index
    %c2_62 = arith.constant 2 : index
    %c0_63 = arith.constant 0 : index
    %50 = vector.load %arg1[%c0_61, %c2_62, %c0_63] : memref<1x16x128xf32, #tpu.memory_space<vmem>>, vector<1x8x128xf32>
    %51 = vector.extract_strided_slice %50 {offsets = [0, 0, 0], sizes = [1, 8, 72], strides = [1, 1, 1]} : vector<1x8x128xf32> to vector<1x8x72xf32>
    %52 = vector.shape_cast %51 : vector<1x8x72xf32> to vector<1x8x1x72xf32>
    %c0_64 = arith.constant 0 : index
    %c0_65 = arith.constant 0 : index
    %c0_66 = arith.constant 0 : index
    %c144 = arith.constant 144 : index
    %53 = vector.load %arg5[%c0_64, %c0_65, %c0_66, %c144] : memref<1x8x8x648xf32, #tpu.memory_space<vmem>>, vector<1x8x1x72xf32>
    tpu.vector_store %arg5[%c0_64, %c0_65, %c0_66, %c144], %52 {strides = array<i32>} : memref<1x8x8x648xf32, #tpu.memory_space<vmem>>, vector<1x8x1x72xf32>,
    %54 = vector.extract_strided_slice %50 {offsets = [0, 0, 8], sizes = [1, 8, 72], strides = [1, 1, 1]} : vector<1x8x128xf32> to vector<1x8x72xf32>
    %55 = vector.shape_cast %54 : vector<1x8x72xf32> to vector<1x8x1x72xf32>
    %c0_67 = arith.constant 0 : index
    %c0_68 = arith.constant 0 : index
    %c1_69 = arith.constant 1 : index
    %c144_70 = arith.constant 144 : index
    %56 = vector.load %arg5[%c0_67, %c0_68, %c1_69, %c144_70] : memref<1x8x8x648xf32, #tpu.memory_space<vmem>>, vector<1x8x1x72xf32>
    tpu.vector_store %arg5[%c0_67, %c0_68, %c1_69, %c144_70], %55 {strides = array<i32>} : memref<1x8x8x648xf32, #tpu.memory_space<vmem>>, vector<1x8x1x72xf32>,
    %57 = vector.extract_strided_slice %50 {offsets = [0, 0, 16], sizes = [1, 8, 72], strides = [1, 1, 1]} : vector<1x8x128xf32> to vector<1x8x72xf32>
    %58 = vector.shape_cast %57 : vector<1x8x72xf32> to vector<1x8x1x72xf32>
    %c0_71 = arith.constant 0 : index
    %c0_72 = arith.constant 0 : index
    %c2_73 = arith.constant 2 : index
    %c144_74 = arith.constant 144 : index
    %59 = vector.load %arg5[%c0_71, %c0_72, %c2_73, %c144_74] : memref<1x8x8x648xf32, #tpu.memory_space<vmem>>, vector<1x8x1x72xf32>
    tpu.vector_store %arg5[%c0_71, %c0_72, %c2_73, %c144_74], %58 {strides = array<i32>} : memref<1x8x8x648xf32, #tpu.memory_space<vmem>>, vector<1x8x1x72xf32>,
    %60 = vector.extract_strided_slice %50 {offsets = [0, 0, 24], sizes = [1, 8, 72], strides = [1, 1, 1]} : vector<1x8x128xf32> to vector<1x8x72xf32>
    %61 = vector.shape_cast %60 : vector<1x8x72xf32> to vector<1x8x1x72xf32>
    %c0_75 = arith.constant 0 : index
    %c0_76 = arith.constant 0 : index
    %c3_77 = arith.constant 3 : index
    %c144_78 = arith.constant 144 : index
    %62 = vector.load %arg5[%c0_75, %c0_76, %c3_77, %c144_78] : memref<1x8x8x648xf32, #tpu.memory_space<vmem>>, vector<1x8x1x72xf32>
    tpu.vector_store %arg5[%c0_75, %c0_76, %c3_77, %c144_78], %61 {strides = array<i32>} : memref<1x8x8x648xf32, #tpu.memory_space<vmem>>, vector<1x8x1x72xf32>,
    %63 = vector.extract_strided_slice %50 {offsets = [0, 0, 32], sizes = [1, 8, 72], strides = [1, 1, 1]} : vector<1x8x128xf32> to vector<1x8x72xf32>
    %64 = vector.shape_cast %63 : vector<1x8x72xf32> to vector<1x8x1x72xf32>
    %c0_79 = arith.constant 0 : index
    %c0_80 = arith.constant 0 : index
    %c4_81 = arith.constant 4 : index
    %c144_82 = arith.constant 144 : index
    %65 = vector.load %arg5[%c0_79, %c0_80, %c4_81, %c144_82] : memref<1x8x8x648xf32, #tpu.memory_space<vmem>>, vector<1x8x1x72xf32>
    tpu.vector_store %arg5[%c0_79, %c0_80, %c4_81, %c144_82], %64 {strides = array<i32>} : memref<1x8x8x648xf32, #tpu.memory_space<vmem>>, vector<1x8x1x72xf32>,
    %66 = vector.extract_strided_slice %50 {offsets = [0, 0, 40], sizes = [1, 8, 72], strides = [1, 1, 1]} : vector<1x8x128xf32> to vector<1x8x72xf32>
    %67 = vector.shape_cast %66 : vector<1x8x72xf32> to vector<1x8x1x72xf32>
    %c0_83 = arith.constant 0 : index
    %c0_84 = arith.constant 0 : index
    %c5_85 = arith.constant 5 : index
    %c144_86 = arith.constant 144 : index
    %68 = vector.load %arg5[%c0_83, %c0_84, %c5_85, %c144_86] : memref<1x8x8x648xf32, #tpu.memory_space<vmem>>, vector<1x8x1x72xf32>
    tpu.vector_store %arg5[%c0_83, %c0_84, %c5_85, %c144_86], %67 {strides = array<i32>} : memref<1x8x8x648xf32, #tpu.memory_space<vmem>>, vector<1x8x1x72xf32>,
    %69 = vector.extract_strided_slice %50 {offsets = [0, 0, 48], sizes = [1, 8, 72], strides = [1, 1, 1]} : vector<1x8x128xf32> to vector<1x8x72xf32>
    %70 = vector.shape_cast %69 : vector<1x8x72xf32> to vector<1x8x1x72xf32>
    %c0_87 = arith.constant 0 : index
    %c0_88 = arith.constant 0 : index
    %c6_89 = arith.constant 6 : index
    %c144_90 = arith.constant 144 : index
    %71 = vector.load %arg5[%c0_87, %c0_88, %c6_89, %c144_90] : memref<1x8x8x648xf32, #tpu.memory_space<vmem>>, vector<1x8x1x72xf32>
    tpu.vector_store %arg5[%c0_87, %c0_88, %c6_89, %c144_90], %70 {strides = array<i32>} : memref<1x8x8x648xf32, #tpu.memory_space<vmem>>, vector<1x8x1x72xf32>,
    %72 = vector.extract_strided_slice %50 {offsets = [0, 0, 56], sizes = [1, 8, 72], strides = [1, 1, 1]} : vector<1x8x128xf32> to vector<1x8x72xf32>
    %73 = vector.shape_cast %72 : vector<1x8x72xf32> to vector<1x8x1x72xf32>
    %c0_91 = arith.constant 0 : index
    %c0_92 = arith.constant 0 : index
    %c7_93 = arith.constant 7 : index
    %c144_94 = arith.constant 144 : index
    %74 = vector.load %arg5[%c0_91, %c0_92, %c7_93, %c144_94] : memref<1x8x8x648xf32, #tpu.memory_space<vmem>>, vector<1x8x1x72xf32>
    tpu.vector_store %arg5[%c0_91, %c0_92, %c7_93, %c144_94], %73 {strides = array<i32>} : memref<1x8x8x648xf32, #tpu.memory_space<vmem>>, vector<1x8x1x72xf32>,
    %c0_95 = arith.constant 0 : index
    %c3_96 = arith.constant 3 : index
    %c0_97 = arith.constant 0 : index
    %75 = vector.load %arg1[%c0_95, %c3_96, %c0_97] : memref<1x16x128xf32, #tpu.memory_space<vmem>>, vector<1x8x128xf32>
    %76 = vector.extract_strided_slice %75 {offsets = [0, 0, 0], sizes = [1, 8, 72], strides = [1, 1, 1]} : vector<1x8x128xf32> to vector<1x8x72xf32>
    %77 = vector.shape_cast %76 : vector<1x8x72xf32> to vector<1x8x1x72xf32>
    %c0_98 = arith.constant 0 : index
    %c0_99 = arith.constant 0 : index
    %c0_100 = arith.constant 0 : index
    %c216 = arith.constant 216 : index
    %78 = vector.load %arg5[%c0_98, %c0_99, %c0_100, %c216] : memref<1x8x8x648xf32, #tpu.memory_space<vmem>>, vector<1x8x1x72xf32>
    tpu.vector_store %arg5[%c0_98, %c0_99, %c0_100, %c216], %77 {strides = array<i32>} : memref<1x8x8x648xf32, #tpu.memory_space<vmem>>, vector<1x8x1x72xf32>,
    %79 = vector.extract_strided_slice %75 {offsets = [0, 0, 8], sizes = [1, 8, 72], strides = [1, 1, 1]} : vector<1x8x128xf32> to vector<1x8x72xf32>
    %80 = vector.shape_cast %79 : vector<1x8x72xf32> to vector<1x8x1x72xf32>
    %c0_101 = arith.constant 0 : index
    %c0_102 = arith.constant 0 : index
    %c1_103 = arith.constant 1 : index
    %c216_104 = arith.constant 216 : index
    %81 = vector.load %arg5[%c0_101, %c0_102, %c1_103, %c216_104] : memref<1x8x8x648xf32, #tpu.memory_space<vmem>>, vector<1x8x1x72xf32>
    tpu.vector_store %arg5[%c0_101, %c0_102, %c1_103, %c216_104], %80 {strides = array<i32>} : memref<1x8x8x648xf32, #tpu.memory_space<vmem>>, vector<1x8x1x72xf32>,
    %82 = vector.extract_strided_slice %75 {offsets = [0, 0, 16], sizes = [1, 8, 72], strides = [1, 1, 1]} : vector<1x8x128xf32> to vector<1x8x72xf32>
    %83 = vector.shape_cast %82 : vector<1x8x72xf32> to vector<1x8x1x72xf32>
    %c0_105 = arith.constant 0 : index
    %c0_106 = arith.constant 0 : index
    %c2_107 = arith.constant 2 : index
    %c216_108 = arith.constant 216 : index
    %84 = vector.load %arg5[%c0_105, %c0_106, %c2_107, %c216_108] : memref<1x8x8x648xf32, #tpu.memory_space<vmem>>, vector<1x8x1x72xf32>
    tpu.vector_store %arg5[%c0_105, %c0_106, %c2_107, %c216_108], %83 {strides = array<i32>} : memref<1x8x8x648xf32, #tpu.memory_space<vmem>>, vector<1x8x1x72xf32>,
    %85 = vector.extract_strided_slice %75 {offsets = [0, 0, 24], sizes = [1, 8, 72], strides = [1, 1, 1]} : vector<1x8x128xf32> to vector<1x8x72xf32>
    %86 = vector.shape_cast %85 : vector<1x8x72xf32> to vector<1x8x1x72xf32>
    %c0_109 = arith.constant 0 : index
    %c0_110 = arith.constant 0 : index
    %c3_111 = arith.constant 3 : index
    %c216_112 = arith.constant 216 : index
    %87 = vector.load %arg5[%c0_109, %c0_110, %c3_111, %c216_112] : memref<1x8x8x648xf32, #tpu.memory_space<vmem>>, vector<1x8x1x72xf32>
    tpu.vector_store %arg5[%c0_109, %c0_110, %c3_111, %c216_112], %86 {strides = array<i32>} : memref<1x8x8x648xf32, #tpu.memory_space<vmem>>, vector<1x8x1x72xf32>,
    %88 = vector.extract_strided_slice %75 {offsets = [0, 0, 32], sizes = [1, 8, 72], strides = [1, 1, 1]} : vector<1x8x128xf32> to vector<1x8x72xf32>
    %89 = vector.shape_cast %88 : vector<1x8x72xf32> to vector<1x8x1x72xf32>
    %c0_113 = arith.constant 0 : index
    %c0_114 = arith.constant 0 : index
    %c4_115 = arith.constant 4 : index
    %c216_116 = arith.constant 216 : index
    %90 = vector.load %arg5[%c0_113, %c0_114, %c4_115, %c216_116] : memref<1x8x8x648xf32, #tpu.memory_space<vmem>>, vector<1x8x1x72xf32>
    tpu.vector_store %arg5[%c0_113, %c0_114, %c4_115, %c216_116], %89 {strides = array<i32>} : memref<1x8x8x648xf32, #tpu.memory_space<vmem>>, vector<1x8x1x72xf32>,
    %91 = vector.extract_strided_slice %75 {offsets = [0, 0, 40], sizes = [1, 8, 72], strides = [1, 1, 1]} : vector<1x8x128xf32> to vector<1x8x72xf32>
    %92 = vector.shape_cast %91 : vector<1x8x72xf32> to vector<1x8x1x72xf32>
    %c0_117 = arith.constant 0 : index
    %c0_118 = arith.constant 0 : index
    %c5_119 = arith.constant 5 : index
    %c216_120 = arith.constant 216 : index
    %93 = vector.load %arg5[%c0_117, %c0_118, %c5_119, %c216_120] : memref<1x8x8x648xf32, #tpu.memory_space<vmem>>, vector<1x8x1x72xf32>
    tpu.vector_store %arg5[%c0_117, %c0_118, %c5_119, %c216_120], %92 {strides = array<i32>} : memref<1x8x8x648xf32, #tpu.memory_space<vmem>>, vector<1x8x1x72xf32>,
    %94 = vector.extract_strided_slice %75 {offsets = [0, 0, 48], sizes = [1, 8, 72], strides = [1, 1, 1]} : vector<1x8x128xf32> to vector<1x8x72xf32>
    %95 = vector.shape_cast %94 : vector<1x8x72xf32> to vector<1x8x1x72xf32>
    %c0_121 = arith.constant 0 : index
    %c0_122 = arith.constant 0 : index
    %c6_123 = arith.constant 6 : index
    %c216_124 = arith.constant 216 : index
    %96 = vector.load %arg5[%c0_121, %c0_122, %c6_123, %c216_124] : memref<1x8x8x648xf32, #tpu.memory_space<vmem>>, vector<1x8x1x72xf32>
    tpu.vector_store %arg5[%c0_121, %c0_122, %c6_123, %c216_124], %95 {strides = array<i32>} : memref<1x8x8x648xf32, #tpu.memory_space<vmem>>, vector<1x8x1x72xf32>,
    %97 = vector.extract_strided_slice %75 {offsets = [0, 0, 56], sizes = [1, 8, 72], strides = [1, 1, 1]} : vector<1x8x128xf32> to vector<1x8x72xf32>
    %98 = vector.shape_cast %97 : vector<1x8x72xf32> to vector<1x8x1x72xf32>
    %c0_125 = arith.constant 0 : index
    %c0_126 = arith.constant 0 : index
    %c7_127 = arith.constant 7 : index
    %c216_128 = arith.constant 216 : index
    %99 = vector.load %arg5[%c0_125, %c0_126, %c7_127, %c216_128] : memref<1x8x8x648xf32, #tpu.memory_space<vmem>>, vector<1x8x1x72xf32>
    tpu.vector_store %arg5[%c0_125, %c0_126, %c7_127, %c216_128], %98 {strides = array<i32>} : memref<1x8x8x648xf32, #tpu.memory_space<vmem>>, vector<1x8x1x72xf32>,
    %c0_129 = arith.constant 0 : index
    %c4_130 = arith.constant 4 : index
    %c0_131 = arith.constant 0 : index
    %100 = vector.load %arg1[%c0_129, %c4_130, %c0_131] : memref<1x16x128xf32, #tpu.memory_space<vmem>>, vector<1x8x128xf32>
    %101 = vector.extract_strided_slice %100 {offsets = [0, 0, 0], sizes = [1, 8, 72], strides = [1, 1, 1]} : vector<1x8x128xf32> to vector<1x8x72xf32>
    %102 = vector.shape_cast %101 : vector<1x8x72xf32> to vector<1x8x1x72xf32>
    %c0_132 = arith.constant 0 : index
    %c0_133 = arith.constant 0 : index
    %c0_134 = arith.constant 0 : index
    %c288 = arith.constant 288 : index
    %103 = vector.load %arg5[%c0_132, %c0_133, %c0_134, %c288] : memref<1x8x8x648xf32, #tpu.memory_space<vmem>>, vector<1x8x1x72xf32>
    tpu.vector_store %arg5[%c0_132, %c0_133, %c0_134, %c288], %102 {strides = array<i32>} : memref<1x8x8x648xf32, #tpu.memory_space<vmem>>, vector<1x8x1x72xf32>,
    %104 = vector.extract_strided_slice %100 {offsets = [0, 0, 8], sizes = [1, 8, 72], strides = [1, 1, 1]} : vector<1x8x128xf32> to vector<1x8x72xf32>
    %105 = vector.shape_cast %104 : vector<1x8x72xf32> to vector<1x8x1x72xf32>
    %c0_135 = arith.constant 0 : index
    %c0_136 = arith.constant 0 : index
    %c1_137 = arith.constant 1 : index
    %c288_138 = arith.constant 288 : index
    %106 = vector.load %arg5[%c0_135, %c0_136, %c1_137, %c288_138] : memref<1x8x8x648xf32, #tpu.memory_space<vmem>>, vector<1x8x1x72xf32>
    tpu.vector_store %arg5[%c0_135, %c0_136, %c1_137, %c288_138], %105 {strides = array<i32>} : memref<1x8x8x648xf32, #tpu.memory_space<vmem>>, vector<1x8x1x72xf32>,
    %107 = vector.extract_strided_slice %100 {offsets = [0, 0, 16], sizes = [1, 8, 72], strides = [1, 1, 1]} : vector<1x8x128xf32> to vector<1x8x72xf32>
    %108 = vector.shape_cast %107 : vector<1x8x72xf32> to vector<1x8x1x72xf32>
    %c0_139 = arith.constant 0 : index
    %c0_140 = arith.constant 0 : index
    %c2_141 = arith.constant 2 : index
    %c288_142 = arith.constant 288 : index
    %109 = vector.load %arg5[%c0_139, %c0_140, %c2_141, %c288_142] : memref<1x8x8x648xf32, #tpu.memory_space<vmem>>, vector<1x8x1x72xf32>
    tpu.vector_store %arg5[%c0_139, %c0_140, %c2_141, %c288_142], %108 {strides = array<i32>} : memref<1x8x8x648xf32, #tpu.memory_space<vmem>>, vector<1x8x1x72xf32>,
    %110 = vector.extract_strided_slice %100 {offsets = [0, 0, 24], sizes = [1, 8, 72], strides = [1, 1, 1]} : vector<1x8x128xf32> to vector<1x8x72xf32>
    %111 = vector.shape_cast %110 : vector<1x8x72xf32> to vector<1x8x1x72xf32>
    %c0_143 = arith.constant 0 : index
    %c0_144 = arith.constant 0 : index
    %c3_145 = arith.constant 3 : index
    %c288_146 = arith.constant 288 : index
    %112 = vector.load %arg5[%c0_143, %c0_144, %c3_145, %c288_146] : memref<1x8x8x648xf32, #tpu.memory_space<vmem>>, vector<1x8x1x72xf32>
    tpu.vector_store %arg5[%c0_143, %c0_144, %c3_145, %c288_146], %111 {strides = array<i32>} : memref<1x8x8x648xf32, #tpu.memory_space<vmem>>, vector<1x8x1x72xf32>,
    %113 = vector.extract_strided_slice %100 {offsets = [0, 0, 32], sizes = [1, 8, 72], strides = [1, 1, 1]} : vector<1x8x128xf32> to vector<1x8x72xf32>
    %114 = vector.shape_cast %113 : vector<1x8x72xf32> to vector<1x8x1x72xf32>
    %c0_147 = arith.constant 0 : index
    %c0_148 = arith.constant 0 : index
    %c4_149 = arith.constant 4 : index
    %c288_150 = arith.constant 288 : index
    %115 = vector.load %arg5[%c0_147, %c0_148, %c4_149, %c288_150] : memref<1x8x8x648xf32, #tpu.memory_space<vmem>>, vector<1x8x1x72xf32>
    tpu.vector_store %arg5[%c0_147, %c0_148, %c4_149, %c288_150], %114 {strides = array<i32>} : memref<1x8x8x648xf32, #tpu.memory_space<vmem>>, vector<1x8x1x72xf32>,
    %116 = vector.extract_strided_slice %100 {offsets = [0, 0, 40], sizes = [1, 8, 72], strides = [1, 1, 1]} : vector<1x8x128xf32> to vector<1x8x72xf32>
    %117 = vector.shape_cast %116 : vector<1x8x72xf32> to vector<1x8x1x72xf32>
    %c0_151 = arith.constant 0 : index
    %c0_152 = arith.constant 0 : index
    %c5_153 = arith.constant 5 : index
    %c288_154 = arith.constant 288 : index
    %118 = vector.load %arg5[%c0_151, %c0_152, %c5_153, %c288_154] : memref<1x8x8x648xf32, #tpu.memory_space<vmem>>, vector<1x8x1x72xf32>
    tpu.vector_store %arg5[%c0_151, %c0_152, %c5_153, %c288_154], %117 {strides = array<i32>} : memref<1x8x8x648xf32, #tpu.memory_space<vmem>>, vector<1x8x1x72xf32>,
    %119 = vector.extract_strided_slice %100 {offsets = [0, 0, 48], sizes = [1, 8, 72], strides = [1, 1, 1]} : vector<1x8x128xf32> to vector<1x8x72xf32>
    %120 = vector.shape_cast %119 : vector<1x8x72xf32> to vector<1x8x1x72xf32>
    %c0_155 = arith.constant 0 : index
    %c0_156 = arith.constant 0 : index
    %c6_157 = arith.constant 6 : index
    %c288_158 = arith.constant 288 : index
    %121 = vector.load %arg5[%c0_155, %c0_156, %c6_157, %c288_158] : memref<1x8x8x648xf32, #tpu.memory_space<vmem>>, vector<1x8x1x72xf32>
    tpu.vector_store %arg5[%c0_155, %c0_156, %c6_157, %c288_158], %120 {strides = array<i32>} : memref<1x8x8x648xf32, #tpu.memory_space<vmem>>, vector<1x8x1x72xf32>,
    %122 = vector.extract_strided_slice %100 {offsets = [0, 0, 56], sizes = [1, 8, 72], strides = [1, 1, 1]} : vector<1x8x128xf32> to vector<1x8x72xf32>
    %123 = vector.shape_cast %122 : vector<1x8x72xf32> to vector<1x8x1x72xf32>
    %c0_159 = arith.constant 0 : index
    %c0_160 = arith.constant 0 : index
    %c7_161 = arith.constant 7 : index
    %c288_162 = arith.constant 288 : index
    %124 = vector.load %arg5[%c0_159, %c0_160, %c7_161, %c288_162] : memref<1x8x8x648xf32, #tpu.memory_space<vmem>>, vector<1x8x1x72xf32>
    tpu.vector_store %arg5[%c0_159, %c0_160, %c7_161, %c288_162], %123 {strides = array<i32>} : memref<1x8x8x648xf32, #tpu.memory_space<vmem>>, vector<1x8x1x72xf32>,
    %c0_163 = arith.constant 0 : index
    %c5_164 = arith.constant 5 : index
    %c0_165 = arith.constant 0 : index
    %125 = vector.load %arg1[%c0_163, %c5_164, %c0_165] : memref<1x16x128xf32, #tpu.memory_space<vmem>>, vector<1x8x128xf32>
    %126 = vector.extract_strided_slice %125 {offsets = [0, 0, 0], sizes = [1, 8, 72], strides = [1, 1, 1]} : vector<1x8x128xf32> to vector<1x8x72xf32>
    %127 = vector.shape_cast %126 : vector<1x8x72xf32> to vector<1x8x1x72xf32>
    %c0_166 = arith.constant 0 : index
    %c0_167 = arith.constant 0 : index
    %c0_168 = arith.constant 0 : index
    %c360 = arith.constant 360 : index
    %128 = vector.load %arg5[%c0_166, %c0_167, %c0_168, %c360] : memref<1x8x8x648xf32, #tpu.memory_space<vmem>>, vector<1x8x1x72xf32>
    tpu.vector_store %arg5[%c0_166, %c0_167, %c0_168, %c360], %127 {strides = array<i32>} : memref<1x8x8x648xf32, #tpu.memory_space<vmem>>, vector<1x8x1x72xf32>,
    %129 = vector.extract_strided_slice %125 {offsets = [0, 0, 8], sizes = [1, 8, 72], strides = [1, 1, 1]} : vector<1x8x128xf32> to vector<1x8x72xf32>
    %130 = vector.shape_cast %129 : vector<1x8x72xf32> to vector<1x8x1x72xf32>
    %c0_169 = arith.constant 0 : index
    %c0_170 = arith.constant 0 : index
    %c1_171 = arith.constant 1 : index
    %c360_172 = arith.constant 360 : index
    %131 = vector.load %arg5[%c0_169, %c0_170, %c1_171, %c360_172] : memref<1x8x8x648xf32, #tpu.memory_space<vmem>>, vector<1x8x1x72xf32>
    tpu.vector_store %arg5[%c0_169, %c0_170, %c1_171, %c360_172], %130 {strides = array<i32>} : memref<1x8x8x648xf32, #tpu.memory_space<vmem>>, vector<1x8x1x72xf32>,
    %132 = vector.extract_strided_slice %125 {offsets = [0, 0, 16], sizes = [1, 8, 72], strides = [1, 1, 1]} : vector<1x8x128xf32> to vector<1x8x72xf32>
    %133 = vector.shape_cast %132 : vector<1x8x72xf32> to vector<1x8x1x72xf32>
    %c0_173 = arith.constant 0 : index
    %c0_174 = arith.constant 0 : index
    %c2_175 = arith.constant 2 : index
    %c360_176 = arith.constant 360 : index
    %134 = vector.load %arg5[%c0_173, %c0_174, %c2_175, %c360_176] : memref<1x8x8x648xf32, #tpu.memory_space<vmem>>, vector<1x8x1x72xf32>
    tpu.vector_store %arg5[%c0_173, %c0_174, %c2_175, %c360_176], %133 {strides = array<i32>} : memref<1x8x8x648xf32, #tpu.memory_space<vmem>>, vector<1x8x1x72xf32>,
    %135 = vector.extract_strided_slice %125 {offsets = [0, 0, 24], sizes = [1, 8, 72], strides = [1, 1, 1]} : vector<1x8x128xf32> to vector<1x8x72xf32>
    %136 = vector.shape_cast %135 : vector<1x8x72xf32> to vector<1x8x1x72xf32>
    %c0_177 = arith.constant 0 : index
    %c0_178 = arith.constant 0 : index
    %c3_179 = arith.constant 3 : index
    %c360_180 = arith.constant 360 : index
    %137 = vector.load %arg5[%c0_177, %c0_178, %c3_179, %c360_180] : memref<1x8x8x648xf32, #tpu.memory_space<vmem>>, vector<1x8x1x72xf32>
    tpu.vector_store %arg5[%c0_177, %c0_178, %c3_179, %c360_180], %136 {strides = array<i32>} : memref<1x8x8x648xf32, #tpu.memory_space<vmem>>, vector<1x8x1x72xf32>,
    %138 = vector.extract_strided_slice %125 {offsets = [0, 0, 32], sizes = [1, 8, 72], strides = [1, 1, 1]} : vector<1x8x128xf32> to vector<1x8x72xf32>
    %139 = vector.shape_cast %138 : vector<1x8x72xf32> to vector<1x8x1x72xf32>
    %c0_181 = arith.constant 0 : index
    %c0_182 = arith.constant 0 : index
    %c4_183 = arith.constant 4 : index
    %c360_184 = arith.constant 360 : index
    %140 = vector.load %arg5[%c0_181, %c0_182, %c4_183, %c360_184] : memref<1x8x8x648xf32, #tpu.memory_space<vmem>>, vector<1x8x1x72xf32>
    tpu.vector_store %arg5[%c0_181, %c0_182, %c4_183, %c360_184], %139 {strides = array<i32>} : memref<1x8x8x648xf32, #tpu.memory_space<vmem>>, vector<1x8x1x72xf32>,
    %141 = vector.extract_strided_slice %125 {offsets = [0, 0, 40], sizes = [1, 8, 72], strides = [1, 1, 1]} : vector<1x8x128xf32> to vector<1x8x72xf32>
    %142 = vector.shape_cast %141 : vector<1x8x72xf32> to vector<1x8x1x72xf32>
    %c0_185 = arith.constant 0 : index
    %c0_186 = arith.constant 0 : index
    %c5_187 = arith.constant 5 : index
    %c360_188 = arith.constant 360 : index
    %143 = vector.load %arg5[%c0_185, %c0_186, %c5_187, %c360_188] : memref<1x8x8x648xf32, #tpu.memory_space<vmem>>, vector<1x8x1x72xf32>
    tpu.vector_store %arg5[%c0_185, %c0_186, %c5_187, %c360_188], %142 {strides = array<i32>} : memref<1x8x8x648xf32, #tpu.memory_space<vmem>>, vector<1x8x1x72xf32>,
    %144 = vector.extract_strided_slice %125 {offsets = [0, 0, 48], sizes = [1, 8, 72], strides = [1, 1, 1]} : vector<1x8x128xf32> to vector<1x8x72xf32>
    %145 = vector.shape_cast %144 : vector<1x8x72xf32> to vector<1x8x1x72xf32>
    %c0_189 = arith.constant 0 : index
    %c0_190 = arith.constant 0 : index
    %c6_191 = arith.constant 6 : index
    %c360_192 = arith.constant 360 : index
    %146 = vector.load %arg5[%c0_189, %c0_190, %c6_191, %c360_192] : memref<1x8x8x648xf32, #tpu.memory_space<vmem>>, vector<1x8x1x72xf32>
    tpu.vector_store %arg5[%c0_189, %c0_190, %c6_191, %c360_192], %145 {strides = array<i32>} : memref<1x8x8x648xf32, #tpu.memory_space<vmem>>, vector<1x8x1x72xf32>,
    %147 = vector.extract_strided_slice %125 {offsets = [0, 0, 56], sizes = [1, 8, 72], strides = [1, 1, 1]} : vector<1x8x128xf32> to vector<1x8x72xf32>
    %148 = vector.shape_cast %147 : vector<1x8x72xf32> to vector<1x8x1x72xf32>
    %c0_193 = arith.constant 0 : index
    %c0_194 = arith.constant 0 : index
    %c7_195 = arith.constant 7 : index
    %c360_196 = arith.constant 360 : index
    %149 = vector.load %arg5[%c0_193, %c0_194, %c7_195, %c360_196] : memref<1x8x8x648xf32, #tpu.memory_space<vmem>>, vector<1x8x1x72xf32>
    tpu.vector_store %arg5[%c0_193, %c0_194, %c7_195, %c360_196], %148 {strides = array<i32>} : memref<1x8x8x648xf32, #tpu.memory_space<vmem>>, vector<1x8x1x72xf32>,
    %c0_197 = arith.constant 0 : index
    %c6_198 = arith.constant 6 : index
    %c0_199 = arith.constant 0 : index
    %150 = vector.load %arg1[%c0_197, %c6_198, %c0_199] : memref<1x16x128xf32, #tpu.memory_space<vmem>>, vector<1x8x128xf32>
    %151 = vector.extract_strided_slice %150 {offsets = [0, 0, 0], sizes = [1, 8, 72], strides = [1, 1, 1]} : vector<1x8x128xf32> to vector<1x8x72xf32>
    %152 = vector.shape_cast %151 : vector<1x8x72xf32> to vector<1x8x1x72xf32>
    %c0_200 = arith.constant 0 : index
    %c0_201 = arith.constant 0 : index
    %c0_202 = arith.constant 0 : index
    %c432 = arith.constant 432 : index
    %153 = vector.load %arg5[%c0_200, %c0_201, %c0_202, %c432] : memref<1x8x8x648xf32, #tpu.memory_space<vmem>>, vector<1x8x1x72xf32>
    tpu.vector_store %arg5[%c0_200, %c0_201, %c0_202, %c432], %152 {strides = array<i32>} : memref<1x8x8x648xf32, #tpu.memory_space<vmem>>, vector<1x8x1x72xf32>,
    %154 = vector.extract_strided_slice %150 {offsets = [0, 0, 8], sizes = [1, 8, 72], strides = [1, 1, 1]} : vector<1x8x128xf32> to vector<1x8x72xf32>
    %155 = vector.shape_cast %154 : vector<1x8x72xf32> to vector<1x8x1x72xf32>
    %c0_203 = arith.constant 0 : index
    %c0_204 = arith.constant 0 : index
    %c1_205 = arith.constant 1 : index
    %c432_206 = arith.constant 432 : index
    %156 = vector.load %arg5[%c0_203, %c0_204, %c1_205, %c432_206] : memref<1x8x8x648xf32, #tpu.memory_space<vmem>>, vector<1x8x1x72xf32>
    tpu.vector_store %arg5[%c0_203, %c0_204, %c1_205, %c432_206], %155 {strides = array<i32>} : memref<1x8x8x648xf32, #tpu.memory_space<vmem>>, vector<1x8x1x72xf32>,
    %157 = vector.extract_strided_slice %150 {offsets = [0, 0, 16], sizes = [1, 8, 72], strides = [1, 1, 1]} : vector<1x8x128xf32> to vector<1x8x72xf32>
    %158 = vector.shape_cast %157 : vector<1x8x72xf32> to vector<1x8x1x72xf32>
    %c0_207 = arith.constant 0 : index
    %c0_208 = arith.constant 0 : index
    %c2_209 = arith.constant 2 : index
    %c432_210 = arith.constant 432 : index
    %159 = vector.load %arg5[%c0_207, %c0_208, %c2_209, %c432_210] : memref<1x8x8x648xf32, #tpu.memory_space<vmem>>, vector<1x8x1x72xf32>
    tpu.vector_store %arg5[%c0_207, %c0_208, %c2_209, %c432_210], %158 {strides = array<i32>} : memref<1x8x8x648xf32, #tpu.memory_space<vmem>>, vector<1x8x1x72xf32>,
    %160 = vector.extract_strided_slice %150 {offsets = [0, 0, 24], sizes = [1, 8, 72], strides = [1, 1, 1]} : vector<1x8x128xf32> to vector<1x8x72xf32>
    %161 = vector.shape_cast %160 : vector<1x8x72xf32> to vector<1x8x1x72xf32>
    %c0_211 = arith.constant 0 : index
    %c0_212 = arith.constant 0 : index
    %c3_213 = arith.constant 3 : index
    %c432_214 = arith.constant 432 : index
    %162 = vector.load %arg5[%c0_211, %c0_212, %c3_213, %c432_214] : memref<1x8x8x648xf32, #tpu.memory_space<vmem>>, vector<1x8x1x72xf32>
    tpu.vector_store %arg5[%c0_211, %c0_212, %c3_213, %c432_214], %161 {strides = array<i32>} : memref<1x8x8x648xf32, #tpu.memory_space<vmem>>, vector<1x8x1x72xf32>,
    %163 = vector.extract_strided_slice %150 {offsets = [0, 0, 32], sizes = [1, 8, 72], strides = [1, 1, 1]} : vector<1x8x128xf32> to vector<1x8x72xf32>
    %164 = vector.shape_cast %163 : vector<1x8x72xf32> to vector<1x8x1x72xf32>
    %c0_215 = arith.constant 0 : index
    %c0_216 = arith.constant 0 : index
    %c4_217 = arith.constant 4 : index
    %c432_218 = arith.constant 432 : index
    %165 = vector.load %arg5[%c0_215, %c0_216, %c4_217, %c432_218] : memref<1x8x8x648xf32, #tpu.memory_space<vmem>>, vector<1x8x1x72xf32>
    tpu.vector_store %arg5[%c0_215, %c0_216, %c4_217, %c432_218], %164 {strides = array<i32>} : memref<1x8x8x648xf32, #tpu.memory_space<vmem>>, vector<1x8x1x72xf32>,
    %166 = vector.extract_strided_slice %150 {offsets = [0, 0, 40], sizes = [1, 8, 72], strides = [1, 1, 1]} : vector<1x8x128xf32> to vector<1x8x72xf32>
    %167 = vector.shape_cast %166 : vector<1x8x72xf32> to vector<1x8x1x72xf32>
    %c0_219 = arith.constant 0 : index
    %c0_220 = arith.constant 0 : index
    %c5_221 = arith.constant 5 : index
    %c432_222 = arith.constant 432 : index
    %168 = vector.load %arg5[%c0_219, %c0_220, %c5_221, %c432_222] : memref<1x8x8x648xf32, #tpu.memory_space<vmem>>, vector<1x8x1x72xf32>
    tpu.vector_store %arg5[%c0_219, %c0_220, %c5_221, %c432_222], %167 {strides = array<i32>} : memref<1x8x8x648xf32, #tpu.memory_space<vmem>>, vector<1x8x1x72xf32>,
    %169 = vector.extract_strided_slice %150 {offsets = [0, 0, 48], sizes = [1, 8, 72], strides = [1, 1, 1]} : vector<1x8x128xf32> to vector<1x8x72xf32>
    %170 = vector.shape_cast %169 : vector<1x8x72xf32> to vector<1x8x1x72xf32>
    %c0_223 = arith.constant 0 : index
    %c0_224 = arith.constant 0 : index
    %c6_225 = arith.constant 6 : index
    %c432_226 = arith.constant 432 : index
    %171 = vector.load %arg5[%c0_223, %c0_224, %c6_225, %c432_226] : memref<1x8x8x648xf32, #tpu.memory_space<vmem>>, vector<1x8x1x72xf32>
    tpu.vector_store %arg5[%c0_223, %c0_224, %c6_225, %c432_226], %170 {strides = array<i32>} : memref<1x8x8x648xf32, #tpu.memory_space<vmem>>, vector<1x8x1x72xf32>,
    %172 = vector.extract_strided_slice %150 {offsets = [0, 0, 56], sizes = [1, 8, 72], strides = [1, 1, 1]} : vector<1x8x128xf32> to vector<1x8x72xf32>
    %173 = vector.shape_cast %172 : vector<1x8x72xf32> to vector<1x8x1x72xf32>
    %c0_227 = arith.constant 0 : index
    %c0_228 = arith.constant 0 : index
    %c7_229 = arith.constant 7 : index
    %c432_230 = arith.constant 432 : index
    %174 = vector.load %arg5[%c0_227, %c0_228, %c7_229, %c432_230] : memref<1x8x8x648xf32, #tpu.memory_space<vmem>>, vector<1x8x1x72xf32>
    tpu.vector_store %arg5[%c0_227, %c0_228, %c7_229, %c432_230], %173 {strides = array<i32>} : memref<1x8x8x648xf32, #tpu.memory_space<vmem>>, vector<1x8x1x72xf32>,
    %c0_231 = arith.constant 0 : index
    %c7_232 = arith.constant 7 : index
    %c0_233 = arith.constant 0 : index
    %175 = vector.load %arg1[%c0_231, %c7_232, %c0_233] : memref<1x16x128xf32, #tpu.memory_space<vmem>>, vector<1x8x128xf32>
    %176 = vector.extract_strided_slice %175 {offsets = [0, 0, 0], sizes = [1, 8, 72], strides = [1, 1, 1]} : vector<1x8x128xf32> to vector<1x8x72xf32>
    %177 = vector.shape_cast %176 : vector<1x8x72xf32> to vector<1x8x1x72xf32>
    %c0_234 = arith.constant 0 : index
    %c0_235 = arith.constant 0 : index
    %c0_236 = arith.constant 0 : index
    %c504 = arith.constant 504 : index
    %178 = vector.load %arg5[%c0_234, %c0_235, %c0_236, %c504] : memref<1x8x8x648xf32, #tpu.memory_space<vmem>>, vector<1x8x1x72xf32>
    tpu.vector_store %arg5[%c0_234, %c0_235, %c0_236, %c504], %177 {strides = array<i32>} : memref<1x8x8x648xf32, #tpu.memory_space<vmem>>, vector<1x8x1x72xf32>,
    %179 = vector.extract_strided_slice %175 {offsets = [0, 0, 8], sizes = [1, 8, 72], strides = [1, 1, 1]} : vector<1x8x128xf32> to vector<1x8x72xf32>
    %180 = vector.shape_cast %179 : vector<1x8x72xf32> to vector<1x8x1x72xf32>
    %c0_237 = arith.constant 0 : index
    %c0_238 = arith.constant 0 : index
    %c1_239 = arith.constant 1 : index
    %c504_240 = arith.constant 504 : index
    %181 = vector.load %arg5[%c0_237, %c0_238, %c1_239, %c504_240] : memref<1x8x8x648xf32, #tpu.memory_space<vmem>>, vector<1x8x1x72xf32>
    tpu.vector_store %arg5[%c0_237, %c0_238, %c1_239, %c504_240], %180 {strides = array<i32>} : memref<1x8x8x648xf32, #tpu.memory_space<vmem>>, vector<1x8x1x72xf32>,
    %182 = vector.extract_strided_slice %175 {offsets = [0, 0, 16], sizes = [1, 8, 72], strides = [1, 1, 1]} : vector<1x8x128xf32> to vector<1x8x72xf32>
    %183 = vector.shape_cast %182 : vector<1x8x72xf32> to vector<1x8x1x72xf32>
    %c0_241 = arith.constant 0 : index
    %c0_242 = arith.constant 0 : index
    %c2_243 = arith.constant 2 : index
    %c504_244 = arith.constant 504 : index
    %184 = vector.load %arg5[%c0_241, %c0_242, %c2_243, %c504_244] : memref<1x8x8x648xf32, #tpu.memory_space<vmem>>, vector<1x8x1x72xf32>
    tpu.vector_store %arg5[%c0_241, %c0_242, %c2_243, %c504_244], %183 {strides = array<i32>} : memref<1x8x8x648xf32, #tpu.memory_space<vmem>>, vector<1x8x1x72xf32>,
    %185 = vector.extract_strided_slice %175 {offsets = [0, 0, 24], sizes = [1, 8, 72], strides = [1, 1, 1]} : vector<1x8x128xf32> to vector<1x8x72xf32>
    %186 = vector.shape_cast %185 : vector<1x8x72xf32> to vector<1x8x1x72xf32>
    %c0_245 = arith.constant 0 : index
    %c0_246 = arith.constant 0 : index
    %c3_247 = arith.constant 3 : index
    %c504_248 = arith.constant 504 : index
    %187 = vector.load %arg5[%c0_245, %c0_246, %c3_247, %c504_248] : memref<1x8x8x648xf32, #tpu.memory_space<vmem>>, vector<1x8x1x72xf32>
    tpu.vector_store %arg5[%c0_245, %c0_246, %c3_247, %c504_248], %186 {strides = array<i32>} : memref<1x8x8x648xf32, #tpu.memory_space<vmem>>, vector<1x8x1x72xf32>,
    %188 = vector.extract_strided_slice %175 {offsets = [0, 0, 32], sizes = [1, 8, 72], strides = [1, 1, 1]} : vector<1x8x128xf32> to vector<1x8x72xf32>
    %189 = vector.shape_cast %188 : vector<1x8x72xf32> to vector<1x8x1x72xf32>
    %c0_249 = arith.constant 0 : index
    %c0_250 = arith.constant 0 : index
    %c4_251 = arith.constant 4 : index
    %c504_252 = arith.constant 504 : index
    %190 = vector.load %arg5[%c0_249, %c0_250, %c4_251, %c504_252] : memref<1x8x8x648xf32, #tpu.memory_space<vmem>>, vector<1x8x1x72xf32>
    tpu.vector_store %arg5[%c0_249, %c0_250, %c4_251, %c504_252], %189 {strides = array<i32>} : memref<1x8x8x648xf32, #tpu.memory_space<vmem>>, vector<1x8x1x72xf32>,
    %191 = vector.extract_strided_slice %175 {offsets = [0, 0, 40], sizes = [1, 8, 72], strides = [1, 1, 1]} : vector<1x8x128xf32> to vector<1x8x72xf32>
    %192 = vector.shape_cast %191 : vector<1x8x72xf32> to vector<1x8x1x72xf32>
    %c0_253 = arith.constant 0 : index
    %c0_254 = arith.constant 0 : index
    %c5_255 = arith.constant 5 : index
    %c504_256 = arith.constant 504 : index
    %193 = vector.load %arg5[%c0_253, %c0_254, %c5_255, %c504_256] : memref<1x8x8x648xf32, #tpu.memory_space<vmem>>, vector<1x8x1x72xf32>
    tpu.vector_store %arg5[%c0_253, %c0_254, %c5_255, %c504_256], %192 {strides = array<i32>} : memref<1x8x8x648xf32, #tpu.memory_space<vmem>>, vector<1x8x1x72xf32>,
    %194 = vector.extract_strided_slice %175 {offsets = [0, 0, 48], sizes = [1, 8, 72], strides = [1, 1, 1]} : vector<1x8x128xf32> to vector<1x8x72xf32>
    %195 = vector.shape_cast %194 : vector<1x8x72xf32> to vector<1x8x1x72xf32>
    %c0_257 = arith.constant 0 : index
    %c0_258 = arith.constant 0 : index
    %c6_259 = arith.constant 6 : index
    %c504_260 = arith.constant 504 : index
    %196 = vector.load %arg5[%c0_257, %c0_258, %c6_259, %c504_260] : memref<1x8x8x648xf32, #tpu.memory_space<vmem>>, vector<1x8x1x72xf32>
    tpu.vector_store %arg5[%c0_257, %c0_258, %c6_259, %c504_260], %195 {strides = array<i32>} : memref<1x8x8x648xf32, #tpu.memory_space<vmem>>, vector<1x8x1x72xf32>,
    %197 = vector.extract_strided_slice %175 {offsets = [0, 0, 56], sizes = [1, 8, 72], strides = [1, 1, 1]} : vector<1x8x128xf32> to vector<1x8x72xf32>
    %198 = vector.shape_cast %197 : vector<1x8x72xf32> to vector<1x8x1x72xf32>
    %c0_261 = arith.constant 0 : index
    %c0_262 = arith.constant 0 : index
    %c7_263 = arith.constant 7 : index
    %c504_264 = arith.constant 504 : index
    %199 = vector.load %arg5[%c0_261, %c0_262, %c7_263, %c504_264] : memref<1x8x8x648xf32, #tpu.memory_space<vmem>>, vector<1x8x1x72xf32>
    tpu.vector_store %arg5[%c0_261, %c0_262, %c7_263, %c504_264], %198 {strides = array<i32>} : memref<1x8x8x648xf32, #tpu.memory_space<vmem>>, vector<1x8x1x72xf32>,
    %c0_265 = arith.constant 0 : index
    %c8 = arith.constant 8 : index
    %c0_266 = arith.constant 0 : index
    %200 = vector.load %arg1[%c0_265, %c8, %c0_266] : memref<1x16x128xf32, #tpu.memory_space<vmem>>, vector<1x8x128xf32>
    %201 = vector.extract_strided_slice %200 {offsets = [0, 0, 0], sizes = [1, 8, 72], strides = [1, 1, 1]} : vector<1x8x128xf32> to vector<1x8x72xf32>
    %202 = vector.shape_cast %201 : vector<1x8x72xf32> to vector<1x8x1x72xf32>
    %c0_267 = arith.constant 0 : index
    %c0_268 = arith.constant 0 : index
    %c0_269 = arith.constant 0 : index
    %c576 = arith.constant 576 : index
    %203 = vector.load %arg5[%c0_267, %c0_268, %c0_269, %c576] : memref<1x8x8x648xf32, #tpu.memory_space<vmem>>, vector<1x8x1x72xf32>
    tpu.vector_store %arg5[%c0_267, %c0_268, %c0_269, %c576], %202 {strides = array<i32>} : memref<1x8x8x648xf32, #tpu.memory_space<vmem>>, vector<1x8x1x72xf32>,
    %204 = vector.extract_strided_slice %200 {offsets = [0, 0, 8], sizes = [1, 8, 72], strides = [1, 1, 1]} : vector<1x8x128xf32> to vector<1x8x72xf32>
    %205 = vector.shape_cast %204 : vector<1x8x72xf32> to vector<1x8x1x72xf32>
    %c0_270 = arith.constant 0 : index
    %c0_271 = arith.constant 0 : index
    %c1_272 = arith.constant 1 : index
    %c576_273 = arith.constant 576 : index
    %206 = vector.load %arg5[%c0_270, %c0_271, %c1_272, %c576_273] : memref<1x8x8x648xf32, #tpu.memory_space<vmem>>, vector<1x8x1x72xf32>
    tpu.vector_store %arg5[%c0_270, %c0_271, %c1_272, %c576_273], %205 {strides = array<i32>} : memref<1x8x8x648xf32, #tpu.memory_space<vmem>>, vector<1x8x1x72xf32>,
    %207 = vector.extract_strided_slice %200 {offsets = [0, 0, 16], sizes = [1, 8, 72], strides = [1, 1, 1]} : vector<1x8x128xf32> to vector<1x8x72xf32>
    %208 = vector.shape_cast %207 : vector<1x8x72xf32> to vector<1x8x1x72xf32>
    %c0_274 = arith.constant 0 : index
    %c0_275 = arith.constant 0 : index
    %c2_276 = arith.constant 2 : index
    %c576_277 = arith.constant 576 : index
    %209 = vector.load %arg5[%c0_274, %c0_275, %c2_276, %c576_277] : memref<1x8x8x648xf32, #tpu.memory_space<vmem>>, vector<1x8x1x72xf32>
    tpu.vector_store %arg5[%c0_274, %c0_275, %c2_276, %c576_277], %208 {strides = array<i32>} : memref<1x8x8x648xf32, #tpu.memory_space<vmem>>, vector<1x8x1x72xf32>,
    %210 = vector.extract_strided_slice %200 {offsets = [0, 0, 24], sizes = [1, 8, 72], strides = [1, 1, 1]} : vector<1x8x128xf32> to vector<1x8x72xf32>
    %211 = vector.shape_cast %210 : vector<1x8x72xf32> to vector<1x8x1x72xf32>
    %c0_278 = arith.constant 0 : index
    %c0_279 = arith.constant 0 : index
    %c3_280 = arith.constant 3 : index
    %c576_281 = arith.constant 576 : index
    %212 = vector.load %arg5[%c0_278, %c0_279, %c3_280, %c576_281] : memref<1x8x8x648xf32, #tpu.memory_space<vmem>>, vector<1x8x1x72xf32>
    tpu.vector_store %arg5[%c0_278, %c0_279, %c3_280, %c576_281], %211 {strides = array<i32>} : memref<1x8x8x648xf32, #tpu.memory_space<vmem>>, vector<1x8x1x72xf32>,
    %213 = vector.extract_strided_slice %200 {offsets = [0, 0, 32], sizes = [1, 8, 72], strides = [1, 1, 1]} : vector<1x8x128xf32> to vector<1x8x72xf32>
    %214 = vector.shape_cast %213 : vector<1x8x72xf32> to vector<1x8x1x72xf32>
    %c0_282 = arith.constant 0 : index
    %c0_283 = arith.constant 0 : index
    %c4_284 = arith.constant 4 : index
    %c576_285 = arith.constant 576 : index
    %215 = vector.load %arg5[%c0_282, %c0_283, %c4_284, %c576_285] : memref<1x8x8x648xf32, #tpu.memory_space<vmem>>, vector<1x8x1x72xf32>
    tpu.vector_store %arg5[%c0_282, %c0_283, %c4_284, %c576_285], %214 {strides = array<i32>} : memref<1x8x8x648xf32, #tpu.memory_space<vmem>>, vector<1x8x1x72xf32>,
    %216 = vector.extract_strided_slice %200 {offsets = [0, 0, 40], sizes = [1, 8, 72], strides = [1, 1, 1]} : vector<1x8x128xf32> to vector<1x8x72xf32>
    %217 = vector.shape_cast %216 : vector<1x8x72xf32> to vector<1x8x1x72xf32>
    %c0_286 = arith.constant 0 : index
    %c0_287 = arith.constant 0 : index
    %c5_288 = arith.constant 5 : index
    %c576_289 = arith.constant 576 : index
    %218 = vector.load %arg5[%c0_286, %c0_287, %c5_288, %c576_289] : memref<1x8x8x648xf32, #tpu.memory_space<vmem>>, vector<1x8x1x72xf32>
    tpu.vector_store %arg5[%c0_286, %c0_287, %c5_288, %c576_289], %217 {strides = array<i32>} : memref<1x8x8x648xf32, #tpu.memory_space<vmem>>, vector<1x8x1x72xf32>,
    %219 = vector.extract_strided_slice %200 {offsets = [0, 0, 48], sizes = [1, 8, 72], strides = [1, 1, 1]} : vector<1x8x128xf32> to vector<1x8x72xf32>
    %220 = vector.shape_cast %219 : vector<1x8x72xf32> to vector<1x8x1x72xf32>
    %c0_290 = arith.constant 0 : index
    %c0_291 = arith.constant 0 : index
    %c6_292 = arith.constant 6 : index
    %c576_293 = arith.constant 576 : index
    %221 = vector.load %arg5[%c0_290, %c0_291, %c6_292, %c576_293] : memref<1x8x8x648xf32, #tpu.memory_space<vmem>>, vector<1x8x1x72xf32>
    tpu.vector_store %arg5[%c0_290, %c0_291, %c6_292, %c576_293], %220 {strides = array<i32>} : memref<1x8x8x648xf32, #tpu.memory_space<vmem>>, vector<1x8x1x72xf32>,
    %222 = vector.extract_strided_slice %200 {offsets = [0, 0, 56], sizes = [1, 8, 72], strides = [1, 1, 1]} : vector<1x8x128xf32> to vector<1x8x72xf32>
    %223 = vector.shape_cast %222 : vector<1x8x72xf32> to vector<1x8x1x72xf32>
    %c0_294 = arith.constant 0 : index
    %c0_295 = arith.constant 0 : index
    %c7_296 = arith.constant 7 : index
    %c576_297 = arith.constant 576 : index
    %224 = vector.load %arg5[%c0_294, %c0_295, %c7_296, %c576_297] : memref<1x8x8x648xf32, #tpu.memory_space<vmem>>, vector<1x8x1x72xf32>
    tpu.vector_store %arg5[%c0_294, %c0_295, %c7_296, %c576_297], %223 {strides = array<i32>} : memref<1x8x8x648xf32, #tpu.memory_space<vmem>>, vector<1x8x1x72xf32>,
    %c0_298 = arith.constant 0 : index
    %c0_299 = arith.constant 0 : index
    %c0_300 = arith.constant 0 : index
    %c0_301 = arith.constant 0 : index
    %225 = vector.load %arg5[%c0_298, %c0_299, %c0_300, %c0_301] : memref<1x8x8x648xf32, #tpu.memory_space<vmem>>, vector<1x8x8x648xf32>
    %226 = vector.shape_cast %225 : vector<1x8x8x648xf32> to vector<64x648xf32>
    %c0_302 = arith.constant 0 : index
    %c0_303 = arith.constant 0 : index
    %227 = vector.load %arg2[%c0_302, %c0_303] : memref<648x128xf32, #tpu.memory_space<vmem>>, vector<648x128xf32>
    %cst = arith.constant dense<0.000000e+00> : vector<64x128xf32>
    %228 = tpu.matmul %226, %227, %cst {dimension_numbers = #tpu.dot_dimension_numbers<[1], [0], [0], [1], [0, 0, 1, 1], [], []>} : vector<64x648xf32>, vector<648x128xf32>, vector<64x128xf32> -> vector<64x128xf32>
    %c0_304 = arith.constant 0 : index
    %c0_305 = arith.constant 0 : index
    %229 = vector.load %arg3[%c0_304, %c0_305] : memref<1x128xf32, #tpu.memory_space<vmem>>, vector<1x128xf32>
    %230 = vector.broadcast %229 : vector<1x128xf32> to vector<64x128xf32>
    %231 = arith.addf %228, %230 : vector<64x128xf32>
    %cst_306 = arith.constant 0.000000e+00 : f32
    %232 = vector.broadcast %cst_306 : f32 to vector<64x128xf32>
    %233 = arith.maximumf %231, %232 : vector<64x128xf32>
    %c0_307 = arith.constant 0 : index
    %c0_308 = arith.constant 0 : index
    %234 = vector.load %arg4[%c0_307, %c0_308] : memref<64x128xf32, #tpu.memory_space<vmem>>, vector<64x128xf32>
    tpu.vector_store %arg4[%c0_307, %c0_308], %233 {strides = array<i32>} : memref<64x128xf32, #tpu.memory_space<vmem>>, vector<64x128xf32>,
    return
  }
  func.func @transform_0(%arg0: i32) -> (i32, i32, i32) {
    %c0_i32 = arith.constant 0 : i32
    %c0_i32_0 = arith.constant 0 : i32
    %c0_i32_1 = arith.constant 0 : i32
    return %arg0, %c0_i32, %c0_i32_0 : i32, i32, i32
  }
  func.func @transform_1(%arg0: i32) -> (i32, i32) {
    %c0_i32 = arith.constant 0 : i32
    %c0_i32_0 = arith.constant 0 : i32
    %c0_i32_1 = arith.constant 0 : i32
    return %c0_i32, %c0_i32_0 : i32, i32
  }
  func.func @transform_2(%arg0: i32) -> (i32, i32) {
    %c0_i32 = arith.constant 0 : i32
    %c0_i32_0 = arith.constant 0 : i32
    %c0_i32_1 = arith.constant 0 : i32
    return %c0_i32, %c0_i32_0 : i32, i32
  }
  func.func @transform_3(%arg0: i32) -> (i32, i32) {
    %c0_i32 = arith.constant 0 : i32
    %c0_i32_0 = arith.constant 0 : i32
    return %arg0, %c0_i32 : i32, i32
  }
}

</mosaic_0001>

<llo_original>
// kernel: tpu_custom_call.1
$region0: #{tpu_custom_call.1}
  #allocation0 [shape = 'u32[]', space=smem, size = 0x4, offset = 0x4, fixed_abs, tag = 'smem constant byte address 0x4 - core index']
  #allocation1 [shape = 'u32[144,128]{1,0:T(1,128)}', space=vmem, size = 0x12000, scoped, tag = 'internal scratch']
  #allocation2 [shape = 'f32[1,8,8,648]{3,2,1,0:T(8,128)}', space=vmem, size = 0x30000, scoped, tag = 'scratch operand']
  %s0 = inlined_call_operand.hbm [shape: f32[2,16,128], index: 0, kind: input, shape index: {}]
  %s1 = inlined_call_operand.hbm [shape: f32[648,128], index: 1, kind: input, shape index: {}]
  %s2 = inlined_call_operand.vmem [shape: f32[1,128], index: 2, kind: input, shape index: {}]
  %s3 = inlined_call_operand.hbm [shape: f32[128,128], index: 3, kind: output, shape index: {}]
  %s4 = sld [smem:[#allocation0]]
  $region53: #{tpu_custom_call.1} parent=0
    _
  %s6 = ssub.s32 1, %s4
  %s7 = scalar_select 0, %s6, %s4
  $region1: #{tpu_custom_call.1} parent=0
    #allocation3 [shape = 'u8[16384]{0}', space=vmem, size = 0x4000, scoped, tag = 'input window, operand 0']
    #allocation4 [shape = 's32[2]{0}', space=sflag, size = 0x8, scoped, tag = 'scoped memory for tpu_custom_call.1']
    #allocation5 [shape = 's32[2]{0}', space=sflag, size = 0x8, scoped, tag = 'scoped memory for tpu_custom_call.1']
    #allocation6 [shape = 'u8[331776]{0}', space=vmem, size = 0x51000, scoped, tag = 'input window, operand 1, single buffered']
    #allocation7 [shape = 's32[1]{0}', space=sflag, size = 0x4, scoped, tag = 'scoped memory for tpu_custom_call.1']
    #allocation8 [shape = 'u8[65536]{0}', space=vmem, size = 0x10000, scoped, tag = 'output window, operand 0']
    %8 = vsyncpa [#allocation4], 0
    %s9 = scalar_lea.sflag [#allocation4], 1
    %10 = vsyncpa %s9, 0
    %11 = vsyncpa [#allocation7], 0
    %12 = vsyncpa [#allocation5], 0
    %s13 = scalar_lea.sflag [#allocation5], 1
    %14 = vsyncpa %s13, 0
    loop: start=0, step=1, limit=4
    $region2: #{tpu_custom_call.1} parent=1 // loop_pre_header
      _
    $region3: #{tpu_custom_call.1} parent=1 // loop_header
      %s16 = sphi 0, %s20
      %p17 = scmp.ge.s32.totalorder %s16, 4
      %s26 = sphi 0, %s28
      %s29 = sphi 0, %s26
      %s30 = sphi 0, %s29
      %s46 = sphi 0, %s30
      %s50 = sphi 0, %s50
      %s52 = sphi 0, %s50
      %s53 = sphi 0, %s52
      %s67 = sphi 0, %s53
      %s71 = sphi 0, %s71
      %s73 = sphi 0, %s71
      %s74 = sphi 0, %s73
      %s88 = sphi 0, %s74
      %s94 = sphi 0, %s96
      %s97 = sphi 0, %s94
      %s98 = sphi 0, %s97
      %s114 = sphi 0, %s98
    $region4: #{tpu_custom_call.1} parent=1 // loop_header_branch
      %19 = sbr.rel (%p17) target = $region8
    $region5: #{tpu_custom_call.1} parent=1 // loop_body
      %s21 = ssub.s32 %s16, 1
      %s22 = ssub.s32 %s16, 2
      %s23 = sadd.s32 %s16, 1
      %s24 = ssub.s32 %s16, %s23
      %p25 = scmp.eq.s32.totalorder %s24, 0
      %s27 = sadd.s32 %s26, 1
      %s28 = scalar_select %p25, %s26, %s27
      %p31 = pneg %p25
      %p32 = scmp.eq.s32.totalorder %s16, 1
      %p33 = por %p31, %p32
      %p34 = scmp.ne.s32.totalorder %s26, %s29
      %p35 = scmp.eq.s32.totalorder %s16, 0
      %p36 = por %p34, %p35
      %p37 = scmp.ne.s32.totalorder %s26, %s29
      %p38 = scmp.eq.s32.totalorder %s21, 1
      %p39 = por %p37, %p38
      %p40 = scmp.ne.s32.totalorder %s29, %s30
      %p41 = scmp.eq.s32.totalorder %s21, 0
      %p42 = por %p40, %p41
      %p43 = scmp.ne.s32.totalorder %s29, %s30
      %p44 = scmp.eq.s32.totalorder %s22, 1
      %p45 = por %p43, %p44
      %p47 = scmp.ne.s32.totalorder %s30, %s46
      %p48 = scmp.eq.s32.totalorder %s22, 0
      %p49 = por %p47, %p48
      %s51 = sadd.s32 %s50, 1
      %p54 = scmp.eq.s32.totalorder %s16, 1
      %p55 = scmp.ne.s32.totalorder %s50, %s52
      %p56 = scmp.eq.s32.totalorder %s16, 0
      %p57 = por %p55, %p56
      %p58 = scmp.ne.s32.totalorder %s50, %s52
      %p59 = scmp.eq.s32.totalorder %s21, 1
      %p60 = por %p58, %p59
      %p61 = scmp.ne.s32.totalorder %s52, %s53
      %p62 = scmp.eq.s32.totalorder %s21, 0
      %p63 = por %p61, %p62
      %p64 = scmp.ne.s32.totalorder %s52, %s53
      %p65 = scmp.eq.s32.totalorder %s22, 1
      %p66 = por %p64, %p65
      %p68 = scmp.ne.s32.totalorder %s53, %s67
      %p69 = scmp.eq.s32.totalorder %s22, 0
      %p70 = por %p68, %p69
      %s72 = sadd.s32 %s71, 1
      %p75 = scmp.eq.s32.totalorder %s16, 1
      %p76 = scmp.ne.s32.totalorder %s71, %s73
      %p77 = scmp.eq.s32.totalorder %s16, 0
      %p78 = por %p76, %p77
      %p79 = scmp.ne.s32.totalorder %s71, %s73
      %p80 = scmp.eq.s32.totalorder %s21, 1
      %p81 = por %p79, %p80
      %p82 = scmp.ne.s32.totalorder %s73, %s74
      %p83 = scmp.eq.s32.totalorder %s21, 0
      %p84 = por %p82, %p83
      %p85 = scmp.ne.s32.totalorder %s73, %s74
      %p86 = scmp.eq.s32.totalorder %s22, 1
      %p87 = por %p85, %p86
      %p89 = scmp.ne.s32.totalorder %s74, %s88
      %p90 = scmp.eq.s32.totalorder %s22, 0
      %p91 = por %p89, %p90
      %s92 = ssub.s32 %s16, %s23
      %p93 = scmp.eq.s32.totalorder %s92, 0
      %s95 = sadd.s32 %s94, 1
      %s96 = scalar_select %p93, %s94, %s95
      %p99 = pneg %p93
      %p100 = scmp.eq.s32.totalorder %s16, 1
      %p101 = por %p99, %p100
      %p102 = scmp.ne.s32.totalorder %s94, %s97
      %p103 = scmp.eq.s32.totalorder %s16, 0
      %p104 = por %p102, %p103
      %p105 = scmp.ne.s32.totalorder %s94, %s97
      %p106 = scmp.eq.s32.totalorder %s21, 1
      %p107 = por %p105, %p106
      %p108 = scmp.ne.s32.totalorder %s97, %s98
      %p109 = scmp.eq.s32.totalorder %s21, 0
      %p110 = por %p108, %p109
      %p111 = scmp.ne.s32.totalorder %s97, %s98
      %p112 = scmp.eq.s32.totalorder %s22, 1
      %p113 = por %p111, %p112
      %p115 = scmp.ne.s32.totalorder %s98, %s114
      %p116 = scmp.eq.s32.totalorder %s22, 0
      %p117 = por %p115, %p116
      %p118 = scmp.le.s32.totalorder 1, %s16
      %p119 = scmp.lt.s32.totalorder %s16, 3
      %p120 = pnand %p118, %p119
      %p121 = pneg %p120
      // Predicated region
      $region9: #{tpu_custom_call.1} parent=5 // pred_check
        _
      $region10: #{tpu_custom_call.1} parent=5 // pred_check_branch
        %123 = sbr.rel (%p120) target = $region12
      $region11: #{tpu_custom_call.1} parent=5 // pred_region
        %s124 = ssub.s32 %s16, 1
        // Predicated region
        $region13: #{tpu_custom_call.1} parent=11 // pred_check
          %p125 = pneg %p63
        $region14: #{tpu_custom_call.1} parent=11 // pred_check_branch
          %127 = sbr.rel (%p125) target = $region16
        $region15: #{tpu_custom_call.1} parent=11 // pred_region
          %s129 = ssub.s32 10368, 10368
          %130 = vsyncadd [#allocation7], %s129
          %s131 = sshll.u32 [#allocation6], 4
          %s132 = int_to_ptr.vmem [resolvable:$true] %s131
          %137 = dma.hbm_to_vmem [thread:$0]  %s1, 10368, %s132, [#allocation7], 128, 128, 8
        $region16: #{tpu_custom_call.1} parent=11 // pred_fallthru
          _
        // Predicated region
        $region17: #{tpu_custom_call.1} parent=11 // pred_check
          %p138 = pneg %p84
        $region18: #{tpu_custom_call.1} parent=11 // pred_check_branch
          %140 = sbr.rel (%p138) target = $region20
        $region19: #{tpu_custom_call.1} parent=11 // pred_region
          _
        $region20: #{tpu_custom_call.1} parent=11 // pred_fallthru
          _
      $region12: #{tpu_custom_call.1} parent=5 // pred_fallthru
        _
      %p141 = scmp.lt.s32.totalorder %s16, 2
      // Predicated region
      $region21: #{tpu_custom_call.1} parent=5 // pred_check
        %p142 = pneg %p141
      $region22: #{tpu_custom_call.1} parent=5 // pred_check_branch
        %144 = sbr.rel (%p142) target = $region24
      $region23: #{tpu_custom_call.1} parent=5 // pred_region
        // Predicated region
        $region25: #{tpu_custom_call.1} parent=23 // pred_check
          %p145 = pneg %p36
        $region26: #{tpu_custom_call.1} parent=23 // pred_check_branch
          %147 = sbr.rel (%p145) target = $region28
        $region27: #{tpu_custom_call.1} parent=23 // pred_region
          %s148 = sand.u32 %s26, 1
          %s149 = scalar_lea.sflag [#allocation4], %s148
          %s150 = sand.u32 %s26, 1
          %s151 = smul.addr %s150, 16
          %s152 = scalar_lea.vmem [#allocation3], %s151
          %s154 = ssub.s32 256, 256
          %155 = vsyncadd %s149, %s154
          %s156 = smul.addr %s16, 2
          %s157 = smul.addr %s156, 128
          %s158 = scalar_lea.hbm %s0, %s157
          %s159 = sshll.u32 %s152, 4
          %s160 = int_to_ptr.vmem [resolvable:$true] %s159
          %165 = dma.hbm_to_vmem [thread:$0]  %s158, 256, %s160, %s149, 128, 128, 8
        $region28: #{tpu_custom_call.1} parent=23 // pred_fallthru
          _
      $region24: #{tpu_custom_call.1} parent=5 // pred_fallthru
        _
      %p166 = scmp.le.s32.totalorder 1, %s16
      %p167 = scmp.lt.s32.totalorder %s16, 3
      %p168 = pnand %p166, %p167
      %p169 = pneg %p168
      // Predicated region
      $region29: #{tpu_custom_call.1} parent=5 // pred_check
        _
      $region30: #{tpu_custom_call.1} parent=5 // pred_check_branch
        %171 = sbr.rel (%p168) target = $region32
      $region31: #{tpu_custom_call.1} parent=5 // pred_region
        %s172 = ssub.s32 %s16, 1
        %s173 = sand.u32 %s29, 1
        %s174 = scalar_lea.sflag [#allocation4], %s173
        %s175 = sand.u32 %s29, 1
        %s176 = smul.addr %s175, 16
        %s177 = scalar_lea.vmem [#allocation3], %s176
        // Predicated region
        $region33: #{tpu_custom_call.1} parent=31 // pred_check
          %p178 = pneg %p42
        $region34: #{tpu_custom_call.1} parent=31 // pred_check_branch
          %180 = sbr.rel (%p178) target = $region36
        $region35: #{tpu_custom_call.1} parent=31 // pred_region
          %181 = dma.done %s174, 256
        $region36: #{tpu_custom_call.1} parent=31 // pred_fallthru
          _
        // Predicated region
        $region37: #{tpu_custom_call.1} parent=31 // pred_check
          %p182 = pneg %p63
        $region38: #{tpu_custom_call.1} parent=31 // pred_check_branch
          %184 = sbr.rel (%p182) target = $region40
        $region39: #{tpu_custom_call.1} parent=31 // pred_region
          %185 = dma.done [#allocation7], 10368
        $region40: #{tpu_custom_call.1} parent=31 // pred_fallthru
          _
        %s186 = sand.u32 %s29, 1
        %s187 = scalar_lea.sflag [#allocation4], %s186
        %s188 = sand.u32 %s29, 1
        %s189 = smul.addr %s188, 16
        %s190 = scalar_lea.vmem [#allocation3], %s189
        %p191 = pneg %p42
        %p192 = pneg %p39
        %p193 = pneg %p63
        %p194 = pneg %p60
        %p195 = pneg %p84
        %p196 = pneg %p81
        %p197 = pneg %p110
        %p198 = pneg %p107
        %s199 = sand.u32 %s97, 1
        %s200 = scalar_lea.sflag [#allocation5], %s199
        %s201 = sand.u32 %s97, 1
        %s202 = smul.addr %s201, 64
        %s203 = scalar_lea.vmem [#allocation8], %s202
        %s204 = smul.u32 8, %s21
        %v205 = vld [vmem:[%s177] sm:$0xff]
        %v207 = vcombine.high %v205, %v205
        %v209 = vunpack.c.l.s4 1966171168
        %v210 = vunpack.c.0.s8 %v209
        %v211 = vlaneseq
        %v212 = vshrl.u32 %v211, 7
        %v213 = vsub.s32 %v210, %v212
        %v214 = vrot.slane %v205, %v213
        %v216 = vunpack.c.l.s4 1966171168
        %v217 = vunpack.c.0.s8 %v216
        %v218 = vlaneseq
        %v219 = vshrl.u32 %v218, 7
        %v220 = vsub.s32 %v217, %v219
        %v221 = vrot.slane %v207, %v220
        %v222 = vcombine.high %v214, %v214
        %v223 = vcombine.high %v221, %v221
        %v225 = vunpack.c.l.s4 1966171168
        %v226 = vunpack.c.0.s8 %v225
        %v227 = vlaneseq
        %v228 = vshrl.u32 %v227, 7
        %v229 = vsub.s32 %v226, %v228
        %v230 = vrot.slane %v214, %v229
        %v232 = vunpack.c.l.s4 1966171168
        %v233 = vunpack.c.0.s8 %v232
        %v234 = vlaneseq
        %v235 = vshrl.u32 %v234, 7
        %v236 = vsub.s32 %v233, %v235
        %v237 = vrot.slane %v221, %v236
        %v239 = vunpack.c.l.s4 1966171168
        %v240 = vunpack.c.0.s8 %v239
        %v241 = vlaneseq
        %v242 = vshrl.u32 %v241, 7
        %v243 = vsub.s32 %v240, %v242
        %v244 = vrot.slane %v222, %v243
        %v246 = vunpack.c.l.s4 1966171168
        %v247 = vunpack.c.0.s8 %v246
        %v248 = vlaneseq
        %v249 = vshrl.u32 %v248, 7
        %v250 = vsub.s32 %v247, %v249
        %v251 = vrot.slane %v223, %v250
        %v252 = vcombine.high %v230, %v230
        %v253 = vcombine.high %v237, %v237
        %v254 = vcombine.high %v244, %v244
        %v255 = vcombine.high %v251, %v251
        %vm264 = vcmask 581632
        %265 = vst.msk [vmem:[#allocation2] sm:$0x1] %vm264, %v230
        %266 = vst.msk [vmem:[#allocation2 + $0x30] sm:$0x1] %vm264, %v244
        %267 = vst.msk [vmem:[#allocation2 + $0x60] sm:$0x1] %vm264, %v252
        %268 = vst.msk [vmem:[#allocation2 + $0x90] sm:$0x1] %vm264, %v254
        %269 = vst.msk [vmem:[#allocation2 + $0xc0] sm:$0x1] %vm264, %v237
        %270 = vst.msk [vmem:[#allocation2 + $0xf0] sm:$0x1] %vm264, %v251
        %271 = vst.msk [vmem:[#allocation2 + $0x120] sm:$0x1] %vm264, %v253
        %272 = vst.msk [vmem:[#allocation2 + $0x150] sm:$0x1] %vm264, %v255
        %v273 = vlaneseq
        %v274 = vshrl.u32 %v273, 7
        %v275 = vsub.s32 0, %v274
        %v276 = vrot.slane %v230, %v275
        %v277 = vlaneseq
        %v278 = vshrl.u32 %v277, 7
        %v279 = vsub.s32 0, %v278
        %v280 = vrot.slane %v244, %v279
        %v281 = vlaneseq
        %v282 = vshrl.u32 %v281, 7
        %v283 = vsub.s32 0, %v282
        %v284 = vrot.slane %v252, %v283
        %v285 = vlaneseq
        %v286 = vshrl.u32 %v285, 7
        %v287 = vsub.s32 0, %v286
        %v288 = vrot.slane %v254, %v287
        %v289 = vlaneseq
        %v290 = vshrl.u32 %v289, 7
        %v291 = vsub.s32 0, %v290
        %v292 = vrot.slane %v237, %v291
        %v293 = vlaneseq
        %v294 = vshrl.u32 %v293, 7
        %v295 = vsub.s32 0, %v294
        %v296 = vrot.slane %v251, %v295
        %v297 = vlaneseq
        %v298 = vshrl.u32 %v297, 7
        %v299 = vsub.s32 0, %v298
        %v300 = vrot.slane %v253, %v299
        %v301 = vlaneseq
        %v302 = vshrl.u32 %v301, 7
        %v303 = vsub.s32 0, %v302
        %v304 = vrot.slane %v255, %v303
        %305 = vrot.lane.b32.xlu0 %v276, 120
        %v306 = vpop.permute.xlu0 %305
        %307 = vrot.lane.b32.xlu0 %v280, 120
        %v308 = vpop.permute.xlu0 %307
        %309 = vrot.lane.b32.xlu0 %v284, 120
        %v310 = vpop.permute.xlu0 %309
        %311 = vrot.lane.b32.xlu0 %v288, 120
        %v312 = vpop.permute.xlu0 %311
        %313 = vrot.lane.b32.xlu0 %v292, 120
        %v314 = vpop.permute.xlu0 %313
        %315 = vrot.lane.b32.xlu0 %v296, 120
        %v316 = vpop.permute.xlu0 %315
        %317 = vrot.lane.b32.xlu0 %v300, 120
        %v318 = vpop.permute.xlu0 %317
        %319 = vrot.lane.b32.xlu0 %v304, 120
        %v320 = vpop.permute.xlu0 %319
        %329 = vst.msk [vmem:[#allocation2 + $0x1] sm:$0x1] %vm264, %v306
        %330 = vst.msk [vmem:[#allocation2 + $0x31] sm:$0x1] %vm264, %v308
        %331 = vst.msk [vmem:[#allocation2 + $0x61] sm:$0x1] %vm264, %v310
        %332 = vst.msk [vmem:[#allocation2 + $0x91] sm:$0x1] %vm264, %v312
        %333 = vst.msk [vmem:[#allocation2 + $0xc1] sm:$0x1] %vm264, %v314
        %334 = vst.msk [vmem:[#allocation2 + $0xf1] sm:$0x1] %vm264, %v316
        %335 = vst.msk [vmem:[#allocation2 + $0x121] sm:$0x1] %vm264, %v318
        %336 = vst.msk [vmem:[#allocation2 + $0x151] sm:$0x1] %vm264, %v320
        %337 = vrot.lane.b32.xlu0 %v276, 112
        %v338 = vpop.permute.xlu0 %337
        %339 = vrot.lane.b32.xlu0 %v280, 112
        %v340 = vpop.permute.xlu0 %339
        %341 = vrot.lane.b32.xlu0 %v284, 112
        %v342 = vpop.permute.xlu0 %341
        %343 = vrot.lane.b32.xlu0 %v288, 112
        %v344 = vpop.permute.xlu0 %343
        %345 = vrot.lane.b32.xlu0 %v292, 112
        %v346 = vpop.permute.xlu0 %345
        %347 = vrot.lane.b32.xlu0 %v296, 112
        %v348 = vpop.permute.xlu0 %347
        %349 = vrot.lane.b32.xlu0 %v300, 112
        %v350 = vpop.permute.xlu0 %349
        %351 = vrot.lane.b32.xlu0 %v304, 112
        %v352 = vpop.permute.xlu0 %351
        %361 = vst.msk [vmem:[#allocation2 + $0x2] sm:$0x1] %vm264, %v338
        %362 = vst.msk [vmem:[#allocation2 + $0x32] sm:$0x1] %vm264, %v340
        %363 = vst.msk [vmem:[#allocation2 + $0x62] sm:$0x1] %vm264, %v342
        %364 = vst.msk [vmem:[#allocation2 + $0x92] sm:$0x1] %vm264, %v344
        %365 = vst.msk [vmem:[#allocation2 + $0xc2] sm:$0x1] %vm264, %v346
        %366 = vst.msk [vmem:[#allocation2 + $0xf2] sm:$0x1] %vm264, %v348
        %367 = vst.msk [vmem:[#allocation2 + $0x122] sm:$0x1] %vm264, %v350
        %368 = vst.msk [vmem:[#allocation2 + $0x152] sm:$0x1] %vm264, %v352
        %369 = vrot.lane.b32.xlu0 %v276, 104
        %v370 = vpop.permute.xlu0 %369
        %371 = vrot.lane.b32.xlu0 %v280, 104
        %v372 = vpop.permute.xlu0 %371
        %373 = vrot.lane.b32.xlu0 %v284, 104
        %v374 = vpop.permute.xlu0 %373
        %375 = vrot.lane.b32.xlu0 %v288, 104
        %v376 = vpop.permute.xlu0 %375
        %377 = vrot.lane.b32.xlu0 %v292, 104
        %v378 = vpop.permute.xlu0 %377
        %379 = vrot.lane.b32.xlu0 %v296, 104
        %v380 = vpop.permute.xlu0 %379
        %381 = vrot.lane.b32.xlu0 %v300, 104
        %v382 = vpop.permute.xlu0 %381
        %383 = vrot.lane.b32.xlu0 %v304, 104
        %v384 = vpop.permute.xlu0 %383
        %393 = vst.msk [vmem:[#allocation2 + $0x3] sm:$0x1] %vm264, %v370
        %394 = vst.msk [vmem:[#allocation2 + $0x33] sm:$0x1] %vm264, %v372
        %395 = vst.msk [vmem:[#allocation2 + $0x63] sm:$0x1] %vm264, %v374
        %396 = vst.msk [vmem:[#allocation2 + $0x93] sm:$0x1] %vm264, %v376
        %397 = vst.msk [vmem:[#allocation2 + $0xc3] sm:$0x1] %vm264, %v378
        %398 = vst.msk [vmem:[#allocation2 + $0xf3] sm:$0x1] %vm264, %v380
        %399 = vst.msk [vmem:[#allocation2 + $0x123] sm:$0x1] %vm264, %v382
        %400 = vst.msk [vmem:[#allocation2 + $0x153] sm:$0x1] %vm264, %v384
        %401 = vrot.lane.b32.xlu0 %v276, 96
        %v402 = vpop.permute.xlu0 %401
        %403 = vrot.lane.b32.xlu0 %v280, 96
        %v404 = vpop.permute.xlu0 %403
        %405 = vrot.lane.b32.xlu0 %v284, 96
        %v406 = vpop.permute.xlu0 %405
        %407 = vrot.lane.b32.xlu0 %v288, 96
        %v408 = vpop.permute.xlu0 %407
        %409 = vrot.lane.b32.xlu0 %v292, 96
        %v410 = vpop.permute.xlu0 %409
        %411 = vrot.lane.b32.xlu0 %v296, 96
        %v412 = vpop.permute.xlu0 %411
        %413 = vrot.lane.b32.xlu0 %v300, 96
        %v414 = vpop.permute.xlu0 %413
        %415 = vrot.lane.b32.xlu0 %v304, 96
        %v416 = vpop.permute.xlu0 %415
        %425 = vst.msk [vmem:[#allocation2 + $0x4] sm:$0x1] %vm264, %v402
        %426 = vst.msk [vmem:[#allocation2 + $0x34] sm:$0x1] %vm264, %v404
        %427 = vst.msk [vmem:[#allocation2 + $0x64] sm:$0x1] %vm264, %v406
        %428 = vst.msk [vmem:[#allocation2 + $0x94] sm:$0x1] %vm264, %v408
        %429 = vst.msk [vmem:[#allocation2 + $0xc4] sm:$0x1] %vm264, %v410
        %430 = vst.msk [vmem:[#allocation2 + $0xf4] sm:$0x1] %vm264, %v412
        %431 = vst.msk [vmem:[#allocation2 + $0x124] sm:$0x1] %vm264, %v414
        %432 = vst.msk [vmem:[#allocation2 + $0x154] sm:$0x1] %vm264, %v416
        %433 = vrot.lane.b32.xlu0 %v276, 88
        %v434 = vpop.permute.xlu0 %433
        %435 = vrot.lane.b32.xlu0 %v280, 88
        %v436 = vpop.permute.xlu0 %435
        %437 = vrot.lane.b32.xlu0 %v284, 88
        %v438 = vpop.permute.xlu0 %437
        %439 = vrot.lane.b32.xlu0 %v288, 88
        %v440 = vpop.permute.xlu0 %439
        %441 = vrot.lane.b32.xlu0 %v292, 88
        %v442 = vpop.permute.xlu0 %441
        %443 = vrot.lane.b32.xlu0 %v296, 88
        %v444 = vpop.permute.xlu0 %443
        %445 = vrot.lane.b32.xlu0 %v300, 88
        %v446 = vpop.permute.xlu0 %445
        %447 = vrot.lane.b32.xlu0 %v304, 88
        %v448 = vpop.permute.xlu0 %447
        %457 = vst.msk [vmem:[#allocation2 + $0x5] sm:$0x1] %vm264, %v434
        %458 = vst.msk [vmem:[#allocation2 + $0x35] sm:$0x1] %vm264, %v436
        %459 = vst.msk [vmem:[#allocation2 + $0x65] sm:$0x1] %vm264, %v438
        %460 = vst.msk [vmem:[#allocation2 + $0x95] sm:$0x1] %vm264, %v440
        %461 = vst.msk [vmem:[#allocation2 + $0xc5] sm:$0x1] %vm264, %v442
        %462 = vst.msk [vmem:[#allocation2 + $0xf5] sm:$0x1] %vm264, %v444
        %463 = vst.msk [vmem:[#allocation2 + $0x125] sm:$0x1] %vm264, %v446
        %464 = vst.msk [vmem:[#allocation2 + $0x155] sm:$0x1] %vm264, %v448
        %465 = vrot.lane.b32.xlu0 %v276, 80
        %v466 = vpop.permute.xlu0 %465
        %467 = vrot.lane.b32.xlu0 %v280, 80
        %v468 = vpop.permute.xlu0 %467
        %469 = vrot.lane.b32.xlu0 %v284, 80
        %v470 = vpop.permute.xlu0 %469
        %471 = vrot.lane.b32.xlu0 %v288, 80
        %v472 = vpop.permute.xlu0 %471
        %473 = vrot.lane.b32.xlu0 %v292, 80
        %v474 = vpop.permute.xlu0 %473
        %475 = vrot.lane.b32.xlu0 %v296, 80
        %v476 = vpop.permute.xlu0 %475
        %477 = vrot.lane.b32.xlu0 %v300, 80
        %v478 = vpop.permute.xlu0 %477
        %479 = vrot.lane.b32.xlu0 %v304, 80
        %v480 = vpop.permute.xlu0 %479
        %489 = vst.msk [vmem:[#allocation2 + $0x6] sm:$0x1] %vm264, %v466
        %490 = vst.msk [vmem:[#allocation2 + $0x36] sm:$0x1] %vm264, %v468
        %491 = vst.msk [vmem:[#allocation2 + $0x66] sm:$0x1] %vm264, %v470
        %492 = vst.msk [vmem:[#allocation2 + $0x96] sm:$0x1] %vm264, %v472
        %493 = vst.msk [vmem:[#allocation2 + $0xc6] sm:$0x1] %vm264, %v474
        %494 = vst.msk [vmem:[#allocation2 + $0xf6] sm:$0x1] %vm264, %v476
        %495 = vst.msk [vmem:[#allocation2 + $0x126] sm:$0x1] %vm264, %v478
        %496 = vst.msk [vmem:[#allocation2 + $0x156] sm:$0x1] %vm264, %v480
        %497 = vrot.lane.b32.xlu0 %v276, 72
        %v498 = vpop.permute.xlu0 %497
        %499 = vrot.lane.b32.xlu0 %v280, 72
        %v500 = vpop.permute.xlu0 %499
        %501 = vrot.lane.b32.xlu0 %v284, 72
        %v502 = vpop.permute.xlu0 %501
        %503 = vrot.lane.b32.xlu0 %v288, 72
        %v504 = vpop.permute.xlu0 %503
        %505 = vrot.lane.b32.xlu0 %v292, 72
        %v506 = vpop.permute.xlu0 %505
        %507 = vrot.lane.b32.xlu0 %v296, 72
        %v508 = vpop.permute.xlu0 %507
        %509 = vrot.lane.b32.xlu0 %v300, 72
        %v510 = vpop.permute.xlu0 %509
        %511 = vrot.lane.b32.xlu0 %v304, 72
        %v512 = vpop.permute.xlu0 %511
        %521 = vst.msk [vmem:[#allocation2 + $0x7] sm:$0x1] %vm264, %v498
        %522 = vst.msk [vmem:[#allocation2 + $0x37] sm:$0x1] %vm264, %v500
        %523 = vst.msk [vmem:[#allocation2 + $0x67] sm:$0x1] %vm264, %v502
        %524 = vst.msk [vmem:[#allocation2 + $0x97] sm:$0x1] %vm264, %v504
        %525 = vst.msk [vmem:[#allocation2 + $0xc7] sm:$0x1] %vm264, %v506
        %526 = vst.msk [vmem:[#allocation2 + $0xf7] sm:$0x1] %vm264, %v508
        %527 = vst.msk [vmem:[#allocation2 + $0x127] sm:$0x1] %vm264, %v510
        %528 = vst.msk [vmem:[#allocation2 + $0x157] sm:$0x1] %vm264, %v512
        %v529 = vld [vmem:[%s177 + $0x1] sm:$0xff]
        %v531 = vcombine.high %v529, %v529
        %v533 = vunpack.c.l.s4 1966171168
        %v534 = vunpack.c.0.s8 %v533
        %v535 = vlaneseq
        %v536 = vshrl.u32 %v535, 7
        %v537 = vsub.s32 %v534, %v536
        %v538 = vrot.slane %v529, %v537
        %v540 = vunpack.c.l.s4 1966171168
        %v541 = vunpack.c.0.s8 %v540
        %v542 = vlaneseq
        %v543 = vshrl.u32 %v542, 7
        %v544 = vsub.s32 %v541, %v543
        %v545 = vrot.slane %v531, %v544
        %v546 = vcombine.high %v538, %v538
        %v547 = vcombine.high %v545, %v545
        %v549 = vunpack.c.l.s4 1966171168
        %v550 = vunpack.c.0.s8 %v549
        %v551 = vlaneseq
        %v552 = vshrl.u32 %v551, 7
        %v553 = vsub.s32 %v550, %v552
        %v554 = vrot.slane %v538, %v553
        %v556 = vunpack.c.l.s4 1966171168
        %v557 = vunpack.c.0.s8 %v556
        %v558 = vlaneseq
        %v559 = vshrl.u32 %v558, 7
        %v560 = vsub.s32 %v557, %v559
        %v561 = vrot.slane %v545, %v560
        %v563 = vunpack.c.l.s4 1966171168
        %v564 = vunpack.c.0.s8 %v563
        %v565 = vlaneseq
        %v566 = vshrl.u32 %v565, 7
        %v567 = vsub.s32 %v564, %v566
        %v568 = vrot.slane %v546, %v567
        %v570 = vunpack.c.l.s4 1966171168
        %v571 = vunpack.c.0.s8 %v570
        %v572 = vlaneseq
        %v573 = vshrl.u32 %v572, 7
        %v574 = vsub.s32 %v571, %v573
        %v575 = vrot.slane %v547, %v574
        %v576 = vcombine.high %v554, %v554
        %v577 = vcombine.high %v561, %v561
        %v578 = vcombine.high %v568, %v568
        %v579 = vcombine.high %v575, %v575
        %v580 = vlaneseq
        %v581 = vshrl.u32 %v580, 7
        %v582 = vsub.s32 0, %v581
        %v583 = vrot.slane %v554, %v582
        %v584 = vlaneseq
        %v585 = vshrl.u32 %v584, 7
        %v586 = vsub.s32 0, %v585
        %v587 = vrot.slane %v568, %v586
        %v588 = vlaneseq
        %v589 = vshrl.u32 %v588, 7
        %v590 = vsub.s32 0, %v589
        %v591 = vrot.slane %v576, %v590
        %v592 = vlaneseq
        %v593 = vshrl.u32 %v592, 7
        %v594 = vsub.s32 0, %v593
        %v595 = vrot.slane %v578, %v594
        %v596 = vlaneseq
        %v597 = vshrl.u32 %v596, 7
        %v598 = vsub.s32 0, %v597
        %v599 = vrot.slane %v561, %v598
        %v600 = vlaneseq
        %v601 = vshrl.u32 %v600, 7
        %v602 = vsub.s32 0, %v601
        %v603 = vrot.slane %v575, %v602
        %v604 = vlaneseq
        %v605 = vshrl.u32 %v604, 7
        %v606 = vsub.s32 0, %v605
        %v607 = vrot.slane %v577, %v606
        %v608 = vlaneseq
        %v609 = vshrl.u32 %v608, 7
        %v610 = vsub.s32 0, %v609
        %v611 = vrot.slane %v579, %v610
        %612 = vrot.lane.b32.xlu0 %v583, 72
        %v613 = vpop.permute.xlu0 %612
        %614 = vrot.lane.b32.xlu0 %v587, 72
        %v615 = vpop.permute.xlu0 %614
        %616 = vrot.lane.b32.xlu0 %v591, 72
        %v617 = vpop.permute.xlu0 %616
        %618 = vrot.lane.b32.xlu0 %v595, 72
        %v619 = vpop.permute.xlu0 %618
        %620 = vrot.lane.b32.xlu0 %v599, 72
        %v621 = vpop.permute.xlu0 %620
        %622 = vrot.lane.b32.xlu0 %v603, 72
        %v623 = vpop.permute.xlu0 %622
        %624 = vrot.lane.b32.xlu0 %v607, 72
        %v625 = vpop.permute.xlu0 %624
        %626 = vrot.lane.b32.xlu0 %v611, 72
        %v627 = vpop.permute.xlu0 %626
        %vm636 = vcmask 1040960
        %637 = vst.msk [vmem:[#allocation2] sm:$0x1] %vm636, %v613
        %vm638 = vcmask 122880
        %639 = vst.msk [vmem:[#allocation2 + $0x8] sm:$0x1] %vm638, %v613
        %640 = vst.msk [vmem:[#allocation2 + $0x30] sm:$0x1] %vm636, %v615
        %641 = vst.msk [vmem:[#allocation2 + $0x38] sm:$0x1] %vm638, %v615
        %642 = vst.msk [vmem:[#allocation2 + $0x60] sm:$0x1] %vm636, %v617
        %643 = vst.msk [vmem:[#allocation2 + $0x68] sm:$0x1] %vm638, %v617
        %644 = vst.msk [vmem:[#allocation2 + $0x90] sm:$0x1] %vm636, %v619
        %645 = vst.msk [vmem:[#allocation2 + $0x98] sm:$0x1] %vm638, %v619
        %646 = vst.msk [vmem:[#allocation2 + $0xc0] sm:$0x1] %vm636, %v621
        %647 = vst.msk [vmem:[#allocation2 + $0xc8] sm:$0x1] %vm638, %v621
        %648 = vst.msk [vmem:[#allocation2 + $0xf0] sm:$0x1] %vm636, %v623
        %649 = vst.msk [vmem:[#allocation2 + $0xf8] sm:$0x1] %vm638, %v623
        %650 = vst.msk [vmem:[#allocation2 + $0x120] sm:$0x1] %vm636, %v625
        %651 = vst.msk [vmem:[#allocation2 + $0x128] sm:$0x1] %vm638, %v625
        %652 = vst.msk [vmem:[#allocation2 + $0x150] sm:$0x1] %vm636, %v627
        %653 = vst.msk [vmem:[#allocation2 + $0x158] sm:$0x1] %vm638, %v627
        %654 = vrot.lane.b32.xlu0 %v583, 64
        %v655 = vpop.permute.xlu0 %654
        %656 = vrot.lane.b32.xlu0 %v587, 64
        %v657 = vpop.permute.xlu0 %656
        %658 = vrot.lane.b32.xlu0 %v591, 64
        %v659 = vpop.permute.xlu0 %658
        %660 = vrot.lane.b32.xlu0 %v595, 64
        %v661 = vpop.permute.xlu0 %660
        %662 = vrot.lane.b32.xlu0 %v599, 64
        %v663 = vpop.permute.xlu0 %662
        %664 = vrot.lane.b32.xlu0 %v603, 64
        %v665 = vpop.permute.xlu0 %664
        %666 = vrot.lane.b32.xlu0 %v607, 64
        %v667 = vpop.permute.xlu0 %666
        %668 = vrot.lane.b32.xlu0 %v611, 64
        %v669 = vpop.permute.xlu0 %668
        %678 = vst.msk [vmem:[#allocation2 + $0x1] sm:$0x1] %vm636, %v655
        %679 = vst.msk [vmem:[#allocation2 + $0x9] sm:$0x1] %vm638, %v655
        %680 = vst.msk [vmem:[#allocation2 + $0x31] sm:$0x1] %vm636, %v657
        %681 = vst.msk [vmem:[#allocation2 + $0x39] sm:$0x1] %vm638, %v657
        %682 = vst.msk [vmem:[#allocation2 + $0x61] sm:$0x1] %vm636, %v659
        %683 = vst.msk [vmem:[#allocation2 + $0x69] sm:$0x1] %vm638, %v659
        %684 = vst.msk [vmem:[#allocation2 + $0x91] sm:$0x1] %vm636, %v661
        %685 = vst.msk [vmem:[#allocation2 + $0x99] sm:$0x1] %vm638, %v661
        %686 = vst.msk [vmem:[#allocation2 + $0xc1] sm:$0x1] %vm636, %v663
        %687 = vst.msk [vmem:[#allocation2 + $0xc9] sm:$0x1] %vm638, %v663
        %688 = vst.msk [vmem:[#allocation2 + $0xf1] sm:$0x1] %vm636, %v665
        %689 = vst.msk [vmem:[#allocation2 + $0xf9] sm:$0x1] %vm638, %v665
        %690 = vst.msk [vmem:[#allocation2 + $0x121] sm:$0x1] %vm636, %v667
        %691 = vst.msk [vmem:[#allocation2 + $0x129] sm:$0x1] %vm638, %v667
        %692 = vst.msk [vmem:[#allocation2 + $0x151] sm:$0x1] %vm636, %v669
        %693 = vst.msk [vmem:[#allocation2 + $0x159] sm:$0x1] %vm638, %v669
        %694 = vrot.lane.b32.xlu0 %v583, 56
        %v695 = vpop.permute.xlu0 %694
        %696 = vrot.lane.b32.xlu0 %v587, 56
        %v697 = vpop.permute.xlu0 %696
        %698 = vrot.lane.b32.xlu0 %v591, 56
        %v699 = vpop.permute.xlu0 %698
        %700 = vrot.lane.b32.xlu0 %v595, 56
        %v701 = vpop.permute.xlu0 %700
        %702 = vrot.lane.b32.xlu0 %v599, 56
        %v703 = vpop.permute.xlu0 %702
        %704 = vrot.lane.b32.xlu0 %v603, 56
        %v705 = vpop.permute.xlu0 %704
        %706 = vrot.lane.b32.xlu0 %v607, 56
        %v707 = vpop.permute.xlu0 %706
        %708 = vrot.lane.b32.xlu0 %v611, 56
        %v709 = vpop.permute.xlu0 %708
        %718 = vst.msk [vmem:[#allocation2 + $0x2] sm:$0x1] %vm636, %v695
        %719 = vst.msk [vmem:[#allocation2 + $0xa] sm:$0x1] %vm638, %v695
        %720 = vst.msk [vmem:[#allocation2 + $0x32] sm:$0x1] %vm636, %v697
        %721 = vst.msk [vmem:[#allocation2 + $0x3a] sm:$0x1] %vm638, %v697
        %722 = vst.msk [vmem:[#allocation2 + $0x62] sm:$0x1] %vm636, %v699
        %723 = vst.msk [vmem:[#allocation2 + $0x6a] sm:$0x1] %vm638, %v699
        %724 = vst.msk [vmem:[#allocation2 + $0x92] sm:$0x1] %vm636, %v701
        %725 = vst.msk [vmem:[#allocation2 + $0x9a] sm:$0x1] %vm638, %v701
        %726 = vst.msk [vmem:[#allocation2 + $0xc2] sm:$0x1] %vm636, %v703
        %727 = vst.msk [vmem:[#allocation2 + $0xca] sm:$0x1] %vm638, %v703
        %728 = vst.msk [vmem:[#allocation2 + $0xf2] sm:$0x1] %vm636, %v705
        %729 = vst.msk [vmem:[#allocation2 + $0xfa] sm:$0x1] %vm638, %v705
        %730 = vst.msk [vmem:[#allocation2 + $0x122] sm:$0x1] %vm636, %v707
        %731 = vst.msk [vmem:[#allocation2 + $0x12a] sm:$0x1] %vm638, %v707
        %732 = vst.msk [vmem:[#allocation2 + $0x152] sm:$0x1] %vm636, %v709
        %733 = vst.msk [vmem:[#allocation2 + $0x15a] sm:$0x1] %vm638, %v709
        %734 = vrot.lane.b32.xlu0 %v583, 48
        %v735 = vpop.permute.xlu0 %734
        %736 = vrot.lane.b32.xlu0 %v587, 48
        %v737 = vpop.permute.xlu0 %736
        %738 = vrot.lane.b32.xlu0 %v591, 48
        %v739 = vpop.permute.xlu0 %738
        %740 = vrot.lane.b32.xlu0 %v595, 48
        %v741 = vpop.permute.xlu0 %740
        %742 = vrot.lane.b32.xlu0 %v599, 48
        %v743 = vpop.permute.xlu0 %742
        %744 = vrot.lane.b32.xlu0 %v603, 48
        %v745 = vpop.permute.xlu0 %744
        %746 = vrot.lane.b32.xlu0 %v607, 48
        %v747 = vpop.permute.xlu0 %746
        %748 = vrot.lane.b32.xlu0 %v611, 48
        %v749 = vpop.permute.xlu0 %748
        %758 = vst.msk [vmem:[#allocation2 + $0x3] sm:$0x1] %vm636, %v735
        %759 = vst.msk [vmem:[#allocation2 + $0xb] sm:$0x1] %vm638, %v735
        %760 = vst.msk [vmem:[#allocation2 + $0x33] sm:$0x1] %vm636, %v737
        %761 = vst.msk [vmem:[#allocation2 + $0x3b] sm:$0x1] %vm638, %v737
        %762 = vst.msk [vmem:[#allocation2 + $0x63] sm:$0x1] %vm636, %v739
        %763 = vst.msk [vmem:[#allocation2 + $0x6b] sm:$0x1] %vm638, %v739
        %764 = vst.msk [vmem:[#allocation2 + $0x93] sm:$0x1] %vm636, %v741
        %765 = vst.msk [vmem:[#allocation2 + $0x9b] sm:$0x1] %vm638, %v741
        %766 = vst.msk [vmem:[#allocation2 + $0xc3] sm:$0x1] %vm636, %v743
        %767 = vst.msk [vmem:[#allocation2 + $0xcb] sm:$0x1] %vm638, %v743
        %768 = vst.msk [vmem:[#allocation2 + $0xf3] sm:$0x1] %vm636, %v745
        %769 = vst.msk [vmem:[#allocation2 + $0xfb] sm:$0x1] %vm638, %v745
        %770 = vst.msk [vmem:[#allocation2 + $0x123] sm:$0x1] %vm636, %v747
        %771 = vst.msk [vmem:[#allocation2 + $0x12b] sm:$0x1] %vm638, %v747
        %772 = vst.msk [vmem:[#allocation2 + $0x153] sm:$0x1] %vm636, %v749
        %773 = vst.msk [vmem:[#allocation2 + $0x15b] sm:$0x1] %vm638, %v749
        %774 = vrot.lane.b32.xlu0 %v583, 40
        %v775 = vpop.permute.xlu0 %774
        %776 = vrot.lane.b32.xlu0 %v587, 40
        %v777 = vpop.permute.xlu0 %776
        %778 = vrot.lane.b32.xlu0 %v591, 40
        %v779 = vpop.permute.xlu0 %778
        %780 = vrot.lane.b32.xlu0 %v595, 40
        %v781 = vpop.permute.xlu0 %780
        %782 = vrot.lane.b32.xlu0 %v599, 40
        %v783 = vpop.permute.xlu0 %782
        %784 = vrot.lane.b32.xlu0 %v603, 40
        %v785 = vpop.permute.xlu0 %784
        %786 = vrot.lane.b32.xlu0 %v607, 40
        %v787 = vpop.permute.xlu0 %786
        %788 = vrot.lane.b32.xlu0 %v611, 40
        %v789 = vpop.permute.xlu0 %788
        %798 = vst.msk [vmem:[#allocation2 + $0x4] sm:$0x1] %vm636, %v775
        %799 = vst.msk [vmem:[#allocation2 + $0xc] sm:$0x1] %vm638, %v775
        %800 = vst.msk [vmem:[#allocation2 + $0x34] sm:$0x1] %vm636, %v777
        %801 = vst.msk [vmem:[#allocation2 + $0x3c] sm:$0x1] %vm638, %v777
        %802 = vst.msk [vmem:[#allocation2 + $0x64] sm:$0x1] %vm636, %v779
        %803 = vst.msk [vmem:[#allocation2 + $0x6c] sm:$0x1] %vm638, %v779
        %804 = vst.msk [vmem:[#allocation2 + $0x94] sm:$0x1] %vm636, %v781
        %805 = vst.msk [vmem:[#allocation2 + $0x9c] sm:$0x1] %vm638, %v781
        %806 = vst.msk [vmem:[#allocation2 + $0xc4] sm:$0x1] %vm636, %v783
        %807 = vst.msk [vmem:[#allocation2 + $0xcc] sm:$0x1] %vm638, %v783
        %808 = vst.msk [vmem:[#allocation2 + $0xf4] sm:$0x1] %vm636, %v785
        %809 = vst.msk [vmem:[#allocation2 + $0xfc] sm:$0x1] %vm638, %v785
        %810 = vst.msk [vmem:[#allocation2 + $0x124] sm:$0x1] %vm636, %v787
        %811 = vst.msk [vmem:[#allocation2 + $0x12c] sm:$0x1] %vm638, %v787
        %812 = vst.msk [vmem:[#allocation2 + $0x154] sm:$0x1] %vm636, %v789
        %813 = vst.msk [vmem:[#allocation2 + $0x15c] sm:$0x1] %vm638, %v789
        %814 = vrot.lane.b32.xlu0 %v583, 32
        %v815 = vpop.permute.xlu0 %814
        %816 = vrot.lane.b32.xlu0 %v587, 32
        %v817 = vpop.permute.xlu0 %816
        %818 = vrot.lane.b32.xlu0 %v591, 32
        %v819 = vpop.permute.xlu0 %818
        %820 = vrot.lane.b32.xlu0 %v595, 32
        %v821 = vpop.permute.xlu0 %820
        %822 = vrot.lane.b32.xlu0 %v599, 32
        %v823 = vpop.permute.xlu0 %822
        %824 = vrot.lane.b32.xlu0 %v603, 32
        %v825 = vpop.permute.xlu0 %824
        %826 = vrot.lane.b32.xlu0 %v607, 32
        %v827 = vpop.permute.xlu0 %826
        %828 = vrot.lane.b32.xlu0 %v611, 32
        %v829 = vpop.permute.xlu0 %828
        %838 = vst.msk [vmem:[#allocation2 + $0x5] sm:$0x1] %vm636, %v815
        %839 = vst.msk [vmem:[#allocation2 + $0xd] sm:$0x1] %vm638, %v815
        %840 = vst.msk [vmem:[#allocation2 + $0x35] sm:$0x1] %vm636, %v817
        %841 = vst.msk [vmem:[#allocation2 + $0x3d] sm:$0x1] %vm638, %v817
        %842 = vst.msk [vmem:[#allocation2 + $0x65] sm:$0x1] %vm636, %v819
        %843 = vst.msk [vmem:[#allocation2 + $0x6d] sm:$0x1] %vm638, %v819
        %844 = vst.msk [vmem:[#allocation2 + $0x95] sm:$0x1] %vm636, %v821
        %845 = vst.msk [vmem:[#allocation2 + $0x9d] sm:$0x1] %vm638, %v821
        %846 = vst.msk [vmem:[#allocation2 + $0xc5] sm:$0x1] %vm636, %v823
        %847 = vst.msk [vmem:[#allocation2 + $0xcd] sm:$0x1] %vm638, %v823
        %848 = vst.msk [vmem:[#allocation2 + $0xf5] sm:$0x1] %vm636, %v825
        %849 = vst.msk [vmem:[#allocation2 + $0xfd] sm:$0x1] %vm638, %v825
        %850 = vst.msk [vmem:[#allocation2 + $0x125] sm:$0x1] %vm636, %v827
        %851 = vst.msk [vmem:[#allocation2 + $0x12d] sm:$0x1] %vm638, %v827
        %852 = vst.msk [vmem:[#allocation2 + $0x155] sm:$0x1] %vm636, %v829
        %853 = vst.msk [vmem:[#allocation2 + $0x15d] sm:$0x1] %vm638, %v829
        %854 = vrot.lane.b32.xlu0 %v583, 24
        %v855 = vpop.permute.xlu0 %854
        %856 = vrot.lane.b32.xlu0 %v587, 24
        %v857 = vpop.permute.xlu0 %856
        %858 = vrot.lane.b32.xlu0 %v591, 24
        %v859 = vpop.permute.xlu0 %858
        %860 = vrot.lane.b32.xlu0 %v595, 24
        %v861 = vpop.permute.xlu0 %860
        %862 = vrot.lane.b32.xlu0 %v599, 24
        %v863 = vpop.permute.xlu0 %862
        %864 = vrot.lane.b32.xlu0 %v603, 24
        %v865 = vpop.permute.xlu0 %864
        %866 = vrot.lane.b32.xlu0 %v607, 24
        %v867 = vpop.permute.xlu0 %866
        %868 = vrot.lane.b32.xlu0 %v611, 24
        %v869 = vpop.permute.xlu0 %868
        %878 = vst.msk [vmem:[#allocation2 + $0x6] sm:$0x1] %vm636, %v855
        %879 = vst.msk [vmem:[#allocation2 + $0xe] sm:$0x1] %vm638, %v855
        %880 = vst.msk [vmem:[#allocation2 + $0x36] sm:$0x1] %vm636, %v857
        %881 = vst.msk [vmem:[#allocation2 + $0x3e] sm:$0x1] %vm638, %v857
        %882 = vst.msk [vmem:[#allocation2 + $0x66] sm:$0x1] %vm636, %v859
        %883 = vst.msk [vmem:[#allocation2 + $0x6e] sm:$0x1] %vm638, %v859
        %884 = vst.msk [vmem:[#allocation2 + $0x96] sm:$0x1] %vm636, %v861
        %885 = vst.msk [vmem:[#allocation2 + $0x9e] sm:$0x1] %vm638, %v861
        %886 = vst.msk [vmem:[#allocation2 + $0xc6] sm:$0x1] %vm636, %v863
        %887 = vst.msk [vmem:[#allocation2 + $0xce] sm:$0x1] %vm638, %v863
        %888 = vst.msk [vmem:[#allocation2 + $0xf6] sm:$0x1] %vm636, %v865
        %889 = vst.msk [vmem:[#allocation2 + $0xfe] sm:$0x1] %vm638, %v865
        %890 = vst.msk [vmem:[#allocation2 + $0x126] sm:$0x1] %vm636, %v867
        %891 = vst.msk [vmem:[#allocation2 + $0x12e] sm:$0x1] %vm638, %v867
        %892 = vst.msk [vmem:[#allocation2 + $0x156] sm:$0x1] %vm636, %v869
        %893 = vst.msk [vmem:[#allocation2 + $0x15e] sm:$0x1] %vm638, %v869
        %894 = vrot.lane.b32.xlu0 %v583, 16
        %v895 = vpop.permute.xlu0 %894
        %896 = vrot.lane.b32.xlu0 %v587, 16
        %v897 = vpop.permute.xlu0 %896
        %898 = vrot.lane.b32.xlu0 %v591, 16
        %v899 = vpop.permute.xlu0 %898
        %900 = vrot.lane.b32.xlu0 %v595, 16
        %v901 = vpop.permute.xlu0 %900
        %902 = vrot.lane.b32.xlu0 %v599, 16
        %v903 = vpop.permute.xlu0 %902
        %904 = vrot.lane.b32.xlu0 %v603, 16
        %v905 = vpop.permute.xlu0 %904
        %906 = vrot.lane.b32.xlu0 %v607, 16
        %v907 = vpop.permute.xlu0 %906
        %908 = vrot.lane.b32.xlu0 %v611, 16
        %v909 = vpop.permute.xlu0 %908
        %918 = vst.msk [vmem:[#allocation2 + $0x7] sm:$0x1] %vm636, %v895
        %919 = vst.msk [vmem:[#allocation2 + $0xf] sm:$0x1] %vm638, %v895
        %920 = vst.msk [vmem:[#allocation2 + $0x37] sm:$0x1] %vm636, %v897
        %921 = vst.msk [vmem:[#allocation2 + $0x3f] sm:$0x1] %vm638, %v897
        %922 = vst.msk [vmem:[#allocation2 + $0x67] sm:$0x1] %vm636, %v899
        %923 = vst.msk [vmem:[#allocation2 + $0x6f] sm:$0x1] %vm638, %v899
        %924 = vst.msk [vmem:[#allocation2 + $0x97] sm:$0x1] %vm636, %v901
        %925 = vst.msk [vmem:[#allocation2 + $0x9f] sm:$0x1] %vm638, %v901
        %926 = vst.msk [vmem:[#allocation2 + $0xc7] sm:$0x1] %vm636, %v903
        %927 = vst.msk [vmem:[#allocation2 + $0xcf] sm:$0x1] %vm638, %v903
        %928 = vst.msk [vmem:[#allocation2 + $0xf7] sm:$0x1] %vm636, %v905
        %929 = vst.msk [vmem:[#allocation2 + $0xff] sm:$0x1] %vm638, %v905
        %930 = vst.msk [vmem:[#allocation2 + $0x127] sm:$0x1] %vm636, %v907
        %931 = vst.msk [vmem:[#allocation2 + $0x12f] sm:$0x1] %vm638, %v907
        %932 = vst.msk [vmem:[#allocation2 + $0x157] sm:$0x1] %vm636, %v909
        %933 = vst.msk [vmem:[#allocation2 + $0x15f] sm:$0x1] %vm638, %v909
        %v934 = vld [vmem:[%s177 + $0x2] sm:$0xff]
        %v936 = vcombine.high %v934, %v934
        %v938 = vunpack.c.l.s4 1966171168
        %v939 = vunpack.c.0.s8 %v938
        %v940 = vlaneseq
        %v941 = vshrl.u32 %v940, 7
        %v942 = vsub.s32 %v939, %v941
        %v943 = vrot.slane %v934, %v942
        %v945 = vunpack.c.l.s4 1966171168
        %v946 = vunpack.c.0.s8 %v945
        %v947 = vlaneseq
        %v948 = vshrl.u32 %v947, 7
        %v949 = vsub.s32 %v946, %v948
        %v950 = vrot.slane %v936, %v949
        %v951 = vcombine.high %v943, %v943
        %v952 = vcombine.high %v950, %v950
        %v954 = vunpack.c.l.s4 1966171168
        %v955 = vunpack.c.0.s8 %v954
        %v956 = vlaneseq
        %v957 = vshrl.u32 %v956, 7
        %v958 = vsub.s32 %v955, %v957
        %v959 = vrot.slane %v943, %v958
        %v961 = vunpack.c.l.s4 1966171168
        %v962 = vunpack.c.0.s8 %v961
        %v963 = vlaneseq
        %v964 = vshrl.u32 %v963, 7
        %v965 = vsub.s32 %v962, %v964
        %v966 = vrot.slane %v950, %v965
        %v968 = vunpack.c.l.s4 1966171168
        %v969 = vunpack.c.0.s8 %v968
        %v970 = vlaneseq
        %v971 = vshrl.u32 %v970, 7
        %v972 = vsub.s32 %v969, %v971
        %v973 = vrot.slane %v951, %v972
        %v975 = vunpack.c.l.s4 1966171168
        %v976 = vunpack.c.0.s8 %v975
        %v977 = vlaneseq
        %v978 = vshrl.u32 %v977, 7
        %v979 = vsub.s32 %v976, %v978
        %v980 = vrot.slane %v952, %v979
        %v981 = vcombine.high %v959, %v959
        %v982 = vcombine.high %v966, %v966
        %v983 = vcombine.high %v973, %v973
        %v984 = vcombine.high %v980, %v980
        %v985 = vlaneseq
        %v986 = vshrl.u32 %v985, 7
        %v987 = vsub.s32 0, %v986
        %v988 = vrot.slane %v959, %v987
        %v989 = vlaneseq
        %v990 = vshrl.u32 %v989, 7
        %v991 = vsub.s32 0, %v990
        %v992 = vrot.slane %v973, %v991
        %v993 = vlaneseq
        %v994 = vshrl.u32 %v993, 7
        %v995 = vsub.s32 0, %v994
        %v996 = vrot.slane %v981, %v995
        %v997 = vlaneseq
        %v998 = vshrl.u32 %v997, 7
        %v999 = vsub.s32 0, %v998
        %v1000 = vrot.slane %v983, %v999
        %v1001 = vlaneseq
        %v1002 = vshrl.u32 %v1001, 7
        %v1003 = vsub.s32 0, %v1002
        %v1004 = vrot.slane %v966, %v1003
        %v1005 = vlaneseq
        %v1006 = vshrl.u32 %v1005, 7
        %v1007 = vsub.s32 0, %v1006
        %v1008 = vrot.slane %v980, %v1007
        %v1009 = vlaneseq
        %v1010 = vshrl.u32 %v1009, 7
        %v1011 = vsub.s32 0, %v1010
        %v1012 = vrot.slane %v982, %v1011
        %v1013 = vlaneseq
        %v1014 = vshrl.u32 %v1013, 7
        %v1015 = vsub.s32 0, %v1014
        %v1016 = vrot.slane %v984, %v1015
        %1017 = vrot.lane.b32.xlu0 %v988, 16
        %v1018 = vpop.permute.xlu0 %1017
        %1019 = vrot.lane.b32.xlu0 %v992, 16
        %v1020 = vpop.permute.xlu0 %1019
        %1021 = vrot.lane.b32.xlu0 %v996, 16
        %v1022 = vpop.permute.xlu0 %1021
        %1023 = vrot.lane.b32.xlu0 %v1000, 16
        %v1024 = vpop.permute.xlu0 %1023
        %1025 = vrot.lane.b32.xlu0 %v1004, 16
        %v1026 = vpop.permute.xlu0 %1025
        %1027 = vrot.lane.b32.xlu0 %v1008, 16
        %v1028 = vpop.permute.xlu0 %1027
        %1029 = vrot.lane.b32.xlu0 %v1012, 16
        %v1030 = vpop.permute.xlu0 %1029
        %1031 = vrot.lane.b32.xlu0 %v1016, 16
        %v1032 = vpop.permute.xlu0 %1031
        %vm1041 = vcmask 712832
        %1042 = vst.msk [vmem:[#allocation2 + $0x8] sm:$0x1] %vm1041, %v1018
        %1043 = vst.msk [vmem:[#allocation2 + $0x38] sm:$0x1] %vm1041, %v1020
        %1044 = vst.msk [vmem:[#allocation2 + $0x68] sm:$0x1] %vm1041, %v1022
        %1045 = vst.msk [vmem:[#allocation2 + $0x98] sm:$0x1] %vm1041, %v1024
        %1046 = vst.msk [vmem:[#allocation2 + $0xc8] sm:$0x1] %vm1041, %v1026
        %1047 = vst.msk [vmem:[#allocation2 + $0xf8] sm:$0x1] %vm1041, %v1028
        %1048 = vst.msk [vmem:[#allocation2 + $0x128] sm:$0x1] %vm1041, %v1030
        %1049 = vst.msk [vmem:[#allocation2 + $0x158] sm:$0x1] %vm1041, %v1032
        %1050 = vrot.lane.b32.xlu0 %v988, 8
        %v1051 = vpop.permute.xlu0 %1050
        %1052 = vrot.lane.b32.xlu0 %v992, 8
        %v1053 = vpop.permute.xlu0 %1052
        %1054 = vrot.lane.b32.xlu0 %v996, 8
        %v1055 = vpop.permute.xlu0 %1054
        %1056 = vrot.lane.b32.xlu0 %v1000, 8
        %v1057 = vpop.permute.xlu0 %1056
        %1058 = vrot.lane.b32.xlu0 %v1004, 8
        %v1059 = vpop.permute.xlu0 %1058
        %1060 = vrot.lane.b32.xlu0 %v1008, 8
        %v1061 = vpop.permute.xlu0 %1060
        %1062 = vrot.lane.b32.xlu0 %v1012, 8
        %v1063 = vpop.permute.xlu0 %1062
        %1064 = vrot.lane.b32.xlu0 %v1016, 8
        %v1065 = vpop.permute.xlu0 %1064
        %1074 = vst.msk [vmem:[#allocation2 + $0x9] sm:$0x1] %vm1041, %v1051
        %1075 = vst.msk [vmem:[#allocation2 + $0x39] sm:$0x1] %vm1041, %v1053
        %1076 = vst.msk [vmem:[#allocation2 + $0x69] sm:$0x1] %vm1041, %v1055
        %1077 = vst.msk [vmem:[#allocation2 + $0x99] sm:$0x1] %vm1041, %v1057
        %1078 = vst.msk [vmem:[#allocation2 + $0xc9] sm:$0x1] %vm1041, %v1059
        %1079 = vst.msk [vmem:[#allocation2 + $0xf9] sm:$0x1] %vm1041, %v1061
        %1080 = vst.msk [vmem:[#allocation2 + $0x129] sm:$0x1] %vm1041, %v1063
        %1081 = vst.msk [vmem:[#allocation2 + $0x159] sm:$0x1] %vm1041, %v1065
        %1090 = vst.msk [vmem:[#allocation2 + $0xa] sm:$0x1] %vm1041, %v959
        %1091 = vst.msk [vmem:[#allocation2 + $0x3a] sm:$0x1] %vm1041, %v973
        %1092 = vst.msk [vmem:[#allocation2 + $0x6a] sm:$0x1] %vm1041, %v981
        %1093 = vst.msk [vmem:[#allocation2 + $0x9a] sm:$0x1] %vm1041, %v983
        %1094 = vst.msk [vmem:[#allocation2 + $0xca] sm:$0x1] %vm1041, %v966
        %1095 = vst.msk [vmem:[#allocation2 + $0xfa] sm:$0x1] %vm1041, %v980
        %1096 = vst.msk [vmem:[#allocation2 + $0x12a] sm:$0x1] %vm1041, %v982
        %1097 = vst.msk [vmem:[#allocation2 + $0x15a] sm:$0x1] %vm1041, %v984
        %1098 = vrot.lane.b32.xlu0 %v988, 120
        %v1099 = vpop.permute.xlu0 %1098
        %1100 = vrot.lane.b32.xlu0 %v992, 120
        %v1101 = vpop.permute.xlu0 %1100
        %1102 = vrot.lane.b32.xlu0 %v996, 120
        %v1103 = vpop.permute.xlu0 %1102
        %1104 = vrot.lane.b32.xlu0 %v1000, 120
        %v1105 = vpop.permute.xlu0 %1104
        %1106 = vrot.lane.b32.xlu0 %v1004, 120
        %v1107 = vpop.permute.xlu0 %1106
        %1108 = vrot.lane.b32.xlu0 %v1008, 120
        %v1109 = vpop.permute.xlu0 %1108
        %1110 = vrot.lane.b32.xlu0 %v1012, 120
        %v1111 = vpop.permute.xlu0 %1110
        %1112 = vrot.lane.b32.xlu0 %v1016, 120
        %v1113 = vpop.permute.xlu0 %1112
        %1122 = vst.msk [vmem:[#allocation2 + $0xb] sm:$0x1] %vm1041, %v1099
        %1123 = vst.msk [vmem:[#allocation2 + $0x3b] sm:$0x1] %vm1041, %v1101
        %1124 = vst.msk [vmem:[#allocation2 + $0x6b] sm:$0x1] %vm1041, %v1103
        %1125 = vst.msk [vmem:[#allocation2 + $0x9b] sm:$0x1] %vm1041, %v1105
        %1126 = vst.msk [vmem:[#allocation2 + $0xcb] sm:$0x1] %vm1041, %v1107
        %1127 = vst.msk [vmem:[#allocation2 + $0xfb] sm:$0x1] %vm1041, %v1109
        %1128 = vst.msk [vmem:[#allocation2 + $0x12b] sm:$0x1] %vm1041, %v1111
        %1129 = vst.msk [vmem:[#allocation2 + $0x15b] sm:$0x1] %vm1041, %v1113
        %1130 = vrot.lane.b32.xlu0 %v988, 112
        %v1131 = vpop.permute.xlu0 %1130
        %1132 = vrot.lane.b32.xlu0 %v992, 112
        %v1133 = vpop.permute.xlu0 %1132
        %1134 = vrot.lane.b32.xlu0 %v996, 112
        %v1135 = vpop.permute.xlu0 %1134
        %1136 = vrot.lane.b32.xlu0 %v1000, 112
        %v1137 = vpop.permute.xlu0 %1136
        %1138 = vrot.lane.b32.xlu0 %v1004, 112
        %v1139 = vpop.permute.xlu0 %1138
        %1140 = vrot.lane.b32.xlu0 %v1008, 112
        %v1141 = vpop.permute.xlu0 %1140
        %1142 = vrot.lane.b32.xlu0 %v1012, 112
        %v1143 = vpop.permute.xlu0 %1142
        %1144 = vrot.lane.b32.xlu0 %v1016, 112
        %v1145 = vpop.permute.xlu0 %1144
        %1154 = vst.msk [vmem:[#allocation2 + $0xc] sm:$0x1] %vm1041, %v1131
        %1155 = vst.msk [vmem:[#allocation2 + $0x3c] sm:$0x1] %vm1041, %v1133
        %1156 = vst.msk [vmem:[#allocation2 + $0x6c] sm:$0x1] %vm1041, %v1135
        %1157 = vst.msk [vmem:[#allocation2 + $0x9c] sm:$0x1] %vm1041, %v1137
        %1158 = vst.msk [vmem:[#allocation2 + $0xcc] sm:$0x1] %vm1041, %v1139
        %1159 = vst.msk [vmem:[#allocation2 + $0xfc] sm:$0x1] %vm1041, %v1141
        %1160 = vst.msk [vmem:[#allocation2 + $0x12c] sm:$0x1] %vm1041, %v1143
        %1161 = vst.msk [vmem:[#allocation2 + $0x15c] sm:$0x1] %vm1041, %v1145
        %1162 = vrot.lane.b32.xlu0 %v988, 104
        %v1163 = vpop.permute.xlu0 %1162
        %1164 = vrot.lane.b32.xlu0 %v992, 104
        %v1165 = vpop.permute.xlu0 %1164
        %1166 = vrot.lane.b32.xlu0 %v996, 104
        %v1167 = vpop.permute.xlu0 %1166
        %1168 = vrot.lane.b32.xlu0 %v1000, 104
        %v1169 = vpop.permute.xlu0 %1168
        %1170 = vrot.lane.b32.xlu0 %v1004, 104
        %v1171 = vpop.permute.xlu0 %1170
        %1172 = vrot.lane.b32.xlu0 %v1008, 104
        %v1173 = vpop.permute.xlu0 %1172
        %1174 = vrot.lane.b32.xlu0 %v1012, 104
        %v1175 = vpop.permute.xlu0 %1174
        %1176 = vrot.lane.b32.xlu0 %v1016, 104
        %v1177 = vpop.permute.xlu0 %1176
        %1186 = vst.msk [vmem:[#allocation2 + $0xd] sm:$0x1] %vm1041, %v1163
        %1187 = vst.msk [vmem:[#allocation2 + $0x3d] sm:$0x1] %vm1041, %v1165
        %1188 = vst.msk [vmem:[#allocation2 + $0x6d] sm:$0x1] %vm1041, %v1167
        %1189 = vst.msk [vmem:[#allocation2 + $0x9d] sm:$0x1] %vm1041, %v1169
        %1190 = vst.msk [vmem:[#allocation2 + $0xcd] sm:$0x1] %vm1041, %v1171
        %1191 = vst.msk [vmem:[#allocation2 + $0xfd] sm:$0x1] %vm1041, %v1173
        %1192 = vst.msk [vmem:[#allocation2 + $0x12d] sm:$0x1] %vm1041, %v1175
        %1193 = vst.msk [vmem:[#allocation2 + $0x15d] sm:$0x1] %vm1041, %v1177
        %1194 = vrot.lane.b32.xlu0 %v988, 96
        %v1195 = vpop.permute.xlu0 %1194
        %1196 = vrot.lane.b32.xlu0 %v992, 96
        %v1197 = vpop.permute.xlu0 %1196
        %1198 = vrot.lane.b32.xlu0 %v996, 96
        %v1199 = vpop.permute.xlu0 %1198
        %1200 = vrot.lane.b32.xlu0 %v1000, 96
        %v1201 = vpop.permute.xlu0 %1200
        %1202 = vrot.lane.b32.xlu0 %v1004, 96
        %v1203 = vpop.permute.xlu0 %1202
        %1204 = vrot.lane.b32.xlu0 %v1008, 96
        %v1205 = vpop.permute.xlu0 %1204
        %1206 = vrot.lane.b32.xlu0 %v1012, 96
        %v1207 = vpop.permute.xlu0 %1206
        %1208 = vrot.lane.b32.xlu0 %v1016, 96
        %v1209 = vpop.permute.xlu0 %1208
        %1218 = vst.msk [vmem:[#allocation2 + $0xe] sm:$0x1] %vm1041, %v1195
        %1219 = vst.msk [vmem:[#allocation2 + $0x3e] sm:$0x1] %vm1041, %v1197
        %1220 = vst.msk [vmem:[#allocation2 + $0x6e] sm:$0x1] %vm1041, %v1199
        %1221 = vst.msk [vmem:[#allocation2 + $0x9e] sm:$0x1] %vm1041, %v1201
        %1222 = vst.msk [vmem:[#allocation2 + $0xce] sm:$0x1] %vm1041, %v1203
        %1223 = vst.msk [vmem:[#allocation2 + $0xfe] sm:$0x1] %vm1041, %v1205
        %1224 = vst.msk [vmem:[#allocation2 + $0x12e] sm:$0x1] %vm1041, %v1207
        %1225 = vst.msk [vmem:[#allocation2 + $0x15e] sm:$0x1] %vm1041, %v1209
        %1226 = vrot.lane.b32.xlu0 %v988, 88
        %v1227 = vpop.permute.xlu0 %1226
        %1228 = vrot.lane.b32.xlu0 %v992, 88
        %v1229 = vpop.permute.xlu0 %1228
        %1230 = vrot.lane.b32.xlu0 %v996, 88
        %v1231 = vpop.permute.xlu0 %1230
        %1232 = vrot.lane.b32.xlu0 %v1000, 88
        %v1233 = vpop.permute.xlu0 %1232
        %1234 = vrot.lane.b32.xlu0 %v1004, 88
        %v1235 = vpop.permute.xlu0 %1234
        %1236 = vrot.lane.b32.xlu0 %v1008, 88
        %v1237 = vpop.permute.xlu0 %1236
        %1238 = vrot.lane.b32.xlu0 %v1012, 88
        %v1239 = vpop.permute.xlu0 %1238
        %1240 = vrot.lane.b32.xlu0 %v1016, 88
        %v1241 = vpop.permute.xlu0 %1240
        %1250 = vst.msk [vmem:[#allocation2 + $0xf] sm:$0x1] %vm1041, %v1227
        %1251 = vst.msk [vmem:[#allocation2 + $0x3f] sm:$0x1] %vm1041, %v1229
        %1252 = vst.msk [vmem:[#allocation2 + $0x6f] sm:$0x1] %vm1041, %v1231
        %1253 = vst.msk [vmem:[#allocation2 + $0x9f] sm:$0x1] %vm1041, %v1233
        %1254 = vst.msk [vmem:[#allocation2 + $0xcf] sm:$0x1] %vm1041, %v1235
        %1255 = vst.msk [vmem:[#allocation2 + $0xff] sm:$0x1] %vm1041, %v1237
        %1256 = vst.msk [vmem:[#allocation2 + $0x12f] sm:$0x1] %vm1041, %v1239
        %1257 = vst.msk [vmem:[#allocation2 + $0x15f] sm:$0x1] %vm1041, %v1241
        %v1258 = vld [vmem:[%s177 + $0x3] sm:$0xff]
        %v1260 = vcombine.high %v1258, %v1258
        %v1262 = vunpack.c.l.s4 1966171168
        %v1263 = vunpack.c.0.s8 %v1262
        %v1264 = vlaneseq
        %v1265 = vshrl.u32 %v1264, 7
        %v1266 = vsub.s32 %v1263, %v1265
        %v1267 = vrot.slane %v1258, %v1266
        %v1269 = vunpack.c.l.s4 1966171168
        %v1270 = vunpack.c.0.s8 %v1269
        %v1271 = vlaneseq
        %v1272 = vshrl.u32 %v1271, 7
        %v1273 = vsub.s32 %v1270, %v1272
        %v1274 = vrot.slane %v1260, %v1273
        %v1275 = vcombine.high %v1267, %v1267
        %v1276 = vcombine.high %v1274, %v1274
        %v1278 = vunpack.c.l.s4 1966171168
        %v1279 = vunpack.c.0.s8 %v1278
        %v1280 = vlaneseq
        %v1281 = vshrl.u32 %v1280, 7
        %v1282 = vsub.s32 %v1279, %v1281
        %v1283 = vrot.slane %v1267, %v1282
        %v1285 = vunpack.c.l.s4 1966171168
        %v1286 = vunpack.c.0.s8 %v1285
        %v1287 = vlaneseq
        %v1288 = vshrl.u32 %v1287, 7
        %v1289 = vsub.s32 %v1286, %v1288
        %v1290 = vrot.slane %v1274, %v1289
        %v1292 = vunpack.c.l.s4 1966171168
        %v1293 = vunpack.c.0.s8 %v1292
        %v1294 = vlaneseq
        %v1295 = vshrl.u32 %v1294, 7
        %v1296 = vsub.s32 %v1293, %v1295
        %v1297 = vrot.slane %v1275, %v1296
        %v1299 = vunpack.c.l.s4 1966171168
        %v1300 = vunpack.c.0.s8 %v1299
        %v1301 = vlaneseq
        %v1302 = vshrl.u32 %v1301, 7
        %v1303 = vsub.s32 %v1300, %v1302
        %v1304 = vrot.slane %v1276, %v1303
        %v1305 = vcombine.high %v1283, %v1283
        %v1306 = vcombine.high %v1290, %v1290
        %v1307 = vcombine.high %v1297, %v1297
        %v1308 = vcombine.high %v1304, %v1304
        %v1309 = vlaneseq
        %v1310 = vshrl.u32 %v1309, 7
        %v1311 = vsub.s32 0, %v1310
        %v1312 = vrot.slane %v1283, %v1311
        %v1313 = vlaneseq
        %v1314 = vshrl.u32 %v1313, 7
        %v1315 = vsub.s32 0, %v1314
        %v1316 = vrot.slane %v1297, %v1315
        %v1317 = vlaneseq
        %v1318 = vshrl.u32 %v1317, 7
        %v1319 = vsub.s32 0, %v1318
        %v1320 = vrot.slane %v1305, %v1319
        %v1321 = vlaneseq
        %v1322 = vshrl.u32 %v1321, 7
        %v1323 = vsub.s32 0, %v1322
        %v1324 = vrot.slane %v1307, %v1323
        %v1325 = vlaneseq
        %v1326 = vshrl.u32 %v1325, 7
        %v1327 = vsub.s32 0, %v1326
        %v1328 = vrot.slane %v1290, %v1327
        %v1329 = vlaneseq
        %v1330 = vshrl.u32 %v1329, 7
        %v1331 = vsub.s32 0, %v1330
        %v1332 = vrot.slane %v1304, %v1331
        %v1333 = vlaneseq
        %v1334 = vshrl.u32 %v1333, 7
        %v1335 = vsub.s32 0, %v1334
        %v1336 = vrot.slane %v1306, %v1335
        %v1337 = vlaneseq
        %v1338 = vshrl.u32 %v1337, 7
        %v1339 = vsub.s32 0, %v1338
        %v1340 = vrot.slane %v1308, %v1339
        %1341 = vrot.lane.b32.xlu0 %v1312, 88
        %v1342 = vpop.permute.xlu0 %1341
        %1343 = vrot.lane.b32.xlu0 %v1316, 88
        %v1344 = vpop.permute.xlu0 %1343
        %1345 = vrot.lane.b32.xlu0 %v1320, 88
        %v1346 = vpop.permute.xlu0 %1345
        %1347 = vrot.lane.b32.xlu0 %v1324, 88
        %v1348 = vpop.permute.xlu0 %1347
        %1349 = vrot.lane.b32.xlu0 %v1328, 88
        %v1350 = vpop.permute.xlu0 %1349
        %1351 = vrot.lane.b32.xlu0 %v1332, 88
        %v1352 = vpop.permute.xlu0 %1351
        %1353 = vrot.lane.b32.xlu0 %v1336, 88
        %v1354 = vpop.permute.xlu0 %1353
        %1355 = vrot.lane.b32.xlu0 %v1340, 88
        %v1356 = vpop.permute.xlu0 %1355
        %vm1365 = vcmask 1041088
        %1366 = vst.msk [vmem:[#allocation2 + $0x8] sm:$0x1] %vm1365, %v1342
        %vm1367 = vcmask 253952
        %1368 = vst.msk [vmem:[#allocation2 + $0x10] sm:$0x1] %vm1367, %v1342
        %1369 = vst.msk [vmem:[#allocation2 + $0x38] sm:$0x1] %vm1365, %v1344
        %1370 = vst.msk [vmem:[#allocation2 + $0x40] sm:$0x1] %vm1367, %v1344
        %1371 = vst.msk [vmem:[#allocation2 + $0x68] sm:$0x1] %vm1365, %v1346
        %1372 = vst.msk [vmem:[#allocation2 + $0x70] sm:$0x1] %vm1367, %v1346
        %1373 = vst.msk [vmem:[#allocation2 + $0x98] sm:$0x1] %vm1365, %v1348
        %1374 = vst.msk [vmem:[#allocation2 + $0xa0] sm:$0x1] %vm1367, %v1348
        %1375 = vst.msk [vmem:[#allocation2 + $0xc8] sm:$0x1] %vm1365, %v1350
        %1376 = vst.msk [vmem:[#allocation2 + $0xd0] sm:$0x1] %vm1367, %v1350
        %1377 = vst.msk [vmem:[#allocation2 + $0xf8] sm:$0x1] %vm1365, %v1352
        %1378 = vst.msk [vmem:[#allocation2 + $0x100] sm:$0x1] %vm1367, %v1352
        %1379 = vst.msk [vmem:[#allocation2 + $0x128] sm:$0x1] %vm1365, %v1354
        %1380 = vst.msk [vmem:[#allocation2 + $0x130] sm:$0x1] %vm1367, %v1354
        %1381 = vst.msk [vmem:[#allocation2 + $0x158] sm:$0x1] %vm1365, %v1356
        %1382 = vst.msk [vmem:[#allocation2 + $0x160] sm:$0x1] %vm1367, %v1356
        %1383 = vrot.lane.b32.xlu0 %v1312, 80
        %v1384 = vpop.permute.xlu0 %1383
        %1385 = vrot.lane.b32.xlu0 %v1316, 80
        %v1386 = vpop.permute.xlu0 %1385
        %1387 = vrot.lane.b32.xlu0 %v1320, 80
        %v1388 = vpop.permute.xlu0 %1387
        %1389 = vrot.lane.b32.xlu0 %v1324, 80
        %v1390 = vpop.permute.xlu0 %1389
        %1391 = vrot.lane.b32.xlu0 %v1328, 80
        %v1392 = vpop.permute.xlu0 %1391
        %1393 = vrot.lane.b32.xlu0 %v1332, 80
        %v1394 = vpop.permute.xlu0 %1393
        %1395 = vrot.lane.b32.xlu0 %v1336, 80
        %v1396 = vpop.permute.xlu0 %1395
        %1397 = vrot.lane.b32.xlu0 %v1340, 80
        %v1398 = vpop.permute.xlu0 %1397
        %1407 = vst.msk [vmem:[#allocation2 + $0x9] sm:$0x1] %vm1365, %v1384
        %1408 = vst.msk [vmem:[#allocation2 + $0x11] sm:$0x1] %vm1367, %v1384
        %1409 = vst.msk [vmem:[#allocation2 + $0x39] sm:$0x1] %vm1365, %v1386
        %1410 = vst.msk [vmem:[#allocation2 + $0x41] sm:$0x1] %vm1367, %v1386
        %1411 = vst.msk [vmem:[#allocation2 + $0x69] sm:$0x1] %vm1365, %v1388
        %1412 = vst.msk [vmem:[#allocation2 + $0x71] sm:$0x1] %vm1367, %v1388
        %1413 = vst.msk [vmem:[#allocation2 + $0x99] sm:$0x1] %vm1365, %v1390
        %1414 = vst.msk [vmem:[#allocation2 + $0xa1] sm:$0x1] %vm1367, %v1390
        %1415 = vst.msk [vmem:[#allocation2 + $0xc9] sm:$0x1] %vm1365, %v1392
        %1416 = vst.msk [vmem:[#allocation2 + $0xd1] sm:$0x1] %vm1367, %v1392
        %1417 = vst.msk [vmem:[#allocation2 + $0xf9] sm:$0x1] %vm1365, %v1394
        %1418 = vst.msk [vmem:[#allocation2 + $0x101] sm:$0x1] %vm1367, %v1394
        %1419 = vst.msk [vmem:[#allocation2 + $0x129] sm:$0x1] %vm1365, %v1396
        %1420 = vst.msk [vmem:[#allocation2 + $0x131] sm:$0x1] %vm1367, %v1396
        %1421 = vst.msk [vmem:[#allocation2 + $0x159] sm:$0x1] %vm1365, %v1398
        %1422 = vst.msk [vmem:[#allocation2 + $0x161] sm:$0x1] %vm1367, %v1398
        %1423 = vrot.lane.b32.xlu0 %v1312, 72
        %v1424 = vpop.permute.xlu0 %1423
        %1425 = vrot.lane.b32.xlu0 %v1316, 72
        %v1426 = vpop.permute.xlu0 %1425
        %1427 = vrot.lane.b32.xlu0 %v1320, 72
        %v1428 = vpop.permute.xlu0 %1427
        %1429 = vrot.lane.b32.xlu0 %v1324, 72
        %v1430 = vpop.permute.xlu0 %1429
        %1431 = vrot.lane.b32.xlu0 %v1328, 72
        %v1432 = vpop.permute.xlu0 %1431
        %1433 = vrot.lane.b32.xlu0 %v1332, 72
        %v1434 = vpop.permute.xlu0 %1433
        %1435 = vrot.lane.b32.xlu0 %v1336, 72
        %v1436 = vpop.permute.xlu0 %1435
        %1437 = vrot.lane.b32.xlu0 %v1340, 72
        %v1438 = vpop.permute.xlu0 %1437
        %1447 = vst.msk [vmem:[#allocation2 + $0xa] sm:$0x1] %vm1365, %v1424
        %1448 = vst.msk [vmem:[#allocation2 + $0x12] sm:$0x1] %vm1367, %v1424
        %1449 = vst.msk [vmem:[#allocation2 + $0x3a] sm:$0x1] %vm1365, %v1426
        %1450 = vst.msk [vmem:[#allocation2 + $0x42] sm:$0x1] %vm1367, %v1426
        %1451 = vst.msk [vmem:[#allocation2 + $0x6a] sm:$0x1] %vm1365, %v1428
        %1452 = vst.msk [vmem:[#allocation2 + $0x72] sm:$0x1] %vm1367, %v1428
        %1453 = vst.msk [vmem:[#allocation2 + $0x9a] sm:$0x1] %vm1365, %v1430
        %1454 = vst.msk [vmem:[#allocation2 + $0xa2] sm:$0x1] %vm1367, %v1430
        %1455 = vst.msk [vmem:[#allocation2 + $0xca] sm:$0x1] %vm1365, %v1432
        %1456 = vst.msk [vmem:[#allocation2 + $0xd2] sm:$0x1] %vm1367, %v1432
        %1457 = vst.msk [vmem:[#allocation2 + $0xfa] sm:$0x1] %vm1365, %v1434
        %1458 = vst.msk [vmem:[#allocation2 + $0x102] sm:$0x1] %vm1367, %v1434
        %1459 = vst.msk [vmem:[#allocation2 + $0x12a] sm:$0x1] %vm1365, %v1436
        %1460 = vst.msk [vmem:[#allocation2 + $0x132] sm:$0x1] %vm1367, %v1436
        %1461 = vst.msk [vmem:[#allocation2 + $0x15a] sm:$0x1] %vm1365, %v1438
        %1462 = vst.msk [vmem:[#allocation2 + $0x162] sm:$0x1] %vm1367, %v1438
        %1463 = vrot.lane.b32.xlu0 %v1312, 64
        %v1464 = vpop.permute.xlu0 %1463
        %1465 = vrot.lane.b32.xlu0 %v1316, 64
        %v1466 = vpop.permute.xlu0 %1465
        %1467 = vrot.lane.b32.xlu0 %v1320, 64
        %v1468 = vpop.permute.xlu0 %1467
        %1469 = vrot.lane.b32.xlu0 %v1324, 64
        %v1470 = vpop.permute.xlu0 %1469
        %1471 = vrot.lane.b32.xlu0 %v1328, 64
        %v1472 = vpop.permute.xlu0 %1471
        %1473 = vrot.lane.b32.xlu0 %v1332, 64
        %v1474 = vpop.permute.xlu0 %1473
        %1475 = vrot.lane.b32.xlu0 %v1336, 64
        %v1476 = vpop.permute.xlu0 %1475
        %1477 = vrot.lane.b32.xlu0 %v1340, 64
        %v1478 = vpop.permute.xlu0 %1477
        %1487 = vst.msk [vmem:[#allocation2 + $0xb] sm:$0x1] %vm1365, %v1464
        %1488 = vst.msk [vmem:[#allocation2 + $0x13] sm:$0x1] %vm1367, %v1464
        %1489 = vst.msk [vmem:[#allocation2 + $0x3b] sm:$0x1] %vm1365, %v1466
        %1490 = vst.msk [vmem:[#allocation2 + $0x43] sm:$0x1] %vm1367, %v1466
        %1491 = vst.msk [vmem:[#allocation2 + $0x6b] sm:$0x1] %vm1365, %v1468
        %1492 = vst.msk [vmem:[#allocation2 + $0x73] sm:$0x1] %vm1367, %v1468
        %1493 = vst.msk [vmem:[#allocation2 + $0x9b] sm:$0x1] %vm1365, %v1470
        %1494 = vst.msk [vmem:[#allocation2 + $0xa3] sm:$0x1] %vm1367, %v1470
        %1495 = vst.msk [vmem:[#allocation2 + $0xcb] sm:$0x1] %vm1365, %v1472
        %1496 = vst.msk [vmem:[#allocation2 + $0xd3] sm:$0x1] %vm1367, %v1472
        %1497 = vst.msk [vmem:[#allocation2 + $0xfb] sm:$0x1] %vm1365, %v1474
        %1498 = vst.msk [vmem:[#allocation2 + $0x103] sm:$0x1] %vm1367, %v1474
        %1499 = vst.msk [vmem:[#allocation2 + $0x12b] sm:$0x1] %vm1365, %v1476
        %1500 = vst.msk [vmem:[#allocation2 + $0x133] sm:$0x1] %vm1367, %v1476
        %1501 = vst.msk [vmem:[#allocation2 + $0x15b] sm:$0x1] %vm1365, %v1478
        %1502 = vst.msk [vmem:[#allocation2 + $0x163] sm:$0x1] %vm1367, %v1478
        %1503 = vrot.lane.b32.xlu0 %v1312, 56
        %v1504 = vpop.permute.xlu0 %1503
        %1505 = vrot.lane.b32.xlu0 %v1316, 56
        %v1506 = vpop.permute.xlu0 %1505
        %1507 = vrot.lane.b32.xlu0 %v1320, 56
        %v1508 = vpop.permute.xlu0 %1507
        %1509 = vrot.lane.b32.xlu0 %v1324, 56
        %v1510 = vpop.permute.xlu0 %1509
        %1511 = vrot.lane.b32.xlu0 %v1328, 56
        %v1512 = vpop.permute.xlu0 %1511
        %1513 = vrot.lane.b32.xlu0 %v1332, 56
        %v1514 = vpop.permute.xlu0 %1513
        %1515 = vrot.lane.b32.xlu0 %v1336, 56
        %v1516 = vpop.permute.xlu0 %1515
        %1517 = vrot.lane.b32.xlu0 %v1340, 56
        %v1518 = vpop.permute.xlu0 %1517
        %1527 = vst.msk [vmem:[#allocation2 + $0xc] sm:$0x1] %vm1365, %v1504
        %1528 = vst.msk [vmem:[#allocation2 + $0x14] sm:$0x1] %vm1367, %v1504
        %1529 = vst.msk [vmem:[#allocation2 + $0x3c] sm:$0x1] %vm1365, %v1506
        %1530 = vst.msk [vmem:[#allocation2 + $0x44] sm:$0x1] %vm1367, %v1506
        %1531 = vst.msk [vmem:[#allocation2 + $0x6c] sm:$0x1] %vm1365, %v1508
        %1532 = vst.msk [vmem:[#allocation2 + $0x74] sm:$0x1] %vm1367, %v1508
        %1533 = vst.msk [vmem:[#allocation2 + $0x9c] sm:$0x1] %vm1365, %v1510
        %1534 = vst.msk [vmem:[#allocation2 + $0xa4] sm:$0x1] %vm1367, %v1510
        %1535 = vst.msk [vmem:[#allocation2 + $0xcc] sm:$0x1] %vm1365, %v1512
        %1536 = vst.msk [vmem:[#allocation2 + $0xd4] sm:$0x1] %vm1367, %v1512
        %1537 = vst.msk [vmem:[#allocation2 + $0xfc] sm:$0x1] %vm1365, %v1514
        %1538 = vst.msk [vmem:[#allocation2 + $0x104] sm:$0x1] %vm1367, %v1514
        %1539 = vst.msk [vmem:[#allocation2 + $0x12c] sm:$0x1] %vm1365, %v1516
        %1540 = vst.msk [vmem:[#allocation2 + $0x134] sm:$0x1] %vm1367, %v1516
        %1541 = vst.msk [vmem:[#allocation2 + $0x15c] sm:$0x1] %vm1365, %v1518
        %1542 = vst.msk [vmem:[#allocation2 + $0x164] sm:$0x1] %vm1367, %v1518
        %1543 = vrot.lane.b32.xlu0 %v1312, 48
        %v1544 = vpop.permute.xlu0 %1543
        %1545 = vrot.lane.b32.xlu0 %v1316, 48
        %v1546 = vpop.permute.xlu0 %1545
        %1547 = vrot.lane.b32.xlu0 %v1320, 48
        %v1548 = vpop.permute.xlu0 %1547
        %1549 = vrot.lane.b32.xlu0 %v1324, 48
        %v1550 = vpop.permute.xlu0 %1549
        %1551 = vrot.lane.b32.xlu0 %v1328, 48
        %v1552 = vpop.permute.xlu0 %1551
        %1553 = vrot.lane.b32.xlu0 %v1332, 48
        %v1554 = vpop.permute.xlu0 %1553
        %1555 = vrot.lane.b32.xlu0 %v1336, 48
        %v1556 = vpop.permute.xlu0 %1555
        %1557 = vrot.lane.b32.xlu0 %v1340, 48
        %v1558 = vpop.permute.xlu0 %1557
        %1567 = vst.msk [vmem:[#allocation2 + $0xd] sm:$0x1] %vm1365, %v1544
        %1568 = vst.msk [vmem:[#allocation2 + $0x15] sm:$0x1] %vm1367, %v1544
        %1569 = vst.msk [vmem:[#allocation2 + $0x3d] sm:$0x1] %vm1365, %v1546
        %1570 = vst.msk [vmem:[#allocation2 + $0x45] sm:$0x1] %vm1367, %v1546
        %1571 = vst.msk [vmem:[#allocation2 + $0x6d] sm:$0x1] %vm1365, %v1548
        %1572 = vst.msk [vmem:[#allocation2 + $0x75] sm:$0x1] %vm1367, %v1548
        %1573 = vst.msk [vmem:[#allocation2 + $0x9d] sm:$0x1] %vm1365, %v1550
        %1574 = vst.msk [vmem:[#allocation2 + $0xa5] sm:$0x1] %vm1367, %v1550
        %1575 = vst.msk [vmem:[#allocation2 + $0xcd] sm:$0x1] %vm1365, %v1552
        %1576 = vst.msk [vmem:[#allocation2 + $0xd5] sm:$0x1] %vm1367, %v1552
        %1577 = vst.msk [vmem:[#allocation2 + $0xfd] sm:$0x1] %vm1365, %v1554
        %1578 = vst.msk [vmem:[#allocation2 + $0x105] sm:$0x1] %vm1367, %v1554
        %1579 = vst.msk [vmem:[#allocation2 + $0x12d] sm:$0x1] %vm1365, %v1556
        %1580 = vst.msk [vmem:[#allocation2 + $0x135] sm:$0x1] %vm1367, %v1556
        %1581 = vst.msk [vmem:[#allocation2 + $0x15d] sm:$0x1] %vm1365, %v1558
        %1582 = vst.msk [vmem:[#allocation2 + $0x165] sm:$0x1] %vm1367, %v1558
        %1583 = vrot.lane.b32.xlu0 %v1312, 40
        %v1584 = vpop.permute.xlu0 %1583
        %1585 = vrot.lane.b32.xlu0 %v1316, 40
        %v1586 = vpop.permute.xlu0 %1585
        %1587 = vrot.lane.b32.xlu0 %v1320, 40
        %v1588 = vpop.permute.xlu0 %1587
        %1589 = vrot.lane.b32.xlu0 %v1324, 40
        %v1590 = vpop.permute.xlu0 %1589
        %1591 = vrot.lane.b32.xlu0 %v1328, 40
        %v1592 = vpop.permute.xlu0 %1591
        %1593 = vrot.lane.b32.xlu0 %v1332, 40
        %v1594 = vpop.permute.xlu0 %1593
        %1595 = vrot.lane.b32.xlu0 %v1336, 40
        %v1596 = vpop.permute.xlu0 %1595
        %1597 = vrot.lane.b32.xlu0 %v1340, 40
        %v1598 = vpop.permute.xlu0 %1597
        %1607 = vst.msk [vmem:[#allocation2 + $0xe] sm:$0x1] %vm1365, %v1584
        %1608 = vst.msk [vmem:[#allocation2 + $0x16] sm:$0x1] %vm1367, %v1584
        %1609 = vst.msk [vmem:[#allocation2 + $0x3e] sm:$0x1] %vm1365, %v1586
        %1610 = vst.msk [vmem:[#allocation2 + $0x46] sm:$0x1] %vm1367, %v1586
        %1611 = vst.msk [vmem:[#allocation2 + $0x6e] sm:$0x1] %vm1365, %v1588
        %1612 = vst.msk [vmem:[#allocation2 + $0x76] sm:$0x1] %vm1367, %v1588
        %1613 = vst.msk [vmem:[#allocation2 + $0x9e] sm:$0x1] %vm1365, %v1590
        %1614 = vst.msk [vmem:[#allocation2 + $0xa6] sm:$0x1] %vm1367, %v1590
        %1615 = vst.msk [vmem:[#allocation2 + $0xce] sm:$0x1] %vm1365, %v1592
        %1616 = vst.msk [vmem:[#allocation2 + $0xd6] sm:$0x1] %vm1367, %v1592
        %1617 = vst.msk [vmem:[#allocation2 + $0xfe] sm:$0x1] %vm1365, %v1594
        %1618 = vst.msk [vmem:[#allocation2 + $0x106] sm:$0x1] %vm1367, %v1594
        %1619 = vst.msk [vmem:[#allocation2 + $0x12e] sm:$0x1] %vm1365, %v1596
        %1620 = vst.msk [vmem:[#allocation2 + $0x136] sm:$0x1] %vm1367, %v1596
        %1621 = vst.msk [vmem:[#allocation2 + $0x15e] sm:$0x1] %vm1365, %v1598
        %1622 = vst.msk [vmem:[#allocation2 + $0x166] sm:$0x1] %vm1367, %v1598
        %1623 = vrot.lane.b32.xlu0 %v1312, 32
        %v1624 = vpop.permute.xlu0 %1623
        %1625 = vrot.lane.b32.xlu0 %v1316, 32
        %v1626 = vpop.permute.xlu0 %1625
        %1627 = vrot.lane.b32.xlu0 %v1320, 32
        %v1628 = vpop.permute.xlu0 %1627
        %1629 = vrot.lane.b32.xlu0 %v1324, 32
        %v1630 = vpop.permute.xlu0 %1629
        %1631 = vrot.lane.b32.xlu0 %v1328, 32
        %v1632 = vpop.permute.xlu0 %1631
        %1633 = vrot.lane.b32.xlu0 %v1332, 32
        %v1634 = vpop.permute.xlu0 %1633
        %1635 = vrot.lane.b32.xlu0 %v1336, 32
        %v1636 = vpop.permute.xlu0 %1635
        %1637 = vrot.lane.b32.xlu0 %v1340, 32
        %v1638 = vpop.permute.xlu0 %1637
        %1647 = vst.msk [vmem:[#allocation2 + $0xf] sm:$0x1] %vm1365, %v1624
        %1648 = vst.msk [vmem:[#allocation2 + $0x17] sm:$0x1] %vm1367, %v1624
        %1649 = vst.msk [vmem:[#allocation2 + $0x3f] sm:$0x1] %vm1365, %v1626
        %1650 = vst.msk [vmem:[#allocation2 + $0x47] sm:$0x1] %vm1367, %v1626
        %1651 = vst.msk [vmem:[#allocation2 + $0x6f] sm:$0x1] %vm1365, %v1628
        %1652 = vst.msk [vmem:[#allocation2 + $0x77] sm:$0x1] %vm1367, %v1628
        %1653 = vst.msk [vmem:[#allocation2 + $0x9f] sm:$0x1] %vm1365, %v1630
        %1654 = vst.msk [vmem:[#allocation2 + $0xa7] sm:$0x1] %vm1367, %v1630
        %1655 = vst.msk [vmem:[#allocation2 + $0xcf] sm:$0x1] %vm1365, %v1632
        %1656 = vst.msk [vmem:[#allocation2 + $0xd7] sm:$0x1] %vm1367, %v1632
        %1657 = vst.msk [vmem:[#allocation2 + $0xff] sm:$0x1] %vm1365, %v1634
        %1658 = vst.msk [vmem:[#allocation2 + $0x107] sm:$0x1] %vm1367, %v1634
        %1659 = vst.msk [vmem:[#allocation2 + $0x12f] sm:$0x1] %vm1365, %v1636
        %1660 = vst.msk [vmem:[#allocation2 + $0x137] sm:$0x1] %vm1367, %v1636
        %1661 = vst.msk [vmem:[#allocation2 + $0x15f] sm:$0x1] %vm1365, %v1638
        %1662 = vst.msk [vmem:[#allocation2 + $0x167] sm:$0x1] %vm1367, %v1638
        %v1663 = vld [vmem:[%s177 + $0x4] sm:$0xff]
        %v1665 = vcombine.high %v1663, %v1663
        %v1667 = vunpack.c.l.s4 1966171168
        %v1668 = vunpack.c.0.s8 %v1667
        %v1669 = vlaneseq
        %v1670 = vshrl.u32 %v1669, 7
        %v1671 = vsub.s32 %v1668, %v1670
        %v1672 = vrot.slane %v1663, %v1671
        %v1674 = vunpack.c.l.s4 1966171168
        %v1675 = vunpack.c.0.s8 %v1674
        %v1676 = vlaneseq
        %v1677 = vshrl.u32 %v1676, 7
        %v1678 = vsub.s32 %v1675, %v1677
        %v1679 = vrot.slane %v1665, %v1678
        %v1680 = vcombine.high %v1672, %v1672
        %v1681 = vcombine.high %v1679, %v1679
        %v1683 = vunpack.c.l.s4 1966171168
        %v1684 = vunpack.c.0.s8 %v1683
        %v1685 = vlaneseq
        %v1686 = vshrl.u32 %v1685, 7
        %v1687 = vsub.s32 %v1684, %v1686
        %v1688 = vrot.slane %v1672, %v1687
        %v1690 = vunpack.c.l.s4 1966171168
        %v1691 = vunpack.c.0.s8 %v1690
        %v1692 = vlaneseq
        %v1693 = vshrl.u32 %v1692, 7
        %v1694 = vsub.s32 %v1691, %v1693
        %v1695 = vrot.slane %v1679, %v1694
        %v1697 = vunpack.c.l.s4 1966171168
        %v1698 = vunpack.c.0.s8 %v1697
        %v1699 = vlaneseq
        %v1700 = vshrl.u32 %v1699, 7
        %v1701 = vsub.s32 %v1698, %v1700
        %v1702 = vrot.slane %v1680, %v1701
        %v1704 = vunpack.c.l.s4 1966171168
        %v1705 = vunpack.c.0.s8 %v1704
        %v1706 = vlaneseq
        %v1707 = vshrl.u32 %v1706, 7
        %v1708 = vsub.s32 %v1705, %v1707
        %v1709 = vrot.slane %v1681, %v1708
        %v1710 = vcombine.high %v1688, %v1688
        %v1711 = vcombine.high %v1695, %v1695
        %v1712 = vcombine.high %v1702, %v1702
        %v1713 = vcombine.high %v1709, %v1709
        %v1714 = vlaneseq
        %v1715 = vshrl.u32 %v1714, 7
        %v1716 = vsub.s32 0, %v1715
        %v1717 = vrot.slane %v1688, %v1716
        %v1718 = vlaneseq
        %v1719 = vshrl.u32 %v1718, 7
        %v1720 = vsub.s32 0, %v1719
        %v1721 = vrot.slane %v1702, %v1720
        %v1722 = vlaneseq
        %v1723 = vshrl.u32 %v1722, 7
        %v1724 = vsub.s32 0, %v1723
        %v1725 = vrot.slane %v1710, %v1724
        %v1726 = vlaneseq
        %v1727 = vshrl.u32 %v1726, 7
        %v1728 = vsub.s32 0, %v1727
        %v1729 = vrot.slane %v1712, %v1728
        %v1730 = vlaneseq
        %v1731 = vshrl.u32 %v1730, 7
        %v1732 = vsub.s32 0, %v1731
        %v1733 = vrot.slane %v1695, %v1732
        %v1734 = vlaneseq
        %v1735 = vshrl.u32 %v1734, 7
        %v1736 = vsub.s32 0, %v1735
        %v1737 = vrot.slane %v1709, %v1736
        %v1738 = vlaneseq
        %v1739 = vshrl.u32 %v1738, 7
        %v1740 = vsub.s32 0, %v1739
        %v1741 = vrot.slane %v1711, %v1740
        %v1742 = vlaneseq
        %v1743 = vshrl.u32 %v1742, 7
        %v1744 = vsub.s32 0, %v1743
        %v1745 = vrot.slane %v1713, %v1744
        %1746 = vrot.lane.b32.xlu0 %v1717, 32
        %v1747 = vpop.permute.xlu0 %1746
        %1748 = vrot.lane.b32.xlu0 %v1721, 32
        %v1749 = vpop.permute.xlu0 %1748
        %1750 = vrot.lane.b32.xlu0 %v1725, 32
        %v1751 = vpop.permute.xlu0 %1750
        %1752 = vrot.lane.b32.xlu0 %v1729, 32
        %v1753 = vpop.permute.xlu0 %1752
        %1754 = vrot.lane.b32.xlu0 %v1733, 32
        %v1755 = vpop.permute.xlu0 %1754
        %1756 = vrot.lane.b32.xlu0 %v1737, 32
        %v1757 = vpop.permute.xlu0 %1756
        %1758 = vrot.lane.b32.xlu0 %v1741, 32
        %v1759 = vpop.permute.xlu0 %1758
        %1760 = vrot.lane.b32.xlu0 %v1745, 32
        %v1761 = vpop.permute.xlu0 %1760
        %vm1770 = vcmask 844032
        %1771 = vst.msk [vmem:[#allocation2 + $0x10] sm:$0x1] %vm1770, %v1747
        %1772 = vst.msk [vmem:[#allocation2 + $0x40] sm:$0x1] %vm1770, %v1749
        %1773 = vst.msk [vmem:[#allocation2 + $0x70] sm:$0x1] %vm1770, %v1751
        %1774 = vst.msk [vmem:[#allocation2 + $0xa0] sm:$0x1] %vm1770, %v1753
        %1775 = vst.msk [vmem:[#allocation2 + $0xd0] sm:$0x1] %vm1770, %v1755
        %1776 = vst.msk [vmem:[#allocation2 + $0x100] sm:$0x1] %vm1770, %v1757
        %1777 = vst.msk [vmem:[#allocation2 + $0x130] sm:$0x1] %vm1770, %v1759
        %1778 = vst.msk [vmem:[#allocation2 + $0x160] sm:$0x1] %vm1770, %v1761
        %1779 = vrot.lane.b32.xlu0 %v1717, 24
        %v1780 = vpop.permute.xlu0 %1779
        %1781 = vrot.lane.b32.xlu0 %v1721, 24
        %v1782 = vpop.permute.xlu0 %1781
        %1783 = vrot.lane.b32.xlu0 %v1725, 24
        %v1784 = vpop.permute.xlu0 %1783
        %1785 = vrot.lane.b32.xlu0 %v1729, 24
        %v1786 = vpop.permute.xlu0 %1785
        %1787 = vrot.lane.b32.xlu0 %v1733, 24
        %v1788 = vpop.permute.xlu0 %1787
        %1789 = vrot.lane.b32.xlu0 %v1737, 24
        %v1790 = vpop.permute.xlu0 %1789
        %1791 = vrot.lane.b32.xlu0 %v1741, 24
        %v1792 = vpop.permute.xlu0 %1791
        %1793 = vrot.lane.b32.xlu0 %v1745, 24
        %v1794 = vpop.permute.xlu0 %1793
        %1803 = vst.msk [vmem:[#allocation2 + $0x11] sm:$0x1] %vm1770, %v1780
        %1804 = vst.msk [vmem:[#allocation2 + $0x41] sm:$0x1] %vm1770, %v1782
        %1805 = vst.msk [vmem:[#allocation2 + $0x71] sm:$0x1] %vm1770, %v1784
        %1806 = vst.msk [vmem:[#allocation2 + $0xa1] sm:$0x1] %vm1770, %v1786
        %1807 = vst.msk [vmem:[#allocation2 + $0xd1] sm:$0x1] %vm1770, %v1788
        %1808 = vst.msk [vmem:[#allocation2 + $0x101] sm:$0x1] %vm1770, %v1790
        %1809 = vst.msk [vmem:[#allocation2 + $0x131] sm:$0x1] %vm1770, %v1792
        %1810 = vst.msk [vmem:[#allocation2 + $0x161] sm:$0x1] %vm1770, %v1794
        %1811 = vrot.lane.b32.xlu0 %v1717, 16
        %v1812 = vpop.permute.xlu0 %1811
        %1813 = vrot.lane.b32.xlu0 %v1721, 16
        %v1814 = vpop.permute.xlu0 %1813
        %1815 = vrot.lane.b32.xlu0 %v1725, 16
        %v1816 = vpop.permute.xlu0 %1815
        %1817 = vrot.lane.b32.xlu0 %v1729, 16
        %v1818 = vpop.permute.xlu0 %1817
        %1819 = vrot.lane.b32.xlu0 %v1733, 16
        %v1820 = vpop.permute.xlu0 %1819
        %1821 = vrot.lane.b32.xlu0 %v1737, 16
        %v1822 = vpop.permute.xlu0 %1821
        %1823 = vrot.lane.b32.xlu0 %v1741, 16
        %v1824 = vpop.permute.xlu0 %1823
        %1825 = vrot.lane.b32.xlu0 %v1745, 16
        %v1826 = vpop.permute.xlu0 %1825
        %1835 = vst.msk [vmem:[#allocation2 + $0x12] sm:$0x1] %vm1770, %v1812
        %1836 = vst.msk [vmem:[#allocation2 + $0x42] sm:$0x1] %vm1770, %v1814
        %1837 = vst.msk [vmem:[#allocation2 + $0x72] sm:$0x1] %vm1770, %v1816
        %1838 = vst.msk [vmem:[#allocation2 + $0xa2] sm:$0x1] %vm1770, %v1818
        %1839 = vst.msk [vmem:[#allocation2 + $0xd2] sm:$0x1] %vm1770, %v1820
        %1840 = vst.msk [vmem:[#allocation2 + $0x102] sm:$0x1] %vm1770, %v1822
        %1841 = vst.msk [vmem:[#allocation2 + $0x132] sm:$0x1] %vm1770, %v1824
        %1842 = vst.msk [vmem:[#allocation2 + $0x162] sm:$0x1] %vm1770, %v1826
        %1843 = vrot.lane.b32.xlu0 %v1717, 8
        %v1844 = vpop.permute.xlu0 %1843
        %1845 = vrot.lane.b32.xlu0 %v1721, 8
        %v1846 = vpop.permute.xlu0 %1845
        %1847 = vrot.lane.b32.xlu0 %v1725, 8
        %v1848 = vpop.permute.xlu0 %1847
        %1849 = vrot.lane.b32.xlu0 %v1729, 8
        %v1850 = vpop.permute.xlu0 %1849
        %1851 = vrot.lane.b32.xlu0 %v1733, 8
        %v1852 = vpop.permute.xlu0 %1851
        %1853 = vrot.lane.b32.xlu0 %v1737, 8
        %v1854 = vpop.permute.xlu0 %1853
        %1855 = vrot.lane.b32.xlu0 %v1741, 8
        %v1856 = vpop.permute.xlu0 %1855
        %1857 = vrot.lane.b32.xlu0 %v1745, 8
        %v1858 = vpop.permute.xlu0 %1857
        %1867 = vst.msk [vmem:[#allocation2 + $0x13] sm:$0x1] %vm1770, %v1844
        %1868 = vst.msk [vmem:[#allocation2 + $0x43] sm:$0x1] %vm1770, %v1846
        %1869 = vst.msk [vmem:[#allocation2 + $0x73] sm:$0x1] %vm1770, %v1848
        %1870 = vst.msk [vmem:[#allocation2 + $0xa3] sm:$0x1] %vm1770, %v1850
        %1871 = vst.msk [vmem:[#allocation2 + $0xd3] sm:$0x1] %vm1770, %v1852
        %1872 = vst.msk [vmem:[#allocation2 + $0x103] sm:$0x1] %vm1770, %v1854
        %1873 = vst.msk [vmem:[#allocation2 + $0x133] sm:$0x1] %vm1770, %v1856
        %1874 = vst.msk [vmem:[#allocation2 + $0x163] sm:$0x1] %vm1770, %v1858
        %1883 = vst.msk [vmem:[#allocation2 + $0x14] sm:$0x1] %vm1770, %v1688
        %1884 = vst.msk [vmem:[#allocation2 + $0x44] sm:$0x1] %vm1770, %v1702
        %1885 = vst.msk [vmem:[#allocation2 + $0x74] sm:$0x1] %vm1770, %v1710
        %1886 = vst.msk [vmem:[#allocation2 + $0xa4] sm:$0x1] %vm1770, %v1712
        %1887 = vst.msk [vmem:[#allocation2 + $0xd4] sm:$0x1] %vm1770, %v1695
        %1888 = vst.msk [vmem:[#allocation2 + $0x104] sm:$0x1] %vm1770, %v1709
        %1889 = vst.msk [vmem:[#allocation2 + $0x134] sm:$0x1] %vm1770, %v1711
        %1890 = vst.msk [vmem:[#allocation2 + $0x164] sm:$0x1] %vm1770, %v1713
        %1891 = vrot.lane.b32.xlu0 %v1717, 120
        %v1892 = vpop.permute.xlu0 %1891
        %1893 = vrot.lane.b32.xlu0 %v1721, 120
        %v1894 = vpop.permute.xlu0 %1893
        %1895 = vrot.lane.b32.xlu0 %v1725, 120
        %v1896 = vpop.permute.xlu0 %1895
        %1897 = vrot.lane.b32.xlu0 %v1729, 120
        %v1898 = vpop.permute.xlu0 %1897
        %1899 = vrot.lane.b32.xlu0 %v1733, 120
        %v1900 = vpop.permute.xlu0 %1899
        %1901 = vrot.lane.b32.xlu0 %v1737, 120
        %v1902 = vpop.permute.xlu0 %1901
        %1903 = vrot.lane.b32.xlu0 %v1741, 120
        %v1904 = vpop.permute.xlu0 %1903
        %1905 = vrot.lane.b32.xlu0 %v1745, 120
        %v1906 = vpop.permute.xlu0 %1905
        %1915 = vst.msk [vmem:[#allocation2 + $0x15] sm:$0x1] %vm1770, %v1892
        %1916 = vst.msk [vmem:[#allocation2 + $0x45] sm:$0x1] %vm1770, %v1894
        %1917 = vst.msk [vmem:[#allocation2 + $0x75] sm:$0x1] %vm1770, %v1896
        %1918 = vst.msk [vmem:[#allocation2 + $0xa5] sm:$0x1] %vm1770, %v1898
        %1919 = vst.msk [vmem:[#allocation2 + $0xd5] sm:$0x1] %vm1770, %v1900
        %1920 = vst.msk [vmem:[#allocation2 + $0x105] sm:$0x1] %vm1770, %v1902
        %1921 = vst.msk [vmem:[#allocation2 + $0x135] sm:$0x1] %vm1770, %v1904
        %1922 = vst.msk [vmem:[#allocation2 + $0x165] sm:$0x1] %vm1770, %v1906
        %1923 = vrot.lane.b32.xlu0 %v1717, 112
        %v1924 = vpop.permute.xlu0 %1923
        %1925 = vrot.lane.b32.xlu0 %v1721, 112
        %v1926 = vpop.permute.xlu0 %1925
        %1927 = vrot.lane.b32.xlu0 %v1725, 112
        %v1928 = vpop.permute.xlu0 %1927
        %1929 = vrot.lane.b32.xlu0 %v1729, 112
        %v1930 = vpop.permute.xlu0 %1929
        %1931 = vrot.lane.b32.xlu0 %v1733, 112
        %v1932 = vpop.permute.xlu0 %1931
        %1933 = vrot.lane.b32.xlu0 %v1737, 112
        %v1934 = vpop.permute.xlu0 %1933
        %1935 = vrot.lane.b32.xlu0 %v1741, 112
        %v1936 = vpop.permute.xlu0 %1935
        %1937 = vrot.lane.b32.xlu0 %v1745, 112
        %v1938 = vpop.permute.xlu0 %1937
        %1947 = vst.msk [vmem:[#allocation2 + $0x16] sm:$0x1] %vm1770, %v1924
        %1948 = vst.msk [vmem:[#allocation2 + $0x46] sm:$0x1] %vm1770, %v1926
        %1949 = vst.msk [vmem:[#allocation2 + $0x76] sm:$0x1] %vm1770, %v1928
        %1950 = vst.msk [vmem:[#allocation2 + $0xa6] sm:$0x1] %vm1770, %v1930
        %1951 = vst.msk [vmem:[#allocation2 + $0xd6] sm:$0x1] %vm1770, %v1932
        %1952 = vst.msk [vmem:[#allocation2 + $0x106] sm:$0x1] %vm1770, %v1934
        %1953 = vst.msk [vmem:[#allocation2 + $0x136] sm:$0x1] %vm1770, %v1936
        %1954 = vst.msk [vmem:[#allocation2 + $0x166] sm:$0x1] %vm1770, %v1938
        %1955 = vrot.lane.b32.xlu0 %v1717, 104
        %v1956 = vpop.permute.xlu0 %1955
        %1957 = vrot.lane.b32.xlu0 %v1721, 104
        %v1958 = vpop.permute.xlu0 %1957
        %1959 = vrot.lane.b32.xlu0 %v1725, 104
        %v1960 = vpop.permute.xlu0 %1959
        %1961 = vrot.lane.b32.xlu0 %v1729, 104
        %v1962 = vpop.permute.xlu0 %1961
        %1963 = vrot.lane.b32.xlu0 %v1733, 104
        %v1964 = vpop.permute.xlu0 %1963
        %1965 = vrot.lane.b32.xlu0 %v1737, 104
        %v1966 = vpop.permute.xlu0 %1965
        %1967 = vrot.lane.b32.xlu0 %v1741, 104
        %v1968 = vpop.permute.xlu0 %1967
        %1969 = vrot.lane.b32.xlu0 %v1745, 104
        %v1970 = vpop.permute.xlu0 %1969
        %1979 = vst.msk [vmem:[#allocation2 + $0x17] sm:$0x1] %vm1770, %v1956
        %1980 = vst.msk [vmem:[#allocation2 + $0x47] sm:$0x1] %vm1770, %v1958
        %1981 = vst.msk [vmem:[#allocation2 + $0x77] sm:$0x1] %vm1770, %v1960
        %1982 = vst.msk [vmem:[#allocation2 + $0xa7] sm:$0x1] %vm1770, %v1962
        %1983 = vst.msk [vmem:[#allocation2 + $0xd7] sm:$0x1] %vm1770, %v1964
        %1984 = vst.msk [vmem:[#allocation2 + $0x107] sm:$0x1] %vm1770, %v1966
        %1985 = vst.msk [vmem:[#allocation2 + $0x137] sm:$0x1] %vm1770, %v1968
        %1986 = vst.msk [vmem:[#allocation2 + $0x167] sm:$0x1] %vm1770, %v1970
        %v1987 = vld [vmem:[%s177 + $0x5] sm:$0xff]
        %v1989 = vcombine.high %v1987, %v1987
        %v1991 = vunpack.c.l.s4 1966171168
        %v1992 = vunpack.c.0.s8 %v1991
        %v1993 = vlaneseq
        %v1994 = vshrl.u32 %v1993, 7
        %v1995 = vsub.s32 %v1992, %v1994
        %v1996 = vrot.slane %v1987, %v1995
        %v1998 = vunpack.c.l.s4 1966171168
        %v1999 = vunpack.c.0.s8 %v1998
        %v2000 = vlaneseq
        %v2001 = vshrl.u32 %v2000, 7
        %v2002 = vsub.s32 %v1999, %v2001
        %v2003 = vrot.slane %v1989, %v2002
        %v2004 = vcombine.high %v1996, %v1996
        %v2005 = vcombine.high %v2003, %v2003
        %v2007 = vunpack.c.l.s4 1966171168
        %v2008 = vunpack.c.0.s8 %v2007
        %v2009 = vlaneseq
        %v2010 = vshrl.u32 %v2009, 7
        %v2011 = vsub.s32 %v2008, %v2010
        %v2012 = vrot.slane %v1996, %v2011
        %v2014 = vunpack.c.l.s4 1966171168
        %v2015 = vunpack.c.0.s8 %v2014
        %v2016 = vlaneseq
        %v2017 = vshrl.u32 %v2016, 7
        %v2018 = vsub.s32 %v2015, %v2017
        %v2019 = vrot.slane %v2003, %v2018
        %v2021 = vunpack.c.l.s4 1966171168
        %v2022 = vunpack.c.0.s8 %v2021
        %v2023 = vlaneseq
        %v2024 = vshrl.u32 %v2023, 7
        %v2025 = vsub.s32 %v2022, %v2024
        %v2026 = vrot.slane %v2004, %v2025
        %v2028 = vunpack.c.l.s4 1966171168
        %v2029 = vunpack.c.0.s8 %v2028
        %v2030 = vlaneseq
        %v2031 = vshrl.u32 %v2030, 7
        %v2032 = vsub.s32 %v2029, %v2031
        %v2033 = vrot.slane %v2005, %v2032
        %v2034 = vcombine.high %v2012, %v2012
        %v2035 = vcombine.high %v2019, %v2019
        %v2036 = vcombine.high %v2026, %v2026
        %v2037 = vcombine.high %v2033, %v2033
        %v2038 = vlaneseq
        %v2039 = vshrl.u32 %v2038, 7
        %v2040 = vsub.s32 0, %v2039
        %v2041 = vrot.slane %v2012, %v2040
        %v2042 = vlaneseq
        %v2043 = vshrl.u32 %v2042, 7
        %v2044 = vsub.s32 0, %v2043
        %v2045 = vrot.slane %v2026, %v2044
        %v2046 = vlaneseq
        %v2047 = vshrl.u32 %v2046, 7
        %v2048 = vsub.s32 0, %v2047
        %v2049 = vrot.slane %v2034, %v2048
        %v2050 = vlaneseq
        %v2051 = vshrl.u32 %v2050, 7
        %v2052 = vsub.s32 0, %v2051
        %v2053 = vrot.slane %v2036, %v2052
        %v2054 = vlaneseq
        %v2055 = vshrl.u32 %v2054, 7
        %v2056 = vsub.s32 0, %v2055
        %v2057 = vrot.slane %v2019, %v2056
        %v2058 = vlaneseq
        %v2059 = vshrl.u32 %v2058, 7
        %v2060 = vsub.s32 0, %v2059
        %v2061 = vrot.slane %v2033, %v2060
        %v2062 = vlaneseq
        %v2063 = vshrl.u32 %v2062, 7
        %v2064 = vsub.s32 0, %v2063
        %v2065 = vrot.slane %v2035, %v2064
        %v2066 = vlaneseq
        %v2067 = vshrl.u32 %v2066, 7
        %v2068 = vsub.s32 0, %v2067
        %v2069 = vrot.slane %v2037, %v2068
        %2070 = vrot.lane.b32.xlu0 %v2041, 104
        %v2071 = vpop.permute.xlu0 %2070
        %2072 = vrot.lane.b32.xlu0 %v2045, 104
        %v2073 = vpop.permute.xlu0 %2072
        %2074 = vrot.lane.b32.xlu0 %v2049, 104
        %v2075 = vpop.permute.xlu0 %2074
        %2076 = vrot.lane.b32.xlu0 %v2053, 104
        %v2077 = vpop.permute.xlu0 %2076
        %2078 = vrot.lane.b32.xlu0 %v2057, 104
        %v2079 = vpop.permute.xlu0 %2078
        %2080 = vrot.lane.b32.xlu0 %v2061, 104
        %v2081 = vpop.permute.xlu0 %2080
        %2082 = vrot.lane.b32.xlu0 %v2065, 104
        %v2083 = vpop.permute.xlu0 %2082
        %2084 = vrot.lane.b32.xlu0 %v2069, 104
        %v2085 = vpop.permute.xlu0 %2084
        %vm2094 = vcmask 1041216
        %2095 = vst.msk [vmem:[#allocation2 + $0x10] sm:$0x1] %vm2094, %v2071
        %vm2096 = vcmask 385024
        %2097 = vst.msk [vmem:[#allocation2 + $0x18] sm:$0x1] %vm2096, %v2071
        %2098 = vst.msk [vmem:[#allocation2 + $0x40] sm:$0x1] %vm2094, %v2073
        %2099 = vst.msk [vmem:[#allocation2 + $0x48] sm:$0x1] %vm2096, %v2073
        %2100 = vst.msk [vmem:[#allocation2 + $0x70] sm:$0x1] %vm2094, %v2075
        %2101 = vst.msk [vmem:[#allocation2 + $0x78] sm:$0x1] %vm2096, %v2075
        %2102 = vst.msk [vmem:[#allocation2 + $0xa0] sm:$0x1] %vm2094, %v2077
        %2103 = vst.msk [vmem:[#allocation2 + $0xa8] sm:$0x1] %vm2096, %v2077
        %2104 = vst.msk [vmem:[#allocation2 + $0xd0] sm:$0x1] %vm2094, %v2079
        %2105 = vst.msk [vmem:[#allocation2 + $0xd8] sm:$0x1] %vm2096, %v2079
        %2106 = vst.msk [vmem:[#allocation2 + $0x100] sm:$0x1] %vm2094, %v2081
        %2107 = vst.msk [vmem:[#allocation2 + $0x108] sm:$0x1] %vm2096, %v2081
        %2108 = vst.msk [vmem:[#allocation2 + $0x130] sm:$0x1] %vm2094, %v2083
        %2109 = vst.msk [vmem:[#allocation2 + $0x138] sm:$0x1] %vm2096, %v2083
        %2110 = vst.msk [vmem:[#allocation2 + $0x160] sm:$0x1] %vm2094, %v2085
        %2111 = vst.msk [vmem:[#allocation2 + $0x168] sm:$0x1] %vm2096, %v2085
        %2112 = vrot.lane.b32.xlu0 %v2041, 96
        %v2113 = vpop.permute.xlu0 %2112
        %2114 = vrot.lane.b32.xlu0 %v2045, 96
        %v2115 = vpop.permute.xlu0 %2114
        %2116 = vrot.lane.b32.xlu0 %v2049, 96
        %v2117 = vpop.permute.xlu0 %2116
        %2118 = vrot.lane.b32.xlu0 %v2053, 96
        %v2119 = vpop.permute.xlu0 %2118
        %2120 = vrot.lane.b32.xlu0 %v2057, 96
        %v2121 = vpop.permute.xlu0 %2120
        %2122 = vrot.lane.b32.xlu0 %v2061, 96
        %v2123 = vpop.permute.xlu0 %2122
        %2124 = vrot.lane.b32.xlu0 %v2065, 96
        %v2125 = vpop.permute.xlu0 %2124
        %2126 = vrot.lane.b32.xlu0 %v2069, 96
        %v2127 = vpop.permute.xlu0 %2126
        %2136 = vst.msk [vmem:[#allocation2 + $0x11] sm:$0x1] %vm2094, %v2113
        %2137 = vst.msk [vmem:[#allocation2 + $0x19] sm:$0x1] %vm2096, %v2113
        %2138 = vst.msk [vmem:[#allocation2 + $0x41] sm:$0x1] %vm2094, %v2115
        %2139 = vst.msk [vmem:[#allocation2 + $0x49] sm:$0x1] %vm2096, %v2115
        %2140 = vst.msk [vmem:[#allocation2 + $0x71] sm:$0x1] %vm2094, %v2117
        %2141 = vst.msk [vmem:[#allocation2 + $0x79] sm:$0x1] %vm2096, %v2117
        %2142 = vst.msk [vmem:[#allocation2 + $0xa1] sm:$0x1] %vm2094, %v2119
        %2143 = vst.msk [vmem:[#allocation2 + $0xa9] sm:$0x1] %vm2096, %v2119
        %2144 = vst.msk [vmem:[#allocation2 + $0xd1] sm:$0x1] %vm2094, %v2121
        %2145 = vst.msk [vmem:[#allocation2 + $0xd9] sm:$0x1] %vm2096, %v2121
        %2146 = vst.msk [vmem:[#allocation2 + $0x101] sm:$0x1] %vm2094, %v2123
        %2147 = vst.msk [vmem:[#allocation2 + $0x109] sm:$0x1] %vm2096, %v2123
        %2148 = vst.msk [vmem:[#allocation2 + $0x131] sm:$0x1] %vm2094, %v2125
        %2149 = vst.msk [vmem:[#allocation2 + $0x139] sm:$0x1] %vm2096, %v2125
        %2150 = vst.msk [vmem:[#allocation2 + $0x161] sm:$0x1] %vm2094, %v2127
        %2151 = vst.msk [vmem:[#allocation2 + $0x169] sm:$0x1] %vm2096, %v2127
        %2152 = vrot.lane.b32.xlu0 %v2041, 88
        %v2153 = vpop.permute.xlu0 %2152
        %2154 = vrot.lane.b32.xlu0 %v2045, 88
        %v2155 = vpop.permute.xlu0 %2154
        %2156 = vrot.lane.b32.xlu0 %v2049, 88
        %v2157 = vpop.permute.xlu0 %2156
        %2158 = vrot.lane.b32.xlu0 %v2053, 88
        %v2159 = vpop.permute.xlu0 %2158
        %2160 = vrot.lane.b32.xlu0 %v2057, 88
        %v2161 = vpop.permute.xlu0 %2160
        %2162 = vrot.lane.b32.xlu0 %v2061, 88
        %v2163 = vpop.permute.xlu0 %2162
        %2164 = vrot.lane.b32.xlu0 %v2065, 88
        %v2165 = vpop.permute.xlu0 %2164
        %2166 = vrot.lane.b32.xlu0 %v2069, 88
        %v2167 = vpop.permute.xlu0 %2166
        %2176 = vst.msk [vmem:[#allocation2 + $0x12] sm:$0x1] %vm2094, %v2153
        %2177 = vst.msk [vmem:[#allocation2 + $0x1a] sm:$0x1] %vm2096, %v2153
        %2178 = vst.msk [vmem:[#allocation2 + $0x42] sm:$0x1] %vm2094, %v2155
        %2179 = vst.msk [vmem:[#allocation2 + $0x4a] sm:$0x1] %vm2096, %v2155
        %2180 = vst.msk [vmem:[#allocation2 + $0x72] sm:$0x1] %vm2094, %v2157
        %2181 = vst.msk [vmem:[#allocation2 + $0x7a] sm:$0x1] %vm2096, %v2157
        %2182 = vst.msk [vmem:[#allocation2 + $0xa2] sm:$0x1] %vm2094, %v2159
        %2183 = vst.msk [vmem:[#allocation2 + $0xaa] sm:$0x1] %vm2096, %v2159
        %2184 = vst.msk [vmem:[#allocation2 + $0xd2] sm:$0x1] %vm2094, %v2161
        %2185 = vst.msk [vmem:[#allocation2 + $0xda] sm:$0x1] %vm2096, %v2161
        %2186 = vst.msk [vmem:[#allocation2 + $0x102] sm:$0x1] %vm2094, %v2163
        %2187 = vst.msk [vmem:[#allocation2 + $0x10a] sm:$0x1] %vm2096, %v2163
        %2188 = vst.msk [vmem:[#allocation2 + $0x132] sm:$0x1] %vm2094, %v2165
        %2189 = vst.msk [vmem:[#allocation2 + $0x13a] sm:$0x1] %vm2096, %v2165
        %2190 = vst.msk [vmem:[#allocation2 + $0x162] sm:$0x1] %vm2094, %v2167
        %2191 = vst.msk [vmem:[#allocation2 + $0x16a] sm:$0x1] %vm2096, %v2167
        %2192 = vrot.lane.b32.xlu0 %v2041, 80
        %v2193 = vpop.permute.xlu0 %2192
        %2194 = vrot.lane.b32.xlu0 %v2045, 80
        %v2195 = vpop.permute.xlu0 %2194
        %2196 = vrot.lane.b32.xlu0 %v2049, 80
        %v2197 = vpop.permute.xlu0 %2196
        %2198 = vrot.lane.b32.xlu0 %v2053, 80
        %v2199 = vpop.permute.xlu0 %2198
        %2200 = vrot.lane.b32.xlu0 %v2057, 80
        %v2201 = vpop.permute.xlu0 %2200
        %2202 = vrot.lane.b32.xlu0 %v2061, 80
        %v2203 = vpop.permute.xlu0 %2202
        %2204 = vrot.lane.b32.xlu0 %v2065, 80
        %v2205 = vpop.permute.xlu0 %2204
        %2206 = vrot.lane.b32.xlu0 %v2069, 80
        %v2207 = vpop.permute.xlu0 %2206
        %2216 = vst.msk [vmem:[#allocation2 + $0x13] sm:$0x1] %vm2094, %v2193
        %2217 = vst.msk [vmem:[#allocation2 + $0x1b] sm:$0x1] %vm2096, %v2193
        %2218 = vst.msk [vmem:[#allocation2 + $0x43] sm:$0x1] %vm2094, %v2195
        %2219 = vst.msk [vmem:[#allocation2 + $0x4b] sm:$0x1] %vm2096, %v2195
        %2220 = vst.msk [vmem:[#allocation2 + $0x73] sm:$0x1] %vm2094, %v2197
        %2221 = vst.msk [vmem:[#allocation2 + $0x7b] sm:$0x1] %vm2096, %v2197
        %2222 = vst.msk [vmem:[#allocation2 + $0xa3] sm:$0x1] %vm2094, %v2199
        %2223 = vst.msk [vmem:[#allocation2 + $0xab] sm:$0x1] %vm2096, %v2199
        %2224 = vst.msk [vmem:[#allocation2 + $0xd3] sm:$0x1] %vm2094, %v2201
        %2225 = vst.msk [vmem:[#allocation2 + $0xdb] sm:$0x1] %vm2096, %v2201
        %2226 = vst.msk [vmem:[#allocation2 + $0x103] sm:$0x1] %vm2094, %v2203
        %2227 = vst.msk [vmem:[#allocation2 + $0x10b] sm:$0x1] %vm2096, %v2203
        %2228 = vst.msk [vmem:[#allocation2 + $0x133] sm:$0x1] %vm2094, %v2205
        %2229 = vst.msk [vmem:[#allocation2 + $0x13b] sm:$0x1] %vm2096, %v2205
        %2230 = vst.msk [vmem:[#allocation2 + $0x163] sm:$0x1] %vm2094, %v2207
        %2231 = vst.msk [vmem:[#allocation2 + $0x16b] sm:$0x1] %vm2096, %v2207
        %2232 = vrot.lane.b32.xlu0 %v2041, 72
        %v2233 = vpop.permute.xlu0 %2232
        %2234 = vrot.lane.b32.xlu0 %v2045, 72
        %v2235 = vpop.permute.xlu0 %2234
        %2236 = vrot.lane.b32.xlu0 %v2049, 72
        %v2237 = vpop.permute.xlu0 %2236
        %2238 = vrot.lane.b32.xlu0 %v2053, 72
        %v2239 = vpop.permute.xlu0 %2238
        %2240 = vrot.lane.b32.xlu0 %v2057, 72
        %v2241 = vpop.permute.xlu0 %2240
        %2242 = vrot.lane.b32.xlu0 %v2061, 72
        %v2243 = vpop.permute.xlu0 %2242
        %2244 = vrot.lane.b32.xlu0 %v2065, 72
        %v2245 = vpop.permute.xlu0 %2244
        %2246 = vrot.lane.b32.xlu0 %v2069, 72
        %v2247 = vpop.permute.xlu0 %2246
        %2256 = vst.msk [vmem:[#allocation2 + $0x14] sm:$0x1] %vm2094, %v2233
        %2257 = vst.msk [vmem:[#allocation2 + $0x1c] sm:$0x1] %vm2096, %v2233
        %2258 = vst.msk [vmem:[#allocation2 + $0x44] sm:$0x1] %vm2094, %v2235
        %2259 = vst.msk [vmem:[#allocation2 + $0x4c] sm:$0x1] %vm2096, %v2235
        %2260 = vst.msk [vmem:[#allocation2 + $0x74] sm:$0x1] %vm2094, %v2237
        %2261 = vst.msk [vmem:[#allocation2 + $0x7c] sm:$0x1] %vm2096, %v2237
        %2262 = vst.msk [vmem:[#allocation2 + $0xa4] sm:$0x1] %vm2094, %v2239
        %2263 = vst.msk [vmem:[#allocation2 + $0xac] sm:$0x1] %vm2096, %v2239
        %2264 = vst.msk [vmem:[#allocation2 + $0xd4] sm:$0x1] %vm2094, %v2241
        %2265 = vst.msk [vmem:[#allocation2 + $0xdc] sm:$0x1] %vm2096, %v2241
        %2266 = vst.msk [vmem:[#allocation2 + $0x104] sm:$0x1] %vm2094, %v2243
        %2267 = vst.msk [vmem:[#allocation2 + $0x10c] sm:$0x1] %vm2096, %v2243
        %2268 = vst.msk [vmem:[#allocation2 + $0x134] sm:$0x1] %vm2094, %v2245
        %2269 = vst.msk [vmem:[#allocation2 + $0x13c] sm:$0x1] %vm2096, %v2245
        %2270 = vst.msk [vmem:[#allocation2 + $0x164] sm:$0x1] %vm2094, %v2247
        %2271 = vst.msk [vmem:[#allocation2 + $0x16c] sm:$0x1] %vm2096, %v2247
        %2272 = vrot.lane.b32.xlu0 %v2041, 64
        %v2273 = vpop.permute.xlu0 %2272
        %2274 = vrot.lane.b32.xlu0 %v2045, 64
        %v2275 = vpop.permute.xlu0 %2274
        %2276 = vrot.lane.b32.xlu0 %v2049, 64
        %v2277 = vpop.permute.xlu0 %2276
        %2278 = vrot.lane.b32.xlu0 %v2053, 64
        %v2279 = vpop.permute.xlu0 %2278
        %2280 = vrot.lane.b32.xlu0 %v2057, 64
        %v2281 = vpop.permute.xlu0 %2280
        %2282 = vrot.lane.b32.xlu0 %v2061, 64
        %v2283 = vpop.permute.xlu0 %2282
        %2284 = vrot.lane.b32.xlu0 %v2065, 64
        %v2285 = vpop.permute.xlu0 %2284
        %2286 = vrot.lane.b32.xlu0 %v2069, 64
        %v2287 = vpop.permute.xlu0 %2286
        %2296 = vst.msk [vmem:[#allocation2 + $0x15] sm:$0x1] %vm2094, %v2273
        %2297 = vst.msk [vmem:[#allocation2 + $0x1d] sm:$0x1] %vm2096, %v2273
        %2298 = vst.msk [vmem:[#allocation2 + $0x45] sm:$0x1] %vm2094, %v2275
        %2299 = vst.msk [vmem:[#allocation2 + $0x4d] sm:$0x1] %vm2096, %v2275
        %2300 = vst.msk [vmem:[#allocation2 + $0x75] sm:$0x1] %vm2094, %v2277
        %2301 = vst.msk [vmem:[#allocation2 + $0x7d] sm:$0x1] %vm2096, %v2277
        %2302 = vst.msk [vmem:[#allocation2 + $0xa5] sm:$0x1] %vm2094, %v2279
        %2303 = vst.msk [vmem:[#allocation2 + $0xad] sm:$0x1] %vm2096, %v2279
        %2304 = vst.msk [vmem:[#allocation2 + $0xd5] sm:$0x1] %vm2094, %v2281
        %2305 = vst.msk [vmem:[#allocation2 + $0xdd] sm:$0x1] %vm2096, %v2281
        %2306 = vst.msk [vmem:[#allocation2 + $0x105] sm:$0x1] %vm2094, %v2283
        %2307 = vst.msk [vmem:[#allocation2 + $0x10d] sm:$0x1] %vm2096, %v2283
        %2308 = vst.msk [vmem:[#allocation2 + $0x135] sm:$0x1] %vm2094, %v2285
        %2309 = vst.msk [vmem:[#allocation2 + $0x13d] sm:$0x1] %vm2096, %v2285
        %2310 = vst.msk [vmem:[#allocation2 + $0x165] sm:$0x1] %vm2094, %v2287
        %2311 = vst.msk [vmem:[#allocation2 + $0x16d] sm:$0x1] %vm2096, %v2287
        %2312 = vrot.lane.b32.xlu0 %v2041, 56
        %v2313 = vpop.permute.xlu0 %2312
        %2314 = vrot.lane.b32.xlu0 %v2045, 56
        %v2315 = vpop.permute.xlu0 %2314
        %2316 = vrot.lane.b32.xlu0 %v2049, 56
        %v2317 = vpop.permute.xlu0 %2316
        %2318 = vrot.lane.b32.xlu0 %v2053, 56
        %v2319 = vpop.permute.xlu0 %2318
        %2320 = vrot.lane.b32.xlu0 %v2057, 56
        %v2321 = vpop.permute.xlu0 %2320
        %2322 = vrot.lane.b32.xlu0 %v2061, 56
        %v2323 = vpop.permute.xlu0 %2322
        %2324 = vrot.lane.b32.xlu0 %v2065, 56
        %v2325 = vpop.permute.xlu0 %2324
        %2326 = vrot.lane.b32.xlu0 %v2069, 56
        %v2327 = vpop.permute.xlu0 %2326
        %2336 = vst.msk [vmem:[#allocation2 + $0x16] sm:$0x1] %vm2094, %v2313
        %2337 = vst.msk [vmem:[#allocation2 + $0x1e] sm:$0x1] %vm2096, %v2313
        %2338 = vst.msk [vmem:[#allocation2 + $0x46] sm:$0x1] %vm2094, %v2315
        %2339 = vst.msk [vmem:[#allocation2 + $0x4e] sm:$0x1] %vm2096, %v2315
        %2340 = vst.msk [vmem:[#allocation2 + $0x76] sm:$0x1] %vm2094, %v2317
        %2341 = vst.msk [vmem:[#allocation2 + $0x7e] sm:$0x1] %vm2096, %v2317
        %2342 = vst.msk [vmem:[#allocation2 + $0xa6] sm:$0x1] %vm2094, %v2319
        %2343 = vst.msk [vmem:[#allocation2 + $0xae] sm:$0x1] %vm2096, %v2319
        %2344 = vst.msk [vmem:[#allocation2 + $0xd6] sm:$0x1] %vm2094, %v2321
        %2345 = vst.msk [vmem:[#allocation2 + $0xde] sm:$0x1] %vm2096, %v2321
        %2346 = vst.msk [vmem:[#allocation2 + $0x106] sm:$0x1] %vm2094, %v2323
        %2347 = vst.msk [vmem:[#allocation2 + $0x10e] sm:$0x1] %vm2096, %v2323
        %2348 = vst.msk [vmem:[#allocation2 + $0x136] sm:$0x1] %vm2094, %v2325
        %2349 = vst.msk [vmem:[#allocation2 + $0x13e] sm:$0x1] %vm2096, %v2325
        %2350 = vst.msk [vmem:[#allocation2 + $0x166] sm:$0x1] %vm2094, %v2327
        %2351 = vst.msk [vmem:[#allocation2 + $0x16e] sm:$0x1] %vm2096, %v2327
        %2352 = vrot.lane.b32.xlu0 %v2041, 48
        %v2353 = vpop.permute.xlu0 %2352
        %2354 = vrot.lane.b32.xlu0 %v2045, 48
        %v2355 = vpop.permute.xlu0 %2354
        %2356 = vrot.lane.b32.xlu0 %v2049, 48
        %v2357 = vpop.permute.xlu0 %2356
        %2358 = vrot.lane.b32.xlu0 %v2053, 48
        %v2359 = vpop.permute.xlu0 %2358
        %2360 = vrot.lane.b32.xlu0 %v2057, 48
        %v2361 = vpop.permute.xlu0 %2360
        %2362 = vrot.lane.b32.xlu0 %v2061, 48
        %v2363 = vpop.permute.xlu0 %2362
        %2364 = vrot.lane.b32.xlu0 %v2065, 48
        %v2365 = vpop.permute.xlu0 %2364
        %2366 = vrot.lane.b32.xlu0 %v2069, 48
        %v2367 = vpop.permute.xlu0 %2366
        %2376 = vst.msk [vmem:[#allocation2 + $0x17] sm:$0x1] %vm2094, %v2353
        %2377 = vst.msk [vmem:[#allocation2 + $0x1f] sm:$0x1] %vm2096, %v2353
        %2378 = vst.msk [vmem:[#allocation2 + $0x47] sm:$0x1] %vm2094, %v2355
        %2379 = vst.msk [vmem:[#allocation2 + $0x4f] sm:$0x1] %vm2096, %v2355
        %2380 = vst.msk [vmem:[#allocation2 + $0x77] sm:$0x1] %vm2094, %v2357
        %2381 = vst.msk [vmem:[#allocation2 + $0x7f] sm:$0x1] %vm2096, %v2357
        %2382 = vst.msk [vmem:[#allocation2 + $0xa7] sm:$0x1] %vm2094, %v2359
        %2383 = vst.msk [vmem:[#allocation2 + $0xaf] sm:$0x1] %vm2096, %v2359
        %2384 = vst.msk [vmem:[#allocation2 + $0xd7] sm:$0x1] %vm2094, %v2361
        %2385 = vst.msk [vmem:[#allocation2 + $0xdf] sm:$0x1] %vm2096, %v2361
        %2386 = vst.msk [vmem:[#allocation2 + $0x107] sm:$0x1] %vm2094, %v2363
        %2387 = vst.msk [vmem:[#allocation2 + $0x10f] sm:$0x1] %vm2096, %v2363
        %2388 = vst.msk [vmem:[#allocation2 + $0x137] sm:$0x1] %vm2094, %v2365
        %2389 = vst.msk [vmem:[#allocation2 + $0x13f] sm:$0x1] %vm2096, %v2365
        %2390 = vst.msk [vmem:[#allocation2 + $0x167] sm:$0x1] %vm2094, %v2367
        %2391 = vst.msk [vmem:[#allocation2 + $0x16f] sm:$0x1] %vm2096, %v2367
        %v2392 = vld [vmem:[%s177 + $0x6] sm:$0xff]
        %v2394 = vcombine.high %v2392, %v2392
        %v2396 = vunpack.c.l.s4 1966171168
        %v2397 = vunpack.c.0.s8 %v2396
        %v2398 = vlaneseq
        %v2399 = vshrl.u32 %v2398, 7
        %v2400 = vsub.s32 %v2397, %v2399
        %v2401 = vrot.slane %v2392, %v2400
        %v2403 = vunpack.c.l.s4 1966171168
        %v2404 = vunpack.c.0.s8 %v2403
        %v2405 = vlaneseq
        %v2406 = vshrl.u32 %v2405, 7
        %v2407 = vsub.s32 %v2404, %v2406
        %v2408 = vrot.slane %v2394, %v2407
        %v2409 = vcombine.high %v2401, %v2401
        %v2410 = vcombine.high %v2408, %v2408
        %v2412 = vunpack.c.l.s4 1966171168
        %v2413 = vunpack.c.0.s8 %v2412
        %v2414 = vlaneseq
        %v2415 = vshrl.u32 %v2414, 7
        %v2416 = vsub.s32 %v2413, %v2415
        %v2417 = vrot.slane %v2401, %v2416
        %v2419 = vunpack.c.l.s4 1966171168
        %v2420 = vunpack.c.0.s8 %v2419
        %v2421 = vlaneseq
        %v2422 = vshrl.u32 %v2421, 7
        %v2423 = vsub.s32 %v2420, %v2422
        %v2424 = vrot.slane %v2408, %v2423
        %v2426 = vunpack.c.l.s4 1966171168
        %v2427 = vunpack.c.0.s8 %v2426
        %v2428 = vlaneseq
        %v2429 = vshrl.u32 %v2428, 7
        %v2430 = vsub.s32 %v2427, %v2429
        %v2431 = vrot.slane %v2409, %v2430
        %v2433 = vunpack.c.l.s4 1966171168
        %v2434 = vunpack.c.0.s8 %v2433
        %v2435 = vlaneseq
        %v2436 = vshrl.u32 %v2435, 7
        %v2437 = vsub.s32 %v2434, %v2436
        %v2438 = vrot.slane %v2410, %v2437
        %v2439 = vcombine.high %v2417, %v2417
        %v2440 = vcombine.high %v2424, %v2424
        %v2441 = vcombine.high %v2431, %v2431
        %v2442 = vcombine.high %v2438, %v2438
        %v2443 = vlaneseq
        %v2444 = vshrl.u32 %v2443, 7
        %v2445 = vsub.s32 0, %v2444
        %v2446 = vrot.slane %v2417, %v2445
        %v2447 = vlaneseq
        %v2448 = vshrl.u32 %v2447, 7
        %v2449 = vsub.s32 0, %v2448
        %v2450 = vrot.slane %v2431, %v2449
        %v2451 = vlaneseq
        %v2452 = vshrl.u32 %v2451, 7
        %v2453 = vsub.s32 0, %v2452
        %v2454 = vrot.slane %v2439, %v2453
        %v2455 = vlaneseq
        %v2456 = vshrl.u32 %v2455, 7
        %v2457 = vsub.s32 0, %v2456
        %v2458 = vrot.slane %v2441, %v2457
        %v2459 = vlaneseq
        %v2460 = vshrl.u32 %v2459, 7
        %v2461 = vsub.s32 0, %v2460
        %v2462 = vrot.slane %v2424, %v2461
        %v2463 = vlaneseq
        %v2464 = vshrl.u32 %v2463, 7
        %v2465 = vsub.s32 0, %v2464
        %v2466 = vrot.slane %v2438, %v2465
        %v2467 = vlaneseq
        %v2468 = vshrl.u32 %v2467, 7
        %v2469 = vsub.s32 0, %v2468
        %v2470 = vrot.slane %v2440, %v2469
        %v2471 = vlaneseq
        %v2472 = vshrl.u32 %v2471, 7
        %v2473 = vsub.s32 0, %v2472
        %v2474 = vrot.slane %v2442, %v2473
        %2475 = vrot.lane.b32.xlu0 %v2446, 48
        %v2476 = vpop.permute.xlu0 %2475
        %2477 = vrot.lane.b32.xlu0 %v2450, 48
        %v2478 = vpop.permute.xlu0 %2477
        %2479 = vrot.lane.b32.xlu0 %v2454, 48
        %v2480 = vpop.permute.xlu0 %2479
        %2481 = vrot.lane.b32.xlu0 %v2458, 48
        %v2482 = vpop.permute.xlu0 %2481
        %2483 = vrot.lane.b32.xlu0 %v2462, 48
        %v2484 = vpop.permute.xlu0 %2483
        %2485 = vrot.lane.b32.xlu0 %v2466, 48
        %v2486 = vpop.permute.xlu0 %2485
        %2487 = vrot.lane.b32.xlu0 %v2470, 48
        %v2488 = vpop.permute.xlu0 %2487
        %2489 = vrot.lane.b32.xlu0 %v2474, 48
        %v2490 = vpop.permute.xlu0 %2489
        %vm2499 = vcmask 975232
        %2500 = vst.msk [vmem:[#allocation2 + $0x18] sm:$0x1] %vm2499, %v2476
        %2501 = vst.msk [vmem:[#allocation2 + $0x48] sm:$0x1] %vm2499, %v2478
        %2502 = vst.msk [vmem:[#allocation2 + $0x78] sm:$0x1] %vm2499, %v2480
        %2503 = vst.msk [vmem:[#allocation2 + $0xa8] sm:$0x1] %vm2499, %v2482
        %2504 = vst.msk [vmem:[#allocation2 + $0xd8] sm:$0x1] %vm2499, %v2484
        %2505 = vst.msk [vmem:[#allocation2 + $0x108] sm:$0x1] %vm2499, %v2486
        %2506 = vst.msk [vmem:[#allocation2 + $0x138] sm:$0x1] %vm2499, %v2488
        %2507 = vst.msk [vmem:[#allocation2 + $0x168] sm:$0x1] %vm2499, %v2490
        %2508 = vrot.lane.b32.xlu0 %v2446, 40
        %v2509 = vpop.permute.xlu0 %2508
        %2510 = vrot.lane.b32.xlu0 %v2450, 40
        %v2511 = vpop.permute.xlu0 %2510
        %2512 = vrot.lane.b32.xlu0 %v2454, 40
        %v2513 = vpop.permute.xlu0 %2512
        %2514 = vrot.lane.b32.xlu0 %v2458, 40
        %v2515 = vpop.permute.xlu0 %2514
        %2516 = vrot.lane.b32.xlu0 %v2462, 40
        %v2517 = vpop.permute.xlu0 %2516
        %2518 = vrot.lane.b32.xlu0 %v2466, 40
        %v2519 = vpop.permute.xlu0 %2518
        %2520 = vrot.lane.b32.xlu0 %v2470, 40
        %v2521 = vpop.permute.xlu0 %2520
        %2522 = vrot.lane.b32.xlu0 %v2474, 40
        %v2523 = vpop.permute.xlu0 %2522
        %2532 = vst.msk [vmem:[#allocation2 + $0x19] sm:$0x1] %vm2499, %v2509
        %2533 = vst.msk [vmem:[#allocation2 + $0x49] sm:$0x1] %vm2499, %v2511
        %2534 = vst.msk [vmem:[#allocation2 + $0x79] sm:$0x1] %vm2499, %v2513
        %2535 = vst.msk [vmem:[#allocation2 + $0xa9] sm:$0x1] %vm2499, %v2515
        %2536 = vst.msk [vmem:[#allocation2 + $0xd9] sm:$0x1] %vm2499, %v2517
        %2537 = vst.msk [vmem:[#allocation2 + $0x109] sm:$0x1] %vm2499, %v2519
        %2538 = vst.msk [vmem:[#allocation2 + $0x139] sm:$0x1] %vm2499, %v2521
        %2539 = vst.msk [vmem:[#allocation2 + $0x169] sm:$0x1] %vm2499, %v2523
        %2540 = vrot.lane.b32.xlu0 %v2446, 32
        %v2541 = vpop.permute.xlu0 %2540
        %2542 = vrot.lane.b32.xlu0 %v2450, 32
        %v2543 = vpop.permute.xlu0 %2542
        %2544 = vrot.lane.b32.xlu0 %v2454, 32
        %v2545 = vpop.permute.xlu0 %2544
        %2546 = vrot.lane.b32.xlu0 %v2458, 32
        %v2547 = vpop.permute.xlu0 %2546
        %2548 = vrot.lane.b32.xlu0 %v2462, 32
        %v2549 = vpop.permute.xlu0 %2548
        %2550 = vrot.lane.b32.xlu0 %v2466, 32
        %v2551 = vpop.permute.xlu0 %2550
        %2552 = vrot.lane.b32.xlu0 %v2470, 32
        %v2553 = vpop.permute.xlu0 %2552
        %2554 = vrot.lane.b32.xlu0 %v2474, 32
        %v2555 = vpop.permute.xlu0 %2554
        %2564 = vst.msk [vmem:[#allocation2 + $0x1a] sm:$0x1] %vm2499, %v2541
        %2565 = vst.msk [vmem:[#allocation2 + $0x4a] sm:$0x1] %vm2499, %v2543
        %2566 = vst.msk [vmem:[#allocation2 + $0x7a] sm:$0x1] %vm2499, %v2545
        %2567 = vst.msk [vmem:[#allocation2 + $0xaa] sm:$0x1] %vm2499, %v2547
        %2568 = vst.msk [vmem:[#allocation2 + $0xda] sm:$0x1] %vm2499, %v2549
        %2569 = vst.msk [vmem:[#allocation2 + $0x10a] sm:$0x1] %vm2499, %v2551
        %2570 = vst.msk [vmem:[#allocation2 + $0x13a] sm:$0x1] %vm2499, %v2553
        %2571 = vst.msk [vmem:[#allocation2 + $0x16a] sm:$0x1] %vm2499, %v2555
        %2572 = vrot.lane.b32.xlu0 %v2446, 24
        %v2573 = vpop.permute.xlu0 %2572
        %2574 = vrot.lane.b32.xlu0 %v2450, 24
        %v2575 = vpop.permute.xlu0 %2574
        %2576 = vrot.lane.b32.xlu0 %v2454, 24
        %v2577 = vpop.permute.xlu0 %2576
        %2578 = vrot.lane.b32.xlu0 %v2458, 24
        %v2579 = vpop.permute.xlu0 %2578
        %2580 = vrot.lane.b32.xlu0 %v2462, 24
        %v2581 = vpop.permute.xlu0 %2580
        %2582 = vrot.lane.b32.xlu0 %v2466, 24
        %v2583 = vpop.permute.xlu0 %2582
        %2584 = vrot.lane.b32.xlu0 %v2470, 24
        %v2585 = vpop.permute.xlu0 %2584
        %2586 = vrot.lane.b32.xlu0 %v2474, 24
        %v2587 = vpop.permute.xlu0 %2586
        %2596 = vst.msk [vmem:[#allocation2 + $0x1b] sm:$0x1] %vm2499, %v2573
        %2597 = vst.msk [vmem:[#allocation2 + $0x4b] sm:$0x1] %vm2499, %v2575
        %2598 = vst.msk [vmem:[#allocation2 + $0x7b] sm:$0x1] %vm2499, %v2577
        %2599 = vst.msk [vmem:[#allocation2 + $0xab] sm:$0x1] %vm2499, %v2579
        %2600 = vst.msk [vmem:[#allocation2 + $0xdb] sm:$0x1] %vm2499, %v2581
        %2601 = vst.msk [vmem:[#allocation2 + $0x10b] sm:$0x1] %vm2499, %v2583
        %2602 = vst.msk [vmem:[#allocation2 + $0x13b] sm:$0x1] %vm2499, %v2585
        %2603 = vst.msk [vmem:[#allocation2 + $0x16b] sm:$0x1] %vm2499, %v2587
        %2604 = vrot.lane.b32.xlu0 %v2446, 16
        %v2605 = vpop.permute.xlu0 %2604
        %2606 = vrot.lane.b32.xlu0 %v2450, 16
        %v2607 = vpop.permute.xlu0 %2606
        %2608 = vrot.lane.b32.xlu0 %v2454, 16
        %v2609 = vpop.permute.xlu0 %2608
        %2610 = vrot.lane.b32.xlu0 %v2458, 16
        %v2611 = vpop.permute.xlu0 %2610
        %2612 = vrot.lane.b32.xlu0 %v2462, 16
        %v2613 = vpop.permute.xlu0 %2612
        %2614 = vrot.lane.b32.xlu0 %v2466, 16
        %v2615 = vpop.permute.xlu0 %2614
        %2616 = vrot.lane.b32.xlu0 %v2470, 16
        %v2617 = vpop.permute.xlu0 %2616
        %2618 = vrot.lane.b32.xlu0 %v2474, 16
        %v2619 = vpop.permute.xlu0 %2618
        %2628 = vst.msk [vmem:[#allocation2 + $0x1c] sm:$0x1] %vm2499, %v2605
        %2629 = vst.msk [vmem:[#allocation2 + $0x4c] sm:$0x1] %vm2499, %v2607
        %2630 = vst.msk [vmem:[#allocation2 + $0x7c] sm:$0x1] %vm2499, %v2609
        %2631 = vst.msk [vmem:[#allocation2 + $0xac] sm:$0x1] %vm2499, %v2611
        %2632 = vst.msk [vmem:[#allocation2 + $0xdc] sm:$0x1] %vm2499, %v2613
        %2633 = vst.msk [vmem:[#allocation2 + $0x10c] sm:$0x1] %vm2499, %v2615
        %2634 = vst.msk [vmem:[#allocation2 + $0x13c] sm:$0x1] %vm2499, %v2617
        %2635 = vst.msk [vmem:[#allocation2 + $0x16c] sm:$0x1] %vm2499, %v2619
        %2636 = vrot.lane.b32.xlu0 %v2446, 8
        %v2637 = vpop.permute.xlu0 %2636
        %2638 = vrot.lane.b32.xlu0 %v2450, 8
        %v2639 = vpop.permute.xlu0 %2638
        %2640 = vrot.lane.b32.xlu0 %v2454, 8
        %v2641 = vpop.permute.xlu0 %2640
        %2642 = vrot.lane.b32.xlu0 %v2458, 8
        %v2643 = vpop.permute.xlu0 %2642
        %2644 = vrot.lane.b32.xlu0 %v2462, 8
        %v2645 = vpop.permute.xlu0 %2644
        %2646 = vrot.lane.b32.xlu0 %v2466, 8
        %v2647 = vpop.permute.xlu0 %2646
        %2648 = vrot.lane.b32.xlu0 %v2470, 8
        %v2649 = vpop.permute.xlu0 %2648
        %2650 = vrot.lane.b32.xlu0 %v2474, 8
        %v2651 = vpop.permute.xlu0 %2650
        %2660 = vst.msk [vmem:[#allocation2 + $0x1d] sm:$0x1] %vm2499, %v2637
        %2661 = vst.msk [vmem:[#allocation2 + $0x4d] sm:$0x1] %vm2499, %v2639
        %2662 = vst.msk [vmem:[#allocation2 + $0x7d] sm:$0x1] %vm2499, %v2641
        %2663 = vst.msk [vmem:[#allocation2 + $0xad] sm:$0x1] %vm2499, %v2643
        %2664 = vst.msk [vmem:[#allocation2 + $0xdd] sm:$0x1] %vm2499, %v2645
        %2665 = vst.msk [vmem:[#allocation2 + $0x10d] sm:$0x1] %vm2499, %v2647
        %2666 = vst.msk [vmem:[#allocation2 + $0x13d] sm:$0x1] %vm2499, %v2649
        %2667 = vst.msk [vmem:[#allocation2 + $0x16d] sm:$0x1] %vm2499, %v2651
        %2676 = vst.msk [vmem:[#allocation2 + $0x1e] sm:$0x1] %vm2499, %v2417
        %2677 = vst.msk [vmem:[#allocation2 + $0x4e] sm:$0x1] %vm2499, %v2431
        %2678 = vst.msk [vmem:[#allocation2 + $0x7e] sm:$0x1] %vm2499, %v2439
        %2679 = vst.msk [vmem:[#allocation2 + $0xae] sm:$0x1] %vm2499, %v2441
        %2680 = vst.msk [vmem:[#allocation2 + $0xde] sm:$0x1] %vm2499, %v2424
        %2681 = vst.msk [vmem:[#allocation2 + $0x10e] sm:$0x1] %vm2499, %v2438
        %2682 = vst.msk [vmem:[#allocation2 + $0x13e] sm:$0x1] %vm2499, %v2440
        %2683 = vst.msk [vmem:[#allocation2 + $0x16e] sm:$0x1] %vm2499, %v2442
        %2684 = vrot.lane.b32.xlu0 %v2446, 120
        %v2685 = vpop.permute.xlu0 %2684
        %2686 = vrot.lane.b32.xlu0 %v2450, 120
        %v2687 = vpop.permute.xlu0 %2686
        %2688 = vrot.lane.b32.xlu0 %v2454, 120
        %v2689 = vpop.permute.xlu0 %2688
        %2690 = vrot.lane.b32.xlu0 %v2458, 120
        %v2691 = vpop.permute.xlu0 %2690
        %2692 = vrot.lane.b32.xlu0 %v2462, 120
        %v2693 = vpop.permute.xlu0 %2692
        %2694 = vrot.lane.b32.xlu0 %v2466, 120
        %v2695 = vpop.permute.xlu0 %2694
        %2696 = vrot.lane.b32.xlu0 %v2470, 120
        %v2697 = vpop.permute.xlu0 %2696
        %2698 = vrot.lane.b32.xlu0 %v2474, 120
        %v2699 = vpop.permute.xlu0 %2698
        %2708 = vst.msk [vmem:[#allocation2 + $0x1f] sm:$0x1] %vm2499, %v2685
        %2709 = vst.msk [vmem:[#allocation2 + $0x4f] sm:$0x1] %vm2499, %v2687
        %2710 = vst.msk [vmem:[#allocation2 + $0x7f] sm:$0x1] %vm2499, %v2689
        %2711 = vst.msk [vmem:[#allocation2 + $0xaf] sm:$0x1] %vm2499, %v2691
        %2712 = vst.msk [vmem:[#allocation2 + $0xdf] sm:$0x1] %vm2499, %v2693
        %2713 = vst.msk [vmem:[#allocation2 + $0x10f] sm:$0x1] %vm2499, %v2695
        %2714 = vst.msk [vmem:[#allocation2 + $0x13f] sm:$0x1] %vm2499, %v2697
        %2715 = vst.msk [vmem:[#allocation2 + $0x16f] sm:$0x1] %vm2499, %v2699
        %v2716 = vld [vmem:[%s177 + $0x7] sm:$0xff]
        %v2718 = vcombine.high %v2716, %v2716
        %v2720 = vunpack.c.l.s4 1966171168
        %v2721 = vunpack.c.0.s8 %v2720
        %v2722 = vlaneseq
        %v2723 = vshrl.u32 %v2722, 7
        %v2724 = vsub.s32 %v2721, %v2723
        %v2725 = vrot.slane %v2716, %v2724
        %v2727 = vunpack.c.l.s4 1966171168
        %v2728 = vunpack.c.0.s8 %v2727
        %v2729 = vlaneseq
        %v2730 = vshrl.u32 %v2729, 7
        %v2731 = vsub.s32 %v2728, %v2730
        %v2732 = vrot.slane %v2718, %v2731
        %v2733 = vcombine.high %v2725, %v2725
        %v2734 = vcombine.high %v2732, %v2732
        %v2736 = vunpack.c.l.s4 1966171168
        %v2737 = vunpack.c.0.s8 %v2736
        %v2738 = vlaneseq
        %v2739 = vshrl.u32 %v2738, 7
        %v2740 = vsub.s32 %v2737, %v2739
        %v2741 = vrot.slane %v2725, %v2740
        %v2743 = vunpack.c.l.s4 1966171168
        %v2744 = vunpack.c.0.s8 %v2743
        %v2745 = vlaneseq
        %v2746 = vshrl.u32 %v2745, 7
        %v2747 = vsub.s32 %v2744, %v2746
        %v2748 = vrot.slane %v2732, %v2747
        %v2750 = vunpack.c.l.s4 1966171168
        %v2751 = vunpack.c.0.s8 %v2750
        %v2752 = vlaneseq
        %v2753 = vshrl.u32 %v2752, 7
        %v2754 = vsub.s32 %v2751, %v2753
        %v2755 = vrot.slane %v2733, %v2754
        %v2757 = vunpack.c.l.s4 1966171168
        %v2758 = vunpack.c.0.s8 %v2757
        %v2759 = vlaneseq
        %v2760 = vshrl.u32 %v2759, 7
        %v2761 = vsub.s32 %v2758, %v2760
        %v2762 = vrot.slane %v2734, %v2761
        %v2763 = vcombine.high %v2741, %v2741
        %v2764 = vcombine.high %v2748, %v2748
        %v2765 = vcombine.high %v2755, %v2755
        %v2766 = vcombine.high %v2762, %v2762
        %v2767 = vlaneseq
        %v2768 = vshrl.u32 %v2767, 7
        %v2769 = vsub.s32 0, %v2768
        %v2770 = vrot.slane %v2741, %v2769
        %v2771 = vlaneseq
        %v2772 = vshrl.u32 %v2771, 7
        %v2773 = vsub.s32 0, %v2772
        %v2774 = vrot.slane %v2755, %v2773
        %v2775 = vlaneseq
        %v2776 = vshrl.u32 %v2775, 7
        %v2777 = vsub.s32 0, %v2776
        %v2778 = vrot.slane %v2763, %v2777
        %v2779 = vlaneseq
        %v2780 = vshrl.u32 %v2779, 7
        %v2781 = vsub.s32 0, %v2780
        %v2782 = vrot.slane %v2765, %v2781
        %v2783 = vlaneseq
        %v2784 = vshrl.u32 %v2783, 7
        %v2785 = vsub.s32 0, %v2784
        %v2786 = vrot.slane %v2748, %v2785
        %v2787 = vlaneseq
        %v2788 = vshrl.u32 %v2787, 7
        %v2789 = vsub.s32 0, %v2788
        %v2790 = vrot.slane %v2762, %v2789
        %v2791 = vlaneseq
        %v2792 = vshrl.u32 %v2791, 7
        %v2793 = vsub.s32 0, %v2792
        %v2794 = vrot.slane %v2764, %v2793
        %v2795 = vlaneseq
        %v2796 = vshrl.u32 %v2795, 7
        %v2797 = vsub.s32 0, %v2796
        %v2798 = vrot.slane %v2766, %v2797
        %2799 = vrot.lane.b32.xlu0 %v2770, 120
        %v2800 = vpop.permute.xlu0 %2799
        %2801 = vrot.lane.b32.xlu0 %v2774, 120
        %v2802 = vpop.permute.xlu0 %2801
        %2803 = vrot.lane.b32.xlu0 %v2778, 120
        %v2804 = vpop.permute.xlu0 %2803
        %2805 = vrot.lane.b32.xlu0 %v2782, 120
        %v2806 = vpop.permute.xlu0 %2805
        %2807 = vrot.lane.b32.xlu0 %v2786, 120
        %v2808 = vpop.permute.xlu0 %2807
        %2809 = vrot.lane.b32.xlu0 %v2790, 120
        %v2810 = vpop.permute.xlu0 %2809
        %2811 = vrot.lane.b32.xlu0 %v2794, 120
        %v2812 = vpop.permute.xlu0 %2811
        %2813 = vrot.lane.b32.xlu0 %v2798, 120
        %v2814 = vpop.permute.xlu0 %2813
        %vm2823 = vcmask 1041344
        %2824 = vst.msk [vmem:[#allocation2 + $0x18] sm:$0x1] %vm2823, %v2800
        %vm2825 = vcmask 516096
        %2826 = vst.msk [vmem:[#allocation2 + $0x20] sm:$0x1] %vm2825, %v2800
        %2827 = vst.msk [vmem:[#allocation2 + $0x48] sm:$0x1] %vm2823, %v2802
        %2828 = vst.msk [vmem:[#allocation2 + $0x50] sm:$0x1] %vm2825, %v2802
        %2829 = vst.msk [vmem:[#allocation2 + $0x78] sm:$0x1] %vm2823, %v2804
        %2830 = vst.msk [vmem:[#allocation2 + $0x80] sm:$0x1] %vm2825, %v2804
        %2831 = vst.msk [vmem:[#allocation2 + $0xa8] sm:$0x1] %vm2823, %v2806
        %2832 = vst.msk [vmem:[#allocation2 + $0xb0] sm:$0x1] %vm2825, %v2806
        %2833 = vst.msk [vmem:[#allocation2 + $0xd8] sm:$0x1] %vm2823, %v2808
        %2834 = vst.msk [vmem:[#allocation2 + $0xe0] sm:$0x1] %vm2825, %v2808
        %2835 = vst.msk [vmem:[#allocation2 + $0x108] sm:$0x1] %vm2823, %v2810
        %2836 = vst.msk [vmem:[#allocation2 + $0x110] sm:$0x1] %vm2825, %v2810
        %2837 = vst.msk [vmem:[#allocation2 + $0x138] sm:$0x1] %vm2823, %v2812
        %2838 = vst.msk [vmem:[#allocation2 + $0x140] sm:$0x1] %vm2825, %v2812
        %2839 = vst.msk [vmem:[#allocation2 + $0x168] sm:$0x1] %vm2823, %v2814
        %2840 = vst.msk [vmem:[#allocation2 + $0x170] sm:$0x1] %vm2825, %v2814
        %2841 = vrot.lane.b32.xlu0 %v2770, 112
        %v2842 = vpop.permute.xlu0 %2841
        %2843 = vrot.lane.b32.xlu0 %v2774, 112
        %v2844 = vpop.permute.xlu0 %2843
        %2845 = vrot.lane.b32.xlu0 %v2778, 112
        %v2846 = vpop.permute.xlu0 %2845
        %2847 = vrot.lane.b32.xlu0 %v2782, 112
        %v2848 = vpop.permute.xlu0 %2847
        %2849 = vrot.lane.b32.xlu0 %v2786, 112
        %v2850 = vpop.permute.xlu0 %2849
        %2851 = vrot.lane.b32.xlu0 %v2790, 112
        %v2852 = vpop.permute.xlu0 %2851
        %2853 = vrot.lane.b32.xlu0 %v2794, 112
        %v2854 = vpop.permute.xlu0 %2853
        %2855 = vrot.lane.b32.xlu0 %v2798, 112
        %v2856 = vpop.permute.xlu0 %2855
        %2865 = vst.msk [vmem:[#allocation2 + $0x19] sm:$0x1] %vm2823, %v2842
        %2866 = vst.msk [vmem:[#allocation2 + $0x21] sm:$0x1] %vm2825, %v2842
        %2867 = vst.msk [vmem:[#allocation2 + $0x49] sm:$0x1] %vm2823, %v2844
        %2868 = vst.msk [vmem:[#allocation2 + $0x51] sm:$0x1] %vm2825, %v2844
        %2869 = vst.msk [vmem:[#allocation2 + $0x79] sm:$0x1] %vm2823, %v2846
        %2870 = vst.msk [vmem:[#allocation2 + $0x81] sm:$0x1] %vm2825, %v2846
        %2871 = vst.msk [vmem:[#allocation2 + $0xa9] sm:$0x1] %vm2823, %v2848
        %2872 = vst.msk [vmem:[#allocation2 + $0xb1] sm:$0x1] %vm2825, %v2848
        %2873 = vst.msk [vmem:[#allocation2 + $0xd9] sm:$0x1] %vm2823, %v2850
        %2874 = vst.msk [vmem:[#allocation2 + $0xe1] sm:$0x1] %vm2825, %v2850
        %2875 = vst.msk [vmem:[#allocation2 + $0x109] sm:$0x1] %vm2823, %v2852
        %2876 = vst.msk [vmem:[#allocation2 + $0x111] sm:$0x1] %vm2825, %v2852
        %2877 = vst.msk [vmem:[#allocation2 + $0x139] sm:$0x1] %vm2823, %v2854
        %2878 = vst.msk [vmem:[#allocation2 + $0x141] sm:$0x1] %vm2825, %v2854
        %2879 = vst.msk [vmem:[#allocation2 + $0x169] sm:$0x1] %vm2823, %v2856
        %2880 = vst.msk [vmem:[#allocation2 + $0x171] sm:$0x1] %vm2825, %v2856
        %2881 = vrot.lane.b32.xlu0 %v2770, 104
        %v2882 = vpop.permute.xlu0 %2881
        %2883 = vrot.lane.b32.xlu0 %v2774, 104
        %v2884 = vpop.permute.xlu0 %2883
        %2885 = vrot.lane.b32.xlu0 %v2778, 104
        %v2886 = vpop.permute.xlu0 %2885
        %2887 = vrot.lane.b32.xlu0 %v2782, 104
        %v2888 = vpop.permute.xlu0 %2887
        %2889 = vrot.lane.b32.xlu0 %v2786, 104
        %v2890 = vpop.permute.xlu0 %2889
        %2891 = vrot.lane.b32.xlu0 %v2790, 104
        %v2892 = vpop.permute.xlu0 %2891
        %2893 = vrot.lane.b32.xlu0 %v2794, 104
        %v2894 = vpop.permute.xlu0 %2893
        %2895 = vrot.lane.b32.xlu0 %v2798, 104
        %v2896 = vpop.permute.xlu0 %2895
        %2905 = vst.msk [vmem:[#allocation2 + $0x1a] sm:$0x1] %vm2823, %v2882
        %2906 = vst.msk [vmem:[#allocation2 + $0x22] sm:$0x1] %vm2825, %v2882
        %2907 = vst.msk [vmem:[#allocation2 + $0x4a] sm:$0x1] %vm2823, %v2884
        %2908 = vst.msk [vmem:[#allocation2 + $0x52] sm:$0x1] %vm2825, %v2884
        %2909 = vst.msk [vmem:[#allocation2 + $0x7a] sm:$0x1] %vm2823, %v2886
        %2910 = vst.msk [vmem:[#allocation2 + $0x82] sm:$0x1] %vm2825, %v2886
        %2911 = vst.msk [vmem:[#allocation2 + $0xaa] sm:$0x1] %vm2823, %v2888
        %2912 = vst.msk [vmem:[#allocation2 + $0xb2] sm:$0x1] %vm2825, %v2888
        %2913 = vst.msk [vmem:[#allocation2 + $0xda] sm:$0x1] %vm2823, %v2890
        %2914 = vst.msk [vmem:[#allocation2 + $0xe2] sm:$0x1] %vm2825, %v2890
        %2915 = vst.msk [vmem:[#allocation2 + $0x10a] sm:$0x1] %vm2823, %v2892
        %2916 = vst.msk [vmem:[#allocation2 + $0x112] sm:$0x1] %vm2825, %v2892
        %2917 = vst.msk [vmem:[#allocation2 + $0x13a] sm:$0x1] %vm2823, %v2894
        %2918 = vst.msk [vmem:[#allocation2 + $0x142] sm:$0x1] %vm2825, %v2894
        %2919 = vst.msk [vmem:[#allocation2 + $0x16a] sm:$0x1] %vm2823, %v2896
        %2920 = vst.msk [vmem:[#allocation2 + $0x172] sm:$0x1] %vm2825, %v2896
        %2921 = vrot.lane.b32.xlu0 %v2770, 96
        %v2922 = vpop.permute.xlu0 %2921
        %2923 = vrot.lane.b32.xlu0 %v2774, 96
        %v2924 = vpop.permute.xlu0 %2923
        %2925 = vrot.lane.b32.xlu0 %v2778, 96
        %v2926 = vpop.permute.xlu0 %2925
        %2927 = vrot.lane.b32.xlu0 %v2782, 96
        %v2928 = vpop.permute.xlu0 %2927
        %2929 = vrot.lane.b32.xlu0 %v2786, 96
        %v2930 = vpop.permute.xlu0 %2929
        %2931 = vrot.lane.b32.xlu0 %v2790, 96
        %v2932 = vpop.permute.xlu0 %2931
        %2933 = vrot.lane.b32.xlu0 %v2794, 96
        %v2934 = vpop.permute.xlu0 %2933
        %2935 = vrot.lane.b32.xlu0 %v2798, 96
        %v2936 = vpop.permute.xlu0 %2935
        %2945 = vst.msk [vmem:[#allocation2 + $0x1b] sm:$0x1] %vm2823, %v2922
        %2946 = vst.msk [vmem:[#allocation2 + $0x23] sm:$0x1] %vm2825, %v2922
        %2947 = vst.msk [vmem:[#allocation2 + $0x4b] sm:$0x1] %vm2823, %v2924
        %2948 = vst.msk [vmem:[#allocation2 + $0x53] sm:$0x1] %vm2825, %v2924
        %2949 = vst.msk [vmem:[#allocation2 + $0x7b] sm:$0x1] %vm2823, %v2926
        %2950 = vst.msk [vmem:[#allocation2 + $0x83] sm:$0x1] %vm2825, %v2926
        %2951 = vst.msk [vmem:[#allocation2 + $0xab] sm:$0x1] %vm2823, %v2928
        %2952 = vst.msk [vmem:[#allocation2 + $0xb3] sm:$0x1] %vm2825, %v2928
        %2953 = vst.msk [vmem:[#allocation2 + $0xdb] sm:$0x1] %vm2823, %v2930
        %2954 = vst.msk [vmem:[#allocation2 + $0xe3] sm:$0x1] %vm2825, %v2930
        %2955 = vst.msk [vmem:[#allocation2 + $0x10b] sm:$0x1] %vm2823, %v2932
        %2956 = vst.msk [vmem:[#allocation2 + $0x113] sm:$0x1] %vm2825, %v2932
        %2957 = vst.msk [vmem:[#allocation2 + $0x13b] sm:$0x1] %vm2823, %v2934
        %2958 = vst.msk [vmem:[#allocation2 + $0x143] sm:$0x1] %vm2825, %v2934
        %2959 = vst.msk [vmem:[#allocation2 + $0x16b] sm:$0x1] %vm2823, %v2936
        %2960 = vst.msk [vmem:[#allocation2 + $0x173] sm:$0x1] %vm2825, %v2936
        %2961 = vrot.lane.b32.xlu0 %v2770, 88
        %v2962 = vpop.permute.xlu0 %2961
        %2963 = vrot.lane.b32.xlu0 %v2774, 88
        %v2964 = vpop.permute.xlu0 %2963
        %2965 = vrot.lane.b32.xlu0 %v2778, 88
        %v2966 = vpop.permute.xlu0 %2965
        %2967 = vrot.lane.b32.xlu0 %v2782, 88
        %v2968 = vpop.permute.xlu0 %2967
        %2969 = vrot.lane.b32.xlu0 %v2786, 88
        %v2970 = vpop.permute.xlu0 %2969
        %2971 = vrot.lane.b32.xlu0 %v2790, 88
        %v2972 = vpop.permute.xlu0 %2971
        %2973 = vrot.lane.b32.xlu0 %v2794, 88
        %v2974 = vpop.permute.xlu0 %2973
        %2975 = vrot.lane.b32.xlu0 %v2798, 88
        %v2976 = vpop.permute.xlu0 %2975
        %2985 = vst.msk [vmem:[#allocation2 + $0x1c] sm:$0x1] %vm2823, %v2962
        %2986 = vst.msk [vmem:[#allocation2 + $0x24] sm:$0x1] %vm2825, %v2962
        %2987 = vst.msk [vmem:[#allocation2 + $0x4c] sm:$0x1] %vm2823, %v2964
        %2988 = vst.msk [vmem:[#allocation2 + $0x54] sm:$0x1] %vm2825, %v2964
        %2989 = vst.msk [vmem:[#allocation2 + $0x7c] sm:$0x1] %vm2823, %v2966
        %2990 = vst.msk [vmem:[#allocation2 + $0x84] sm:$0x1] %vm2825, %v2966
        %2991 = vst.msk [vmem:[#allocation2 + $0xac] sm:$0x1] %vm2823, %v2968
        %2992 = vst.msk [vmem:[#allocation2 + $0xb4] sm:$0x1] %vm2825, %v2968
        %2993 = vst.msk [vmem:[#allocation2 + $0xdc] sm:$0x1] %vm2823, %v2970
        %2994 = vst.msk [vmem:[#allocation2 + $0xe4] sm:$0x1] %vm2825, %v2970
        %2995 = vst.msk [vmem:[#allocation2 + $0x10c] sm:$0x1] %vm2823, %v2972
        %2996 = vst.msk [vmem:[#allocation2 + $0x114] sm:$0x1] %vm2825, %v2972
        %2997 = vst.msk [vmem:[#allocation2 + $0x13c] sm:$0x1] %vm2823, %v2974
        %2998 = vst.msk [vmem:[#allocation2 + $0x144] sm:$0x1] %vm2825, %v2974
        %2999 = vst.msk [vmem:[#allocation2 + $0x16c] sm:$0x1] %vm2823, %v2976
        %3000 = vst.msk [vmem:[#allocation2 + $0x174] sm:$0x1] %vm2825, %v2976
        %3001 = vrot.lane.b32.xlu0 %v2770, 80
        %v3002 = vpop.permute.xlu0 %3001
        %3003 = vrot.lane.b32.xlu0 %v2774, 80
        %v3004 = vpop.permute.xlu0 %3003
        %3005 = vrot.lane.b32.xlu0 %v2778, 80
        %v3006 = vpop.permute.xlu0 %3005
        %3007 = vrot.lane.b32.xlu0 %v2782, 80
        %v3008 = vpop.permute.xlu0 %3007
        %3009 = vrot.lane.b32.xlu0 %v2786, 80
        %v3010 = vpop.permute.xlu0 %3009
        %3011 = vrot.lane.b32.xlu0 %v2790, 80
        %v3012 = vpop.permute.xlu0 %3011
        %3013 = vrot.lane.b32.xlu0 %v2794, 80
        %v3014 = vpop.permute.xlu0 %3013
        %3015 = vrot.lane.b32.xlu0 %v2798, 80
        %v3016 = vpop.permute.xlu0 %3015
        %3025 = vst.msk [vmem:[#allocation2 + $0x1d] sm:$0x1] %vm2823, %v3002
        %3026 = vst.msk [vmem:[#allocation2 + $0x25] sm:$0x1] %vm2825, %v3002
        %3027 = vst.msk [vmem:[#allocation2 + $0x4d] sm:$0x1] %vm2823, %v3004
        %3028 = vst.msk [vmem:[#allocation2 + $0x55] sm:$0x1] %vm2825, %v3004
        %3029 = vst.msk [vmem:[#allocation2 + $0x7d] sm:$0x1] %vm2823, %v3006
        %3030 = vst.msk [vmem:[#allocation2 + $0x85] sm:$0x1] %vm2825, %v3006
        %3031 = vst.msk [vmem:[#allocation2 + $0xad] sm:$0x1] %vm2823, %v3008
        %3032 = vst.msk [vmem:[#allocation2 + $0xb5] sm:$0x1] %vm2825, %v3008
        %3033 = vst.msk [vmem:[#allocation2 + $0xdd] sm:$0x1] %vm2823, %v3010
        %3034 = vst.msk [vmem:[#allocation2 + $0xe5] sm:$0x1] %vm2825, %v3010
        %3035 = vst.msk [vmem:[#allocation2 + $0x10d] sm:$0x1] %vm2823, %v3012
        %3036 = vst.msk [vmem:[#allocation2 + $0x115] sm:$0x1] %vm2825, %v3012
        %3037 = vst.msk [vmem:[#allocation2 + $0x13d] sm:$0x1] %vm2823, %v3014
        %3038 = vst.msk [vmem:[#allocation2 + $0x145] sm:$0x1] %vm2825, %v3014
        %3039 = vst.msk [vmem:[#allocation2 + $0x16d] sm:$0x1] %vm2823, %v3016
        %3040 = vst.msk [vmem:[#allocation2 + $0x175] sm:$0x1] %vm2825, %v3016
        %3041 = vrot.lane.b32.xlu0 %v2770, 72
        %v3042 = vpop.permute.xlu0 %3041
        %3043 = vrot.lane.b32.xlu0 %v2774, 72
        %v3044 = vpop.permute.xlu0 %3043
        %3045 = vrot.lane.b32.xlu0 %v2778, 72
        %v3046 = vpop.permute.xlu0 %3045
        %3047 = vrot.lane.b32.xlu0 %v2782, 72
        %v3048 = vpop.permute.xlu0 %3047
        %3049 = vrot.lane.b32.xlu0 %v2786, 72
        %v3050 = vpop.permute.xlu0 %3049
        %3051 = vrot.lane.b32.xlu0 %v2790, 72
        %v3052 = vpop.permute.xlu0 %3051
        %3053 = vrot.lane.b32.xlu0 %v2794, 72
        %v3054 = vpop.permute.xlu0 %3053
        %3055 = vrot.lane.b32.xlu0 %v2798, 72
        %v3056 = vpop.permute.xlu0 %3055
        %3065 = vst.msk [vmem:[#allocation2 + $0x1e] sm:$0x1] %vm2823, %v3042
        %3066 = vst.msk [vmem:[#allocation2 + $0x26] sm:$0x1] %vm2825, %v3042
        %3067 = vst.msk [vmem:[#allocation2 + $0x4e] sm:$0x1] %vm2823, %v3044
        %3068 = vst.msk [vmem:[#allocation2 + $0x56] sm:$0x1] %vm2825, %v3044
        %3069 = vst.msk [vmem:[#allocation2 + $0x7e] sm:$0x1] %vm2823, %v3046
        %3070 = vst.msk [vmem:[#allocation2 + $0x86] sm:$0x1] %vm2825, %v3046
        %3071 = vst.msk [vmem:[#allocation2 + $0xae] sm:$0x1] %vm2823, %v3048
        %3072 = vst.msk [vmem:[#allocation2 + $0xb6] sm:$0x1] %vm2825, %v3048
        %3073 = vst.msk [vmem:[#allocation2 + $0xde] sm:$0x1] %vm2823, %v3050
        %3074 = vst.msk [vmem:[#allocation2 + $0xe6] sm:$0x1] %vm2825, %v3050
        %3075 = vst.msk [vmem:[#allocation2 + $0x10e] sm:$0x1] %vm2823, %v3052
        %3076 = vst.msk [vmem:[#allocation2 + $0x116] sm:$0x1] %vm2825, %v3052
        %3077 = vst.msk [vmem:[#allocation2 + $0x13e] sm:$0x1] %vm2823, %v3054
        %3078 = vst.msk [vmem:[#allocation2 + $0x146] sm:$0x1] %vm2825, %v3054
        %3079 = vst.msk [vmem:[#allocation2 + $0x16e] sm:$0x1] %vm2823, %v3056
        %3080 = vst.msk [vmem:[#allocation2 + $0x176] sm:$0x1] %vm2825, %v3056
        %3081 = vrot.lane.b32.xlu0 %v2770, 64
        %v3082 = vpop.permute.xlu0 %3081
        %3083 = vrot.lane.b32.xlu0 %v2774, 64
        %v3084 = vpop.permute.xlu0 %3083
        %3085 = vrot.lane.b32.xlu0 %v2778, 64
        %v3086 = vpop.permute.xlu0 %3085
        %3087 = vrot.lane.b32.xlu0 %v2782, 64
        %v3088 = vpop.permute.xlu0 %3087
        %3089 = vrot.lane.b32.xlu0 %v2786, 64
        %v3090 = vpop.permute.xlu0 %3089
        %3091 = vrot.lane.b32.xlu0 %v2790, 64
        %v3092 = vpop.permute.xlu0 %3091
        %3093 = vrot.lane.b32.xlu0 %v2794, 64
        %v3094 = vpop.permute.xlu0 %3093
        %3095 = vrot.lane.b32.xlu0 %v2798, 64
        %v3096 = vpop.permute.xlu0 %3095
        %3105 = vst.msk [vmem:[#allocation2 + $0x1f] sm:$0x1] %vm2823, %v3082
        %3106 = vst.msk [vmem:[#allocation2 + $0x27] sm:$0x1] %vm2825, %v3082
        %3107 = vst.msk [vmem:[#allocation2 + $0x4f] sm:$0x1] %vm2823, %v3084
        %3108 = vst.msk [vmem:[#allocation2 + $0x57] sm:$0x1] %vm2825, %v3084
        %3109 = vst.msk [vmem:[#allocation2 + $0x7f] sm:$0x1] %vm2823, %v3086
        %3110 = vst.msk [vmem:[#allocation2 + $0x87] sm:$0x1] %vm2825, %v3086
        %3111 = vst.msk [vmem:[#allocation2 + $0xaf] sm:$0x1] %vm2823, %v3088
        %3112 = vst.msk [vmem:[#allocation2 + $0xb7] sm:$0x1] %vm2825, %v3088
        %3113 = vst.msk [vmem:[#allocation2 + $0xdf] sm:$0x1] %vm2823, %v3090
        %3114 = vst.msk [vmem:[#allocation2 + $0xe7] sm:$0x1] %vm2825, %v3090
        %3115 = vst.msk [vmem:[#allocation2 + $0x10f] sm:$0x1] %vm2823, %v3092
        %3116 = vst.msk [vmem:[#allocation2 + $0x117] sm:$0x1] %vm2825, %v3092
        %3117 = vst.msk [vmem:[#allocation2 + $0x13f] sm:$0x1] %vm2823, %v3094
        %3118 = vst.msk [vmem:[#allocation2 + $0x147] sm:$0x1] %vm2825, %v3094
        %3119 = vst.msk [vmem:[#allocation2 + $0x16f] sm:$0x1] %vm2823, %v3096
        %3120 = vst.msk [vmem:[#allocation2 + $0x177] sm:$0x1] %vm2825, %v3096
        %v3121 = vld [vmem:[%s177 + $0x8] sm:$0xff]
        %v3123 = vcombine.high %v3121, %v3121
        %v3125 = vunpack.c.l.s4 1966171168
        %v3126 = vunpack.c.0.s8 %v3125
        %v3127 = vlaneseq
        %v3128 = vshrl.u32 %v3127, 7
        %v3129 = vsub.s32 %v3126, %v3128
        %v3130 = vrot.slane %v3121, %v3129
        %v3132 = vunpack.c.l.s4 1966171168
        %v3133 = vunpack.c.0.s8 %v3132
        %v3134 = vlaneseq
        %v3135 = vshrl.u32 %v3134, 7
        %v3136 = vsub.s32 %v3133, %v3135
        %v3137 = vrot.slane %v3123, %v3136
        %v3138 = vcombine.high %v3130, %v3130
        %v3139 = vcombine.high %v3137, %v3137
        %v3141 = vunpack.c.l.s4 1966171168
        %v3142 = vunpack.c.0.s8 %v3141
        %v3143 = vlaneseq
        %v3144 = vshrl.u32 %v3143, 7
        %v3145 = vsub.s32 %v3142, %v3144
        %v3146 = vrot.slane %v3130, %v3145
        %v3148 = vunpack.c.l.s4 1966171168
        %v3149 = vunpack.c.0.s8 %v3148
        %v3150 = vlaneseq
        %v3151 = vshrl.u32 %v3150, 7
        %v3152 = vsub.s32 %v3149, %v3151
        %v3153 = vrot.slane %v3137, %v3152
        %v3155 = vunpack.c.l.s4 1966171168
        %v3156 = vunpack.c.0.s8 %v3155
        %v3157 = vlaneseq
        %v3158 = vshrl.u32 %v3157, 7
        %v3159 = vsub.s32 %v3156, %v3158
        %v3160 = vrot.slane %v3138, %v3159
        %v3162 = vunpack.c.l.s4 1966171168
        %v3163 = vunpack.c.0.s8 %v3162
        %v3164 = vlaneseq
        %v3165 = vshrl.u32 %v3164, 7
        %v3166 = vsub.s32 %v3163, %v3165
        %v3167 = vrot.slane %v3139, %v3166
        %v3168 = vcombine.high %v3146, %v3146
        %v3169 = vcombine.high %v3153, %v3153
        %v3170 = vcombine.high %v3160, %v3160
        %v3171 = vcombine.high %v3167, %v3167
        %v3172 = vlaneseq
        %v3173 = vshrl.u32 %v3172, 7
        %v3174 = vsub.s32 0, %v3173
        %v3175 = vrot.slane %v3146, %v3174
        %v3176 = vlaneseq
        %v3177 = vshrl.u32 %v3176, 7
        %v3178 = vsub.s32 0, %v3177
        %v3179 = vrot.slane %v3160, %v3178
        %v3180 = vlaneseq
        %v3181 = vshrl.u32 %v3180, 7
        %v3182 = vsub.s32 0, %v3181
        %v3183 = vrot.slane %v3168, %v3182
        %v3184 = vlaneseq
        %v3185 = vshrl.u32 %v3184, 7
        %v3186 = vsub.s32 0, %v3185
        %v3187 = vrot.slane %v3170, %v3186
        %v3188 = vlaneseq
        %v3189 = vshrl.u32 %v3188, 7
        %v3190 = vsub.s32 0, %v3189
        %v3191 = vrot.slane %v3153, %v3190
        %v3192 = vlaneseq
        %v3193 = vshrl.u32 %v3192, 7
        %v3194 = vsub.s32 0, %v3193
        %v3195 = vrot.slane %v3167, %v3194
        %v3196 = vlaneseq
        %v3197 = vshrl.u32 %v3196, 7
        %v3198 = vsub.s32 0, %v3197
        %v3199 = vrot.slane %v3169, %v3198
        %v3200 = vlaneseq
        %v3201 = vshrl.u32 %v3200, 7
        %v3202 = vsub.s32 0, %v3201
        %v3203 = vrot.slane %v3171, %v3202
        %3204 = vrot.lane.b32.xlu0 %v3175, 64
        %v3205 = vpop.permute.xlu0 %3204
        %3206 = vrot.lane.b32.xlu0 %v3179, 64
        %v3207 = vpop.permute.xlu0 %3206
        %3208 = vrot.lane.b32.xlu0 %v3183, 64
        %v3209 = vpop.permute.xlu0 %3208
        %3210 = vrot.lane.b32.xlu0 %v3187, 64
        %v3211 = vpop.permute.xlu0 %3210
        %3212 = vrot.lane.b32.xlu0 %v3191, 64
        %v3213 = vpop.permute.xlu0 %3212
        %3214 = vrot.lane.b32.xlu0 %v3195, 64
        %v3215 = vpop.permute.xlu0 %3214
        %3216 = vrot.lane.b32.xlu0 %v3199, 64
        %v3217 = vpop.permute.xlu0 %3216
        %3218 = vrot.lane.b32.xlu0 %v3203, 64
        %v3219 = vpop.permute.xlu0 %3218
        %vm3228 = vcmask 1040896
        %3229 = vst.msk [vmem:[#allocation2 + $0x20] sm:$0x1] %vm3228, %v3205
        %vm3230 = vcmask 57344
        %3231 = vst.msk [vmem:[#allocation2 + $0x28] sm:$0x1] %vm3230, %v3205
        %3232 = vst.msk [vmem:[#allocation2 + $0x50] sm:$0x1] %vm3228, %v3207
        %3233 = vst.msk [vmem:[#allocation2 + $0x58] sm:$0x1] %vm3230, %v3207
        %3234 = vst.msk [vmem:[#allocation2 + $0x80] sm:$0x1] %vm3228, %v3209
        %3235 = vst.msk [vmem:[#allocation2 + $0x88] sm:$0x1] %vm3230, %v3209
        %3236 = vst.msk [vmem:[#allocation2 + $0xb0] sm:$0x1] %vm3228, %v3211
        %3237 = vst.msk [vmem:[#allocation2 + $0xb8] sm:$0x1] %vm3230, %v3211
        %3238 = vst.msk [vmem:[#allocation2 + $0xe0] sm:$0x1] %vm3228, %v3213
        %3239 = vst.msk [vmem:[#allocation2 + $0xe8] sm:$0x1] %vm3230, %v3213
        %3240 = vst.msk [vmem:[#allocation2 + $0x110] sm:$0x1] %vm3228, %v3215
        %3241 = vst.msk [vmem:[#allocation2 + $0x118] sm:$0x1] %vm3230, %v3215
        %3242 = vst.msk [vmem:[#allocation2 + $0x140] sm:$0x1] %vm3228, %v3217
        %3243 = vst.msk [vmem:[#allocation2 + $0x148] sm:$0x1] %vm3230, %v3217
        %3244 = vst.msk [vmem:[#allocation2 + $0x170] sm:$0x1] %vm3228, %v3219
        %3245 = vst.msk [vmem:[#allocation2 + $0x178] sm:$0x1] %vm3230, %v3219
        %3246 = vrot.lane.b32.xlu0 %v3175, 56
        %v3247 = vpop.permute.xlu0 %3246
        %3248 = vrot.lane.b32.xlu0 %v3179, 56
        %v3249 = vpop.permute.xlu0 %3248
        %3250 = vrot.lane.b32.xlu0 %v3183, 56
        %v3251 = vpop.permute.xlu0 %3250
        %3252 = vrot.lane.b32.xlu0 %v3187, 56
        %v3253 = vpop.permute.xlu0 %3252
        %3254 = vrot.lane.b32.xlu0 %v3191, 56
        %v3255 = vpop.permute.xlu0 %3254
        %3256 = vrot.lane.b32.xlu0 %v3195, 56
        %v3257 = vpop.permute.xlu0 %3256
        %3258 = vrot.lane.b32.xlu0 %v3199, 56
        %v3259 = vpop.permute.xlu0 %3258
        %3260 = vrot.lane.b32.xlu0 %v3203, 56
        %v3261 = vpop.permute.xlu0 %3260
        %3270 = vst.msk [vmem:[#allocation2 + $0x21] sm:$0x1] %vm3228, %v3247
        %3271 = vst.msk [vmem:[#allocation2 + $0x29] sm:$0x1] %vm3230, %v3247
        %3272 = vst.msk [vmem:[#allocation2 + $0x51] sm:$0x1] %vm3228, %v3249
        %3273 = vst.msk [vmem:[#allocation2 + $0x59] sm:$0x1] %vm3230, %v3249
        %3274 = vst.msk [vmem:[#allocation2 + $0x81] sm:$0x1] %vm3228, %v3251
        %3275 = vst.msk [vmem:[#allocation2 + $0x89] sm:$0x1] %vm3230, %v3251
        %3276 = vst.msk [vmem:[#allocation2 + $0xb1] sm:$0x1] %vm3228, %v3253
        %3277 = vst.msk [vmem:[#allocation2 + $0xb9] sm:$0x1] %vm3230, %v3253
        %3278 = vst.msk [vmem:[#allocation2 + $0xe1] sm:$0x1] %vm3228, %v3255
        %3279 = vst.msk [vmem:[#allocation2 + $0xe9] sm:$0x1] %vm3230, %v3255
        %3280 = vst.msk [vmem:[#allocation2 + $0x111] sm:$0x1] %vm3228, %v3257
        %3281 = vst.msk [vmem:[#allocation2 + $0x119] sm:$0x1] %vm3230, %v3257
        %3282 = vst.msk [vmem:[#allocation2 + $0x141] sm:$0x1] %vm3228, %v3259
        %3283 = vst.msk [vmem:[#allocation2 + $0x149] sm:$0x1] %vm3230, %v3259
        %3284 = vst.msk [vmem:[#allocation2 + $0x171] sm:$0x1] %vm3228, %v3261
        %3285 = vst.msk [vmem:[#allocation2 + $0x179] sm:$0x1] %vm3230, %v3261
        %3286 = vrot.lane.b32.xlu0 %v3175, 48
        %v3287 = vpop.permute.xlu0 %3286
        %3288 = vrot.lane.b32.xlu0 %v3179, 48
        %v3289 = vpop.permute.xlu0 %3288
        %3290 = vrot.lane.b32.xlu0 %v3183, 48
        %v3291 = vpop.permute.xlu0 %3290
        %3292 = vrot.lane.b32.xlu0 %v3187, 48
        %v3293 = vpop.permute.xlu0 %3292
        %3294 = vrot.lane.b32.xlu0 %v3191, 48
        %v3295 = vpop.permute.xlu0 %3294
        %3296 = vrot.lane.b32.xlu0 %v3195, 48
        %v3297 = vpop.permute.xlu0 %3296
        %3298 = vrot.lane.b32.xlu0 %v3199, 48
        %v3299 = vpop.permute.xlu0 %3298
        %3300 = vrot.lane.b32.xlu0 %v3203, 48
        %v3301 = vpop.permute.xlu0 %3300
        %3310 = vst.msk [vmem:[#allocation2 + $0x22] sm:$0x1] %vm3228, %v3287
        %3311 = vst.msk [vmem:[#allocation2 + $0x2a] sm:$0x1] %vm3230, %v3287
        %3312 = vst.msk [vmem:[#allocation2 + $0x52] sm:$0x1] %vm3228, %v3289
        %3313 = vst.msk [vmem:[#allocation2 + $0x5a] sm:$0x1] %vm3230, %v3289
        %3314 = vst.msk [vmem:[#allocation2 + $0x82] sm:$0x1] %vm3228, %v3291
        %3315 = vst.msk [vmem:[#allocation2 + $0x8a] sm:$0x1] %vm3230, %v3291
        %3316 = vst.msk [vmem:[#allocation2 + $0xb2] sm:$0x1] %vm3228, %v3293
        %3317 = vst.msk [vmem:[#allocation2 + $0xba] sm:$0x1] %vm3230, %v3293
        %3318 = vst.msk [vmem:[#allocation2 + $0xe2] sm:$0x1] %vm3228, %v3295
        %3319 = vst.msk [vmem:[#allocation2 + $0xea] sm:$0x1] %vm3230, %v3295
        %3320 = vst.msk [vmem:[#allocation2 + $0x112] sm:$0x1] %vm3228, %v3297
        %3321 = vst.msk [vmem:[#allocation2 + $0x11a] sm:$0x1] %vm3230, %v3297
        %3322 = vst.msk [vmem:[#allocation2 + $0x142] sm:$0x1] %vm3228, %v3299
        %3323 = vst.msk [vmem:[#allocation2 + $0x14a] sm:$0x1] %vm3230, %v3299
        %3324 = vst.msk [vmem:[#allocation2 + $0x172] sm:$0x1] %vm3228, %v3301
        %3325 = vst.msk [vmem:[#allocation2 + $0x17a] sm:$0x1] %vm3230, %v3301
        %3326 = vrot.lane.b32.xlu0 %v3175, 40
        %v3327 = vpop.permute.xlu0 %3326
        %3328 = vrot.lane.b32.xlu0 %v3179, 40
        %v3329 = vpop.permute.xlu0 %3328
        %3330 = vrot.lane.b32.xlu0 %v3183, 40
        %v3331 = vpop.permute.xlu0 %3330
        %3332 = vrot.lane.b32.xlu0 %v3187, 40
        %v3333 = vpop.permute.xlu0 %3332
        %3334 = vrot.lane.b32.xlu0 %v3191, 40
        %v3335 = vpop.permute.xlu0 %3334
        %3336 = vrot.lane.b32.xlu0 %v3195, 40
        %v3337 = vpop.permute.xlu0 %3336
        %3338 = vrot.lane.b32.xlu0 %v3199, 40
        %v3339 = vpop.permute.xlu0 %3338
        %3340 = vrot.lane.b32.xlu0 %v3203, 40
        %v3341 = vpop.permute.xlu0 %3340
        %3350 = vst.msk [vmem:[#allocation2 + $0x23] sm:$0x1] %vm3228, %v3327
        %3351 = vst.msk [vmem:[#allocation2 + $0x2b] sm:$0x1] %vm3230, %v3327
        %3352 = vst.msk [vmem:[#allocation2 + $0x53] sm:$0x1] %vm3228, %v3329
        %3353 = vst.msk [vmem:[#allocation2 + $0x5b] sm:$0x1] %vm3230, %v3329
        %3354 = vst.msk [vmem:[#allocation2 + $0x83] sm:$0x1] %vm3228, %v3331
        %3355 = vst.msk [vmem:[#allocation2 + $0x8b] sm:$0x1] %vm3230, %v3331
        %3356 = vst.msk [vmem:[#allocation2 + $0xb3] sm:$0x1] %vm3228, %v3333
        %3357 = vst.msk [vmem:[#allocation2 + $0xbb] sm:$0x1] %vm3230, %v3333
        %3358 = vst.msk [vmem:[#allocation2 + $0xe3] sm:$0x1] %vm3228, %v3335
        %3359 = vst.msk [vmem:[#allocation2 + $0xeb] sm:$0x1] %vm3230, %v3335
        %3360 = vst.msk [vmem:[#allocation2 + $0x113] sm:$0x1] %vm3228, %v3337
        %3361 = vst.msk [vmem:[#allocation2 + $0x11b] sm:$0x1] %vm3230, %v3337
        %3362 = vst.msk [vmem:[#allocation2 + $0x143] sm:$0x1] %vm3228, %v3339
        %3363 = vst.msk [vmem:[#allocation2 + $0x14b] sm:$0x1] %vm3230, %v3339
        %3364 = vst.msk [vmem:[#allocation2 + $0x173] sm:$0x1] %vm3228, %v3341
        %3365 = vst.msk [vmem:[#allocation2 + $0x17b] sm:$0x1] %vm3230, %v3341
        %3366 = vrot.lane.b32.xlu0 %v3175, 32
        %v3367 = vpop.permute.xlu0 %3366
        %3368 = vrot.lane.b32.xlu0 %v3179, 32
        %v3369 = vpop.permute.xlu0 %3368
        %3370 = vrot.lane.b32.xlu0 %v3183, 32
        %v3371 = vpop.permute.xlu0 %3370
        %3372 = vrot.lane.b32.xlu0 %v3187, 32
        %v3373 = vpop.permute.xlu0 %3372
        %3374 = vrot.lane.b32.xlu0 %v3191, 32
        %v3375 = vpop.permute.xlu0 %3374
        %3376 = vrot.lane.b32.xlu0 %v3195, 32
        %v3377 = vpop.permute.xlu0 %3376
        %3378 = vrot.lane.b32.xlu0 %v3199, 32
        %v3379 = vpop.permute.xlu0 %3378
        %3380 = vrot.lane.b32.xlu0 %v3203, 32
        %v3381 = vpop.permute.xlu0 %3380
        %3390 = vst.msk [vmem:[#allocation2 + $0x24] sm:$0x1] %vm3228, %v3367
        %3391 = vst.msk [vmem:[#allocation2 + $0x2c] sm:$0x1] %vm3230, %v3367
        %3392 = vst.msk [vmem:[#allocation2 + $0x54] sm:$0x1] %vm3228, %v3369
        %3393 = vst.msk [vmem:[#allocation2 + $0x5c] sm:$0x1] %vm3230, %v3369
        %3394 = vst.msk [vmem:[#allocation2 + $0x84] sm:$0x1] %vm3228, %v3371
        %3395 = vst.msk [vmem:[#allocation2 + $0x8c] sm:$0x1] %vm3230, %v3371
        %3396 = vst.msk [vmem:[#allocation2 + $0xb4] sm:$0x1] %vm3228, %v3373
        %3397 = vst.msk [vmem:[#allocation2 + $0xbc] sm:$0x1] %vm3230, %v3373
        %3398 = vst.msk [vmem:[#allocation2 + $0xe4] sm:$0x1] %vm3228, %v3375
        %3399 = vst.msk [vmem:[#allocation2 + $0xec] sm:$0x1] %vm3230, %v3375
        %3400 = vst.msk [vmem:[#allocation2 + $0x114] sm:$0x1] %vm3228, %v3377
        %3401 = vst.msk [vmem:[#allocation2 + $0x11c] sm:$0x1] %vm3230, %v3377
        %3402 = vst.msk [vmem:[#allocation2 + $0x144] sm:$0x1] %vm3228, %v3379
        %3403 = vst.msk [vmem:[#allocation2 + $0x14c] sm:$0x1] %vm3230, %v3379
        %3404 = vst.msk [vmem:[#allocation2 + $0x174] sm:$0x1] %vm3228, %v3381
        %3405 = vst.msk [vmem:[#allocation2 + $0x17c] sm:$0x1] %vm3230, %v3381
        %3406 = vrot.lane.b32.xlu0 %v3175, 24
        %v3407 = vpop.permute.xlu0 %3406
        %3408 = vrot.lane.b32.xlu0 %v3179, 24
        %v3409 = vpop.permute.xlu0 %3408
        %3410 = vrot.lane.b32.xlu0 %v3183, 24
        %v3411 = vpop.permute.xlu0 %3410
        %3412 = vrot.lane.b32.xlu0 %v3187, 24
        %v3413 = vpop.permute.xlu0 %3412
        %3414 = vrot.lane.b32.xlu0 %v3191, 24
        %v3415 = vpop.permute.xlu0 %3414
        %3416 = vrot.lane.b32.xlu0 %v3195, 24
        %v3417 = vpop.permute.xlu0 %3416
        %3418 = vrot.lane.b32.xlu0 %v3199, 24
        %v3419 = vpop.permute.xlu0 %3418
        %3420 = vrot.lane.b32.xlu0 %v3203, 24
        %v3421 = vpop.permute.xlu0 %3420
        %3430 = vst.msk [vmem:[#allocation2 + $0x25] sm:$0x1] %vm3228, %v3407
        %3431 = vst.msk [vmem:[#allocation2 + $0x2d] sm:$0x1] %vm3230, %v3407
        %3432 = vst.msk [vmem:[#allocation2 + $0x55] sm:$0x1] %vm3228, %v3409
        %3433 = vst.msk [vmem:[#allocation2 + $0x5d] sm:$0x1] %vm3230, %v3409
        %3434 = vst.msk [vmem:[#allocation2 + $0x85] sm:$0x1] %vm3228, %v3411
        %3435 = vst.msk [vmem:[#allocation2 + $0x8d] sm:$0x1] %vm3230, %v3411
        %3436 = vst.msk [vmem:[#allocation2 + $0xb5] sm:$0x1] %vm3228, %v3413
        %3437 = vst.msk [vmem:[#allocation2 + $0xbd] sm:$0x1] %vm3230, %v3413
        %3438 = vst.msk [vmem:[#allocation2 + $0xe5] sm:$0x1] %vm3228, %v3415
        %3439 = vst.msk [vmem:[#allocation2 + $0xed] sm:$0x1] %vm3230, %v3415
        %3440 = vst.msk [vmem:[#allocation2 + $0x115] sm:$0x1] %vm3228, %v3417
        %3441 = vst.msk [vmem:[#allocation2 + $0x11d] sm:$0x1] %vm3230, %v3417
        %3442 = vst.msk [vmem:[#allocation2 + $0x145] sm:$0x1] %vm3228, %v3419
        %3443 = vst.msk [vmem:[#allocation2 + $0x14d] sm:$0x1] %vm3230, %v3419
        %3444 = vst.msk [vmem:[#allocation2 + $0x175] sm:$0x1] %vm3228, %v3421
        %3445 = vst.msk [vmem:[#allocation2 + $0x17d] sm:$0x1] %vm3230, %v3421
        %3446 = vrot.lane.b32.xlu0 %v3175, 16
        %v3447 = vpop.permute.xlu0 %3446
        %3448 = vrot.lane.b32.xlu0 %v3179, 16
        %v3449 = vpop.permute.xlu0 %3448
        %3450 = vrot.lane.b32.xlu0 %v3183, 16
        %v3451 = vpop.permute.xlu0 %3450
        %3452 = vrot.lane.b32.xlu0 %v3187, 16
        %v3453 = vpop.permute.xlu0 %3452
        %3454 = vrot.lane.b32.xlu0 %v3191, 16
        %v3455 = vpop.permute.xlu0 %3454
        %3456 = vrot.lane.b32.xlu0 %v3195, 16
        %v3457 = vpop.permute.xlu0 %3456
        %3458 = vrot.lane.b32.xlu0 %v3199, 16
        %v3459 = vpop.permute.xlu0 %3458
        %3460 = vrot.lane.b32.xlu0 %v3203, 16
        %v3461 = vpop.permute.xlu0 %3460
        %3470 = vst.msk [vmem:[#allocation2 + $0x26] sm:$0x1] %vm3228, %v3447
        %3471 = vst.msk [vmem:[#allocation2 + $0x2e] sm:$0x1] %vm3230, %v3447
        %3472 = vst.msk [vmem:[#allocation2 + $0x56] sm:$0x1] %vm3228, %v3449
        %3473 = vst.msk [vmem:[#allocation2 + $0x5e] sm:$0x1] %vm3230, %v3449
        %3474 = vst.msk [vmem:[#allocation2 + $0x86] sm:$0x1] %vm3228, %v3451
        %3475 = vst.msk [vmem:[#allocation2 + $0x8e] sm:$0x1] %vm3230, %v3451
        %3476 = vst.msk [vmem:[#allocation2 + $0xb6] sm:$0x1] %vm3228, %v3453
        %3477 = vst.msk [vmem:[#allocation2 + $0xbe] sm:$0x1] %vm3230, %v3453
        %3478 = vst.msk [vmem:[#allocation2 + $0xe6] sm:$0x1] %vm3228, %v3455
        %3479 = vst.msk [vmem:[#allocation2 + $0xee] sm:$0x1] %vm3230, %v3455
        %3480 = vst.msk [vmem:[#allocation2 + $0x116] sm:$0x1] %vm3228, %v3457
        %3481 = vst.msk [vmem:[#allocation2 + $0x11e] sm:$0x1] %vm3230, %v3457
        %3482 = vst.msk [vmem:[#allocation2 + $0x146] sm:$0x1] %vm3228, %v3459
        %3483 = vst.msk [vmem:[#allocation2 + $0x14e] sm:$0x1] %vm3230, %v3459
        %3484 = vst.msk [vmem:[#allocation2 + $0x176] sm:$0x1] %vm3228, %v3461
        %3485 = vst.msk [vmem:[#allocation2 + $0x17e] sm:$0x1] %vm3230, %v3461
        %3486 = vrot.lane.b32.xlu0 %v3175, 8
        %v3487 = vpop.permute.xlu0 %3486
        %3488 = vrot.lane.b32.xlu0 %v3179, 8
        %v3489 = vpop.permute.xlu0 %3488
        %3490 = vrot.lane.b32.xlu0 %v3183, 8
        %v3491 = vpop.permute.xlu0 %3490
        %3492 = vrot.lane.b32.xlu0 %v3187, 8
        %v3493 = vpop.permute.xlu0 %3492
        %3494 = vrot.lane.b32.xlu0 %v3191, 8
        %v3495 = vpop.permute.xlu0 %3494
        %3496 = vrot.lane.b32.xlu0 %v3195, 8
        %v3497 = vpop.permute.xlu0 %3496
        %3498 = vrot.lane.b32.xlu0 %v3199, 8
        %v3499 = vpop.permute.xlu0 %3498
        %3500 = vrot.lane.b32.xlu0 %v3203, 8
        %v3501 = vpop.permute.xlu0 %3500
        %3510 = vst.msk [vmem:[#allocation2 + $0x27] sm:$0x1] %vm3228, %v3487
        %3511 = vst.msk [vmem:[#allocation2 + $0x2f] sm:$0x1] %vm3230, %v3487
        %3512 = vst.msk [vmem:[#allocation2 + $0x57] sm:$0x1] %vm3228, %v3489
        %3513 = vst.msk [vmem:[#allocation2 + $0x5f] sm:$0x1] %vm3230, %v3489
        %3514 = vst.msk [vmem:[#allocation2 + $0x87] sm:$0x1] %vm3228, %v3491
        %3515 = vst.msk [vmem:[#allocation2 + $0x8f] sm:$0x1] %vm3230, %v3491
        %3516 = vst.msk [vmem:[#allocation2 + $0xb7] sm:$0x1] %vm3228, %v3493
        %3517 = vst.msk [vmem:[#allocation2 + $0xbf] sm:$0x1] %vm3230, %v3493
        %3518 = vst.msk [vmem:[#allocation2 + $0xe7] sm:$0x1] %vm3228, %v3495
        %3519 = vst.msk [vmem:[#allocation2 + $0xef] sm:$0x1] %vm3230, %v3495
        %3520 = vst.msk [vmem:[#allocation2 + $0x117] sm:$0x1] %vm3228, %v3497
        %3521 = vst.msk [vmem:[#allocation2 + $0x11f] sm:$0x1] %vm3230, %v3497
        %3522 = vst.msk [vmem:[#allocation2 + $0x147] sm:$0x1] %vm3228, %v3499
        %3523 = vst.msk [vmem:[#allocation2 + $0x14f] sm:$0x1] %vm3230, %v3499
        %3524 = vst.msk [vmem:[#allocation2 + $0x177] sm:$0x1] %vm3228, %v3501
        %3525 = vst.msk [vmem:[#allocation2 + $0x17f] sm:$0x1] %vm3230, %v3501
        %v3526 = vld [vmem:[#allocation2] sm:$0xff]
        %v3527 = vld [vmem:[#allocation2 + $0x8] sm:$0xff]
        %v3528 = vld [vmem:[#allocation2 + $0x10] sm:$0xff]
        %v3529 = vld [vmem:[#allocation2 + $0x18] sm:$0xff]
        %v3530 = vld [vmem:[#allocation2 + $0x20] sm:$0xff]
        %v3531 = vld [vmem:[#allocation2 + $0x28] sm:$0xff]
        %v3532 = vld [vmem:[#allocation2 + $0x30] sm:$0xff]
        %v3533 = vld [vmem:[#allocation2 + $0x38] sm:$0xff]
        %v3534 = vld [vmem:[#allocation2 + $0x40] sm:$0xff]
        %v3535 = vld [vmem:[#allocation2 + $0x48] sm:$0xff]
        %v3536 = vld [vmem:[#allocation2 + $0x50] sm:$0xff]
        %v3537 = vld [vmem:[#allocation2 + $0x58] sm:$0xff]
        %v3538 = vld [vmem:[#allocation2 + $0x60] sm:$0xff]
        %v3539 = vld [vmem:[#allocation2 + $0x68] sm:$0xff]
        %v3540 = vld [vmem:[#allocation2 + $0x70] sm:$0xff]
        %v3541 = vld [vmem:[#allocation2 + $0x78] sm:$0xff]
        %v3542 = vld [vmem:[#allocation2 + $0x80] sm:$0xff]
        %v3543 = vld [vmem:[#allocation2 + $0x88] sm:$0xff]
        %v3544 = vld [vmem:[#allocation2 + $0x90] sm:$0xff]
        %v3545 = vld [vmem:[#allocation2 + $0x98] sm:$0xff]
        %v3546 = vld [vmem:[#allocation2 + $0xa0] sm:$0xff]
        %v3547 = vld [vmem:[#allocation2 + $0xa8] sm:$0xff]
        %v3548 = vld [vmem:[#allocation2 + $0xb0] sm:$0xff]
        %v3549 = vld [vmem:[#allocation2 + $0xb8] sm:$0xff]
        %v3550 = vld [vmem:[#allocation2 + $0xc0] sm:$0xff]
        %v3551 = vld [vmem:[#allocation2 + $0xc8] sm:$0xff]
        %v3552 = vld [vmem:[#allocation2 + $0xd0] sm:$0xff]
        %v3553 = vld [vmem:[#allocation2 + $0xd8] sm:$0xff]
        %v3554 = vld [vmem:[#allocation2 + $0xe0] sm:$0xff]
        %v3555 = vld [vmem:[#allocation2 + $0xe8] sm:$0xff]
        %v3556 = vld [vmem:[#allocation2 + $0xf0] sm:$0xff]
        %v3557 = vld [vmem:[#allocation2 + $0xf8] sm:$0xff]
        %v3558 = vld [vmem:[#allocation2 + $0x100] sm:$0xff]
        %v3559 = vld [vmem:[#allocation2 + $0x108] sm:$0xff]
        %v3560 = vld [vmem:[#allocation2 + $0x110] sm:$0xff]
        %v3561 = vld [vmem:[#allocation2 + $0x118] sm:$0xff]
        %v3562 = vld [vmem:[#allocation2 + $0x120] sm:$0xff]
        %v3563 = vld [vmem:[#allocation2 + $0x128] sm:$0xff]
        %v3564 = vld [vmem:[#allocation2 + $0x130] sm:$0xff]
        %v3565 = vld [vmem:[#allocation2 + $0x138] sm:$0xff]
        %v3566 = vld [vmem:[#allocation2 + $0x140] sm:$0xff]
        %v3567 = vld [vmem:[#allocation2 + $0x148] sm:$0xff]
        %v3568 = vld [vmem:[#allocation2 + $0x150] sm:$0xff]
        %v3569 = vld [vmem:[#allocation2 + $0x158] sm:$0xff]
        %v3570 = vld [vmem:[#allocation2 + $0x160] sm:$0xff]
        %v3571 = vld [vmem:[#allocation2 + $0x168] sm:$0xff]
        %v3572 = vld [vmem:[#allocation2 + $0x170] sm:$0xff]
        %v3573 = vld [vmem:[#allocation2 + $0x178] sm:$0xff]
        %v3574 = vld [vmem:[#allocation6] sm:$0xff]
        %v3575 = vld [vmem:[#allocation6 + $0x8] sm:$0xff]
        %v3576 = vld [vmem:[#allocation6 + $0x10] sm:$0xff]
        %v3577 = vld [vmem:[#allocation6 + $0x18] sm:$0xff]
        %v3578 = vld [vmem:[#allocation6 + $0x20] sm:$0xff]
        %v3579 = vld [vmem:[#allocation6 + $0x28] sm:$0xff]
        %v3580 = vld [vmem:[#allocation6 + $0x30] sm:$0xff]
        %v3581 = vld [vmem:[#allocation6 + $0x38] sm:$0xff]
        %v3582 = vld [vmem:[#allocation6 + $0x40] sm:$0xff]
        %v3583 = vld [vmem:[#allocation6 + $0x48] sm:$0xff]
        %v3584 = vld [vmem:[#allocation6 + $0x50] sm:$0xff]
        %v3585 = vld [vmem:[#allocation6 + $0x58] sm:$0xff]
        %v3586 = vld [vmem:[#allocation6 + $0x60] sm:$0xff]
        %v3587 = vld [vmem:[#allocation6 + $0x68] sm:$0xff]
        %v3588 = vld [vmem:[#allocation6 + $0x70] sm:$0xff]
        %v3589 = vld [vmem:[#allocation6 + $0x78] sm:$0xff]
        %v3590 = vld [vmem:[#allocation6 + $0x80] sm:$0xff]
        %v3591 = vld [vmem:[#allocation6 + $0x88] sm:$0xff]
        %v3592 = vld [vmem:[#allocation6 + $0x90] sm:$0xff]
        %v3593 = vld [vmem:[#allocation6 + $0x98] sm:$0xff]
        %v3594 = vld [vmem:[#allocation6 + $0xa0] sm:$0xff]
        %v3595 = vld [vmem:[#allocation6 + $0xa8] sm:$0xff]
        %v3596 = vld [vmem:[#allocation6 + $0xb0] sm:$0xff]
        %v3597 = vld [vmem:[#allocation6 + $0xb8] sm:$0xff]
        %v3598 = vld [vmem:[#allocation6 + $0xc0] sm:$0xff]
        %v3599 = vld [vmem:[#allocation6 + $0xc8] sm:$0xff]
        %v3600 = vld [vmem:[#allocation6 + $0xd0] sm:$0xff]
        %v3601 = vld [vmem:[#allocation6 + $0xd8] sm:$0xff]
        %v3602 = vld [vmem:[#allocation6 + $0xe0] sm:$0xff]
        %v3603 = vld [vmem:[#allocation6 + $0xe8] sm:$0xff]
        %v3604 = vld [vmem:[#allocation6 + $0xf0] sm:$0xff]
        %v3605 = vld [vmem:[#allocation6 + $0xf8] sm:$0xff]
        %v3606 = vld [vmem:[#allocation6 + $0x100] sm:$0xff]
        %v3607 = vld [vmem:[#allocation6 + $0x108] sm:$0xff]
        %v3608 = vld [vmem:[#allocation6 + $0x110] sm:$0xff]
        %v3609 = vld [vmem:[#allocation6 + $0x118] sm:$0xff]
        %v3610 = vld [vmem:[#allocation6 + $0x120] sm:$0xff]
        %v3611 = vld [vmem:[#allocation6 + $0x128] sm:$0xff]
        %v3612 = vld [vmem:[#allocation6 + $0x130] sm:$0xff]
        %v3613 = vld [vmem:[#allocation6 + $0x138] sm:$0xff]
        %v3614 = vld [vmem:[#allocation6 + $0x140] sm:$0xff]
        %v3615 = vld [vmem:[#allocation6 + $0x148] sm:$0xff]
        %v3616 = vld [vmem:[#allocation6 + $0x150] sm:$0xff]
        %v3617 = vld [vmem:[#allocation6 + $0x158] sm:$0xff]
        %v3618 = vld [vmem:[#allocation6 + $0x160] sm:$0xff]
        %v3619 = vld [vmem:[#allocation6 + $0x168] sm:$0xff]
        %v3620 = vld [vmem:[#allocation6 + $0x170] sm:$0xff]
        %v3621 = vld [vmem:[#allocation6 + $0x178] sm:$0xff]
        %v3622 = vld [vmem:[#allocation6 + $0x180] sm:$0xff]
        %v3623 = vld [vmem:[#allocation6 + $0x188] sm:$0xff]
        %v3624 = vld [vmem:[#allocation6 + $0x190] sm:$0xff]
        %v3625 = vld [vmem:[#allocation6 + $0x198] sm:$0xff]
        %v3626 = vld [vmem:[#allocation6 + $0x1a0] sm:$0xff]
        %v3627 = vld [vmem:[#allocation6 + $0x1a8] sm:$0xff]
        %v3628 = vld [vmem:[#allocation6 + $0x1b0] sm:$0xff]
        %v3629 = vld [vmem:[#allocation6 + $0x1b8] sm:$0xff]
        %v3630 = vld [vmem:[#allocation6 + $0x1c0] sm:$0xff]
        %v3631 = vld [vmem:[#allocation6 + $0x1c8] sm:$0xff]
        %v3632 = vld [vmem:[#allocation6 + $0x1d0] sm:$0xff]
        %v3633 = vld [vmem:[#allocation6 + $0x1d8] sm:$0xff]
        %v3634 = vld [vmem:[#allocation6 + $0x1e0] sm:$0xff]
        %v3635 = vld [vmem:[#allocation6 + $0x1e8] sm:$0xff]
        %v3636 = vld [vmem:[#allocation6 + $0x1f0] sm:$0xff]
        %v3637 = vld [vmem:[#allocation6 + $0x1f8] sm:$0xff]
        %v3638 = vld [vmem:[#allocation6 + $0x200] sm:$0xff]
        %v3639 = vld [vmem:[#allocation6 + $0x208] sm:$0xff]
        %v3640 = vld [vmem:[#allocation6 + $0x210] sm:$0xff]
        %v3641 = vld [vmem:[#allocation6 + $0x218] sm:$0xff]
        %v3642 = vld [vmem:[#allocation6 + $0x220] sm:$0xff]
        %v3643 = vld [vmem:[#allocation6 + $0x228] sm:$0xff]
        %v3644 = vld [vmem:[#allocation6 + $0x230] sm:$0xff]
        %v3645 = vld [vmem:[#allocation6 + $0x238] sm:$0xff]
        %v3646 = vld [vmem:[#allocation6 + $0x240] sm:$0xff]
        %v3647 = vld [vmem:[#allocation6 + $0x248] sm:$0xff]
        %v3648 = vld [vmem:[#allocation6 + $0x250] sm:$0xff]
        %v3649 = vld [vmem:[#allocation6 + $0x258] sm:$0xff]
        %v3650 = vld [vmem:[#allocation6 + $0x260] sm:$0xff]
        %v3651 = vld [vmem:[#allocation6 + $0x268] sm:$0xff]
        %v3652 = vld [vmem:[#allocation6 + $0x270] sm:$0xff]
        %v3653 = vld [vmem:[#allocation6 + $0x278] sm:$0xff]
        %v3654 = vld [vmem:[#allocation6 + $0x280] sm:$0xff]
        %v3655 = vld [vmem:[%s2] sm:$0x1]
        %v3657 = vlaneseq
        %v3658 = vshrl.u32 %v3657, 7
        %v3659 = vsub.s32 0, %v3658
        %v3660 = vrot.slane %v3655, %v3659
        %vm3662 = vcmask 64512
        %v3664 = vsel %vm3662, %v3531, 0
        %v3667 = vsel %vm3662, %v3537, 0
        %v3670 = vsel %vm3662, %v3543, 0
        %v3673 = vsel %vm3662, %v3549, 0
        %v3676 = vsel %vm3662, %v3555, 0
        %v3679 = vsel %vm3662, %v3561, 0
        %v3682 = vsel %vm3662, %v3567, 0
        %v3685 = vsel %vm3662, %v3573, 0
        %3687 = vmatprep.subr.mxu0 0.0
        %3688 = vmatpush1.msra.mxu0 %v3574
        %3689 = vmatprep.subr.mxu0 0.0
        %3690 = vmatpush1.msra.mxu0 %v3575
        %3691 = vmatprep.subr.mxu0 0.0
        %3692 = vmatpush1.msra.mxu0 %v3576
        %3693 = vmatprep.subr.mxu0 0.0
        %3694 = vmatpush1.msra.mxu0 %v3577
        %3695 = vmatprep.subr.mxu0 0.0
        %3696 = vmatpush1.msra.mxu0 %v3578
        %3697 = vmatprep.subr.mxu0 0.0
        %3698 = vmatpush1.msra.mxu0 %v3579
        %3699 = vmatprep.subr.mxu0 0.0
        %3700 = vmatpush1.msra.mxu0 %v3580
        %3701 = vmatprep.subr.mxu0 0.0
        %3702 = vmatpush1.msra.mxu0 %v3581
        %3703 = vmatprep.subr.mxu0 0.0
        %3704 = vmatpush1.msra.mxu0 %v3582
        %3705 = vmatprep.subr.mxu0 0.0
        %3706 = vmatpush1.msra.mxu0 %v3583
        %3707 = vmatprep.subr.mxu0 0.0
        %3708 = vmatpush1.msra.mxu0 %v3584
        %3709 = vmatprep.subr.mxu0 0.0
        %3710 = vmatpush1.msra.mxu0 %v3585
        %3711 = vmatprep.subr.mxu0 0.0
        %3712 = vmatpush1.msra.mxu0 %v3586
        %3713 = vmatprep.subr.mxu0 0.0
        %3714 = vmatpush1.msra.mxu0 %v3587
        %3715 = vmatprep.subr.mxu0 0.0
        %3716 = vmatpush1.msra.mxu0 %v3588
        %3717 = vmatprep.subr.mxu0 0.0
        %3718 = vmatpush1.msra.mxu0 %v3589
        %3719 = vmatprep.subr.mxu0 0.0
        %3720 = vmatpush1.msra.mxu0 %v3590
        %3721 = vmatprep.subr.mxu0 0.0
        %3722 = vmatpush1.msra.mxu0 %v3591
        %3723 = vmatprep.subr.mxu0 0.0
        %3724 = vmatpush1.msra.mxu0 %v3592
        %3725 = vmatprep.subr.mxu0 0.0
        %3726 = vmatpush1.msra.mxu0 %v3593
        %3727 = vmatprep.subr.mxu0 0.0
        %3728 = vmatpush1.msra.mxu0 %v3594
        %3729 = vmatprep.subr.mxu0 0.0
        %3730 = vmatpush1.msra.mxu0 %v3595
        %3731 = vmatprep.subr.mxu0 0.0
        %3732 = vmatpush1.msra.mxu0 %v3596
        %3733 = vmatprep.subr.mxu0 0.0
        %3734 = vmatpush1.msra.mxu0 %v3597
        %3735 = vmatprep.subr.mxu0 0.0
        %3736 = vmatpush1.msra.mxu0 %v3598
        %3737 = vmatprep.subr.mxu0 0.0
        %3738 = vmatpush1.msra.mxu0 %v3599
        %3739 = vmatprep.subr.mxu0 0.0
        %3740 = vmatpush1.msra.mxu0 %v3600
        %3741 = vmatprep.subr.mxu0 0.0
        %3742 = vmatpush1.msra.mxu0 %v3601
        %3743 = vmatprep.subr.mxu0 0.0
        %3744 = vmatpush1.msra.mxu0 %v3602
        %3745 = vmatprep.subr.mxu0 0.0
        %3746 = vmatpush1.msra.mxu0 %v3603
        %3747 = vmatprep.subr.mxu0 0.0
        %3748 = vmatpush1.msra.mxu0 %v3604
        %3749 = vmatprep.subr.mxu0 0.0
        %3750 = vmatpush1.msra.mxu0 %v3605
        %3751 = vmatprep.mubr.f32.mxu0 %v3527
        %3752 = vmatmul.mubr.f32.gmra.mrb[0].mxu0 %v3526
        %v3753 = vpop.f32.mrb[0].mxu0
        %v3754 = vadd.f32 %v3660, %v3753
        %v3755 = vpop.f32.mrb[0].mxu0
        %3756 = vmatprep.mubr.f32.mxu0 %v3533
        %3757 = vmatmul.mubr.f32.gmra.mrb[0].mxu0 %v3532
        %v3758 = vpop.f32.mrb[0].mxu0
        %v3759 = vadd.f32 %v3660, %v3758
        %v3760 = vpop.f32.mrb[0].mxu0
        %3761 = vmatprep.mubr.f32.mxu0 %v3539
        %3762 = vmatmul.mubr.f32.gmra.mrb[0].mxu0 %v3538
        %v3763 = vpop.f32.mrb[0].mxu0
        %v3764 = vadd.f32 %v3660, %v3763
        %v3765 = vpop.f32.mrb[0].mxu0
        %3766 = vmatprep.mubr.f32.mxu0 %v3545
        %3767 = vmatmul.mubr.f32.gmra.mrb[0].mxu0 %v3544
        %v3768 = vpop.f32.mrb[0].mxu0
        %v3769 = vadd.f32 %v3660, %v3768
        %v3770 = vpop.f32.mrb[0].mxu0
        %3771 = vmatprep.mubr.f32.mxu0 %v3551
        %3772 = vmatmul.mubr.f32.gmra.mrb[0].mxu0 %v3550
        %v3773 = vpop.f32.mrb[0].mxu0
        %v3774 = vadd.f32 %v3660, %v3773
        %v3775 = vpop.f32.mrb[0].mxu0
        %3776 = vmatprep.mubr.f32.mxu0 %v3557
        %3777 = vmatmul.mubr.f32.gmra.mrb[0].mxu0 %v3556
        %v3778 = vpop.f32.mrb[0].mxu0
        %v3779 = vadd.f32 %v3660, %v3778
        %v3780 = vpop.f32.mrb[0].mxu0
        %3781 = vmatprep.mubr.f32.mxu0 %v3563
        %3782 = vmatmul.mubr.f32.gmra.mrb[0].mxu0 %v3562
        %v3783 = vpop.f32.mrb[0].mxu0
        %v3784 = vadd.f32 %v3660, %v3783
        %v3785 = vpop.f32.mrb[0].mxu0
        %3786 = vmatprep.mubr.f32.mxu0 %v3569
        %3787 = vmatmul.mubr.f32.gmra.mrb[0].mxu0 %v3568
        %v3788 = vpop.f32.mrb[0].mxu0
        %v3789 = vadd.f32 %v3660, %v3788
        %v3790 = vpop.f32.mrb[0].mxu0
        %3791 = vdwg.mxu0
        %3792 = vmatprep.subr.mxu0 0.0
        %3793 = vmatpush1.msra.mxu0 %v3606
        %3794 = vmatprep.subr.mxu0 0.0
        %3795 = vmatpush1.msra.mxu0 %v3607
        %3796 = vmatprep.subr.mxu0 0.0
        %3797 = vmatpush1.msra.mxu0 %v3608
        %3798 = vmatprep.subr.mxu0 0.0
        %3799 = vmatpush1.msra.mxu0 %v3609
        %3800 = vmatprep.subr.mxu0 0.0
        %3801 = vmatpush1.msra.mxu0 %v3610
        %3802 = vmatprep.subr.mxu0 0.0
        %3803 = vmatpush1.msra.mxu0 %v3611
        %3804 = vmatprep.subr.mxu0 0.0
        %3805 = vmatpush1.msra.mxu0 %v3612
        %3806 = vmatprep.subr.mxu0 0.0
        %3807 = vmatpush1.msra.mxu0 %v3613
        %3808 = vmatprep.subr.mxu0 0.0
        %3809 = vmatpush1.msra.mxu0 %v3614
        %3810 = vmatprep.subr.mxu0 0.0
        %3811 = vmatpush1.msra.mxu0 %v3615
        %3812 = vmatprep.subr.mxu0 0.0
        %3813 = vmatpush1.msra.mxu0 %v3616
        %3814 = vmatprep.subr.mxu0 0.0
        %3815 = vmatpush1.msra.mxu0 %v3617
        %3816 = vmatprep.subr.mxu0 0.0
        %3817 = vmatpush1.msra.mxu0 %v3618
        %3818 = vmatprep.subr.mxu0 0.0
        %3819 = vmatpush1.msra.mxu0 %v3619
        %3820 = vmatprep.subr.mxu0 0.0
        %3821 = vmatpush1.msra.mxu0 %v3620
        %3822 = vmatprep.subr.mxu0 0.0
        %3823 = vmatpush1.msra.mxu0 %v3621
        %3824 = vmatprep.subr.mxu0 0.0
        %3825 = vmatpush1.msra.mxu0 %v3622
        %3826 = vmatprep.subr.mxu0 0.0
        %3827 = vmatpush1.msra.mxu0 %v3623
        %3828 = vmatprep.subr.mxu0 0.0
        %3829 = vmatpush1.msra.mxu0 %v3624
        %3830 = vmatprep.subr.mxu0 0.0
        %3831 = vmatpush1.msra.mxu0 %v3625
        %3832 = vmatprep.subr.mxu0 0.0
        %3833 = vmatpush1.msra.mxu0 %v3626
        %3834 = vmatprep.subr.mxu0 0.0
        %3835 = vmatpush1.msra.mxu0 %v3627
        %3836 = vmatprep.subr.mxu0 0.0
        %3837 = vmatpush1.msra.mxu0 %v3628
        %3838 = vmatprep.subr.mxu0 0.0
        %3839 = vmatpush1.msra.mxu0 %v3629
        %3840 = vmatprep.subr.mxu0 0.0
        %3841 = vmatpush1.msra.mxu0 %v3630
        %3842 = vmatprep.subr.mxu0 0.0
        %3843 = vmatpush1.msra.mxu0 %v3631
        %3844 = vmatprep.subr.mxu0 0.0
        %3845 = vmatpush1.msra.mxu0 %v3632
        %3846 = vmatprep.subr.mxu0 0.0
        %3847 = vmatpush1.msra.mxu0 %v3633
        %3848 = vmatprep.subr.mxu0 0.0
        %3849 = vmatpush1.msra.mxu0 %v3634
        %3850 = vmatprep.subr.mxu0 0.0
        %3851 = vmatpush1.msra.mxu0 %v3635
        %3852 = vmatprep.subr.mxu0 0.0
        %3853 = vmatpush1.msra.mxu0 %v3636
        %3854 = vmatprep.subr.mxu0 0.0
        %3855 = vmatpush1.msra.mxu0 %v3637
        %3856 = vmatprep.mubr.f32.mxu0 %v3529
        %3857 = vmatmul.mubr.f32.gmra.mrb[0].mxu0 %v3528
        %v3858 = vpop.f32.mrb[0].mxu0
        %v3859 = vadd.f32 %v3754, %v3858
        %v3860 = vpop.f32.mrb[0].mxu0
        %3861 = vmatprep.mubr.f32.mxu0 %v3535
        %3862 = vmatmul.mubr.f32.gmra.mrb[0].mxu0 %v3534
        %v3863 = vpop.f32.mrb[0].mxu0
        %v3864 = vadd.f32 %v3759, %v3863
        %v3865 = vpop.f32.mrb[0].mxu0
        %3866 = vmatprep.mubr.f32.mxu0 %v3541
        %3867 = vmatmul.mubr.f32.gmra.mrb[0].mxu0 %v3540
        %v3868 = vpop.f32.mrb[0].mxu0
        %v3869 = vadd.f32 %v3764, %v3868
        %v3870 = vpop.f32.mrb[0].mxu0
        %3871 = vmatprep.mubr.f32.mxu0 %v3547
        %3872 = vmatmul.mubr.f32.gmra.mrb[0].mxu0 %v3546
        %v3873 = vpop.f32.mrb[0].mxu0
        %v3874 = vadd.f32 %v3769, %v3873
        %v3875 = vpop.f32.mrb[0].mxu0
        %3876 = vmatprep.mubr.f32.mxu0 %v3553
        %3877 = vmatmul.mubr.f32.gmra.mrb[0].mxu0 %v3552
        %v3878 = vpop.f32.mrb[0].mxu0
        %v3879 = vadd.f32 %v3774, %v3878
        %v3880 = vpop.f32.mrb[0].mxu0
        %3881 = vmatprep.mubr.f32.mxu0 %v3559
        %3882 = vmatmul.mubr.f32.gmra.mrb[0].mxu0 %v3558
        %v3883 = vpop.f32.mrb[0].mxu0
        %v3884 = vadd.f32 %v3779, %v3883
        %v3885 = vpop.f32.mrb[0].mxu0
        %3886 = vmatprep.mubr.f32.mxu0 %v3565
        %3887 = vmatmul.mubr.f32.gmra.mrb[0].mxu0 %v3564
        %v3888 = vpop.f32.mrb[0].mxu0
        %v3889 = vadd.f32 %v3784, %v3888
        %v3890 = vpop.f32.mrb[0].mxu0
        %3891 = vmatprep.mubr.f32.mxu0 %v3571
        %3892 = vmatmul.mubr.f32.gmra.mrb[0].mxu0 %v3570
        %v3893 = vpop.f32.mrb[0].mxu0
        %v3894 = vadd.f32 %v3789, %v3893
        %v3895 = vpop.f32.mrb[0].mxu0
        %3896 = vdwg.mxu0
        %3897 = vmatprep.subr.mxu0 0.0
        %3898 = vmatpush1.msra.mxu0 %v3638
        %3899 = vmatprep.subr.mxu0 0.0
        %3900 = vmatpush1.msra.mxu0 %v3639
        %3901 = vmatprep.subr.mxu0 0.0
        %3902 = vmatpush1.msra.mxu0 %v3640
        %3903 = vmatprep.subr.mxu0 0.0
        %3904 = vmatpush1.msra.mxu0 %v3641
        %3905 = vmatprep.subr.mxu0 0.0
        %3906 = vmatpush1.msra.mxu0 %v3642
        %3907 = vmatprep.subr.mxu0 0.0
        %3908 = vmatpush1.msra.mxu0 %v3643
        %3909 = vmatprep.subr.mxu0 0.0
        %3910 = vmatpush1.msra.mxu0 %v3644
        %3911 = vmatprep.subr.mxu0 0.0
        %3912 = vmatpush1.msra.mxu0 %v3645
        %3913 = vmatprep.subr.mxu0 0.0
        %3914 = vmatpush1.msra.mxu0 %v3646
        %3915 = vmatprep.subr.mxu0 0.0
        %3916 = vmatpush1.msra.mxu0 %v3647
        %3917 = vmatprep.subr.mxu0 0.0
        %3918 = vmatpush1.msra.mxu0 %v3648
        %3919 = vmatprep.subr.mxu0 0.0
        %3920 = vmatpush1.msra.mxu0 %v3649
        %3921 = vmatprep.subr.mxu0 0.0
        %3922 = vmatpush1.msra.mxu0 %v3650
        %3923 = vmatprep.subr.mxu0 0.0
        %3924 = vmatpush1.msra.mxu0 %v3651
        %3925 = vmatprep.subr.mxu0 0.0
        %3926 = vmatpush1.msra.mxu0 %v3652
        %3927 = vmatprep.subr.mxu0 0.0
        %3928 = vmatpush1.msra.mxu0 %v3653
        %3929 = vmatprep.subr.mxu0 0.0
        %3930 = vmatpush1.msra.mxu0 %v3654
        %3931 = vmatprep.subr.mxu0 0.0
        %3932 = vmatpush1.msra.mxu0 0.0
        %3933 = vmatprep.subr.mxu0 0.0
        %3934 = vmatpush1.msra.mxu0 0.0
        %3935 = vmatprep.subr.mxu0 0.0
        %3936 = vmatpush1.msra.mxu0 0.0
        %3937 = vmatprep.subr.mxu0 0.0
        %3938 = vmatpush1.msra.mxu0 0.0
        %3939 = vmatprep.subr.mxu0 0.0
        %3940 = vmatpush1.msra.mxu0 0.0
        %3941 = vmatprep.subr.mxu0 0.0
        %3942 = vmatpush1.msra.mxu0 0.0
        %3943 = vmatprep.subr.mxu0 0.0
        %3944 = vmatpush1.msra.mxu0 0.0
        %3945 = vmatprep.subr.mxu0 0.0
        %3946 = vmatpush1.msra.mxu0 0.0
        %3947 = vmatprep.subr.mxu0 0.0
        %3948 = vmatpush1.msra.mxu0 0.0
        %3949 = vmatprep.subr.mxu0 0.0
        %3950 = vmatpush1.msra.mxu0 0.0
        %3951 = vmatprep.subr.mxu0 0.0
        %3952 = vmatpush1.msra.mxu0 0.0
        %3953 = vmatprep.subr.mxu0 0.0
        %3954 = vmatpush1.msra.mxu0 0.0
        %3955 = vmatprep.subr.mxu0 0.0
        %3956 = vmatpush1.msra.mxu0 0.0
        %3957 = vmatprep.subr.mxu0 0.0
        %3958 = vmatpush1.msra.mxu0 0.0
        %3959 = vmatprep.subr.mxu0 0.0
        %3960 = vmatpush1.msra.mxu0 0.0
        %3961 = vmatprep.mubr.f32.mxu0 %v3664
        %3962 = vmatmul.mubr.f32.gmra.mrb[0].mxu0 %v3530
        %v3963 = vpop.f32.mrb[0].mxu0
        %v3964 = vadd.f32 %v3859, %v3963
        %v3965 = vpop.f32.mrb[0].mxu0
        %3966 = vmatprep.mubr.f32.mxu0 %v3667
        %3967 = vmatmul.mubr.f32.gmra.mrb[0].mxu0 %v3536
        %v3968 = vpop.f32.mrb[0].mxu0
        %v3969 = vadd.f32 %v3864, %v3968
        %v3970 = vpop.f32.mrb[0].mxu0
        %3971 = vmatprep.mubr.f32.mxu0 %v3670
        %3972 = vmatmul.mubr.f32.gmra.mrb[0].mxu0 %v3542
        %v3973 = vpop.f32.mrb[0].mxu0
        %v3974 = vadd.f32 %v3869, %v3973
        %v3975 = vpop.f32.mrb[0].mxu0
        %3976 = vmatprep.mubr.f32.mxu0 %v3673
        %3977 = vmatmul.mubr.f32.gmra.mrb[0].mxu0 %v3548
        %v3978 = vpop.f32.mrb[0].mxu0
        %v3979 = vadd.f32 %v3874, %v3978
        %v3980 = vpop.f32.mrb[0].mxu0
        %3981 = vmatprep.mubr.f32.mxu0 %v3676
        %3982 = vmatmul.mubr.f32.gmra.mrb[0].mxu0 %v3554
        %v3983 = vpop.f32.mrb[0].mxu0
        %v3984 = vadd.f32 %v3879, %v3983
        %v3985 = vpop.f32.mrb[0].mxu0
        %3986 = vmatprep.mubr.f32.mxu0 %v3679
        %3987 = vmatmul.mubr.f32.gmra.mrb[0].mxu0 %v3560
        %v3988 = vpop.f32.mrb[0].mxu0
        %v3989 = vadd.f32 %v3884, %v3988
        %v3990 = vpop.f32.mrb[0].mxu0
        %3991 = vmatprep.mubr.f32.mxu0 %v3682
        %3992 = vmatmul.mubr.f32.gmra.mrb[0].mxu0 %v3566
        %v3993 = vpop.f32.mrb[0].mxu0
        %v3994 = vadd.f32 %v3889, %v3993
        %v3995 = vpop.f32.mrb[0].mxu0
        %3996 = vmatprep.mubr.f32.mxu0 %v3685
        %3997 = vmatmul.mubr.f32.gmra.mrb[0].mxu0 %v3572
        %v3998 = vpop.f32.mrb[0].mxu0
        %v3999 = vadd.f32 %v3894, %v3998
        %v4000 = vpop.f32.mrb[0].mxu0
        %4001 = vdwg.mxu0
        %v4002 = vmax.f32 %v3964, 0.0
        %v4003 = vmax.f32 %v3969, 0.0
        %v4004 = vmax.f32 %v3974, 0.0
        %v4005 = vmax.f32 %v3979, 0.0
        %v4006 = vmax.f32 %v3984, 0.0
        %v4007 = vmax.f32 %v3989, 0.0
        %v4008 = vmax.f32 %v3994, 0.0
        %v4009 = vmax.f32 %v3999, 0.0
        %4010 = vst [vmem:[%s203] sm:$0xff] %v4002
        %4011 = vst [vmem:[%s203 + $0x8] sm:$0xff] %v4003
        %4012 = vst [vmem:[%s203 + $0x10] sm:$0xff] %v4004
        %4013 = vst [vmem:[%s203 + $0x18] sm:$0xff] %v4005
        %4014 = vst [vmem:[%s203 + $0x20] sm:$0xff] %v4006
        %4015 = vst [vmem:[%s203 + $0x28] sm:$0xff] %v4007
        %4016 = vst [vmem:[%s203 + $0x30] sm:$0xff] %v4008
        %4017 = vst [vmem:[%s203 + $0x38] sm:$0xff] %v4009
        %s4018 = sand.u32 %s97, 1
        %s4019 = scalar_lea.sflag [#allocation5], %s4018
        %s4020 = sand.u32 %s97, 1
        %s4021 = smul.addr %s4020, 64
        %s4022 = scalar_lea.vmem [#allocation8], %s4021
        // Predicated region
        $region41: #{tpu_custom_call.1} parent=31 // pred_check
          %p4023 = pneg %p107
        $region42: #{tpu_custom_call.1} parent=31 // pred_check_branch
          %4025 = sbr.rel (%p4023) target = $region44
        $region43: #{tpu_custom_call.1} parent=31 // pred_region
          %s4026 = smul.u32 8, %s21
          %s4028 = ssub.s32 1024, 1024
          %4029 = vsyncadd %s4019, %s4028
          %s4030 = smul.addr %s4026, 128
          %s4031 = scalar_lea.hbm %s3, %s4030
          %s4032 = sshll.u32 %s4022, 4
          %s4033 = int_to_ptr.vmem [resolvable:$true] %s4032
          %4038 = dma.vmem_to_hbm [thread:$0]  %s4033, 1024, %s4031, %s4019, 128, 128, 8
        $region44: #{tpu_custom_call.1} parent=31 // pred_fallthru
          _
      $region32: #{tpu_custom_call.1} parent=5 // pred_fallthru
        _
      %p4039 = scmp.le.s32.totalorder 2, %s16
      // Predicated region
      $region45: #{tpu_custom_call.1} parent=5 // pred_check
        %p4040 = pneg %p4039
      $region46: #{tpu_custom_call.1} parent=5 // pred_check_branch
        %4042 = sbr.rel (%p4040) target = $region48
      $region47: #{tpu_custom_call.1} parent=5 // pred_region
        %s4043 = ssub.s32 %s16, 2
        // Predicated region
        $region49: #{tpu_custom_call.1} parent=47 // pred_check
          %p4044 = pneg %p113
        $region50: #{tpu_custom_call.1} parent=47 // pred_check_branch
          %4046 = sbr.rel (%p4044) target = $region52
        $region51: #{tpu_custom_call.1} parent=47 // pred_region
          %s4047 = sand.u32 %s98, 1
          %s4048 = scalar_lea.sflag [#allocation5], %s4047
          %s4049 = sand.u32 %s98, 1
          %s4050 = smul.addr %s4049, 64
          %s4051 = scalar_lea.vmem [#allocation8], %s4050
          %4052 = dma.done %s4048, 1024
        $region52: #{tpu_custom_call.1} parent=47 // pred_fallthru
          _
      $region48: #{tpu_custom_call.1} parent=5 // pred_fallthru
        _
    $region6: #{tpu_custom_call.1} parent=1 // loop_footer
      %s20 = sadd.s32 1, %s16
    $region7: #{tpu_custom_call.1} parent=1 // loop_footer_branch
      %15 = sbr.rel target = $region3
    $region8: #{tpu_custom_call.1} parent=1 // loop_exit
      _
    %4053 = vsyncpa [#allocation4], 1
    %s4054 = scalar_lea.sflag [#allocation4], 1
    %4055 = vsyncpa %s4054, 1
    %4056 = vsyncpa [#allocation7], 1
    %4057 = vsyncpa [#allocation5], 1
    %s4058 = scalar_lea.sflag [#allocation5], 1
    %4059 = vsyncpa %s4058, 1

</llo_original>
